<compile_context>
chip_gen: v7x
topology: tpu7x:2x2x1
jax: 0.10.0
libtpu: 0.0.40
codegen_flags: <defaults>
</compile_context>

<pallas_src>
import functools

import jax
import jax.numpy as jnp
from jax.experimental import pallas as pl
from jax.experimental.pallas import tpu as pltpu


def _shifted(x, off, hw):
    """x[:, p + off] along the flattened spatial (lane) axis, circular.

    Out-of-range / row-wraparound positions are zeroed by the caller's mask.
    """
    sh = (-off) % hw
    if sh == 0:
        return x
    return pltpu.roll(x, sh, axis=1)


def sccsa_kernel(x_ref, w1_ref, b1_ref, w2_ref, b2_ref,
                 cw1_ref, s1_ref, sb1_ref, cw2_ref, s2_ref, sb2_ref,
                 mask_ref, out_ref, p1_ref, p2_ref, *, width):
    C, HW = x_ref.shape[1], x_ref.shape[2]
    Cr = cw1_ref.shape[0]

    x = x_ref[0]                                            # (C, HW), lane-dense

    # ---- channel attention: per-pixel 2-layer MLP over channels -------------
    h = jnp.maximum(
        jax.lax.dot_general(w1_ref[...], x, (((1,), (0,)), ((), ())),
                            preferred_element_type=jnp.float32) + b1_ref[...],
        0.0)                                                # (Cr, HW)
    att = jax.lax.dot_general(w2_ref[...], h, (((1,), (0,)), ((), ())),
                              preferred_element_type=jnp.float32) + b2_ref[...]
    x_ca = x * att                                          # x * channel_att

    # ---- spatial attention: conv7x7 -> BN -> ReLU -> conv7x7 -> BN -> sigmoid
    # im2col via masked lane rolls; one big-K MXU matmul per conv.
    for t in range(49):
        off = (t // 7 - 3) * width + (t % 7 - 3)
        shifted = _shifted(x_ca, off, HW)
        # sublane offset t*C is a multiple of 16 -> aligned stores
        p1_ref[pl.ds(t * C, C), :] = shifted * mask_ref[pl.ds(t, 1), :]

    y1 = jax.lax.dot_general(cw1_ref[...], p1_ref[...],     # (Cr,49C) @ (49C,HW)
                             (((1,), (0,)), ((), ())),
                             preferred_element_type=jnp.float32)
    h1 = jnp.maximum(y1 * s1_ref[...] + sb1_ref[...], 0.0)  # conv1 + BN1 + ReLU

    for t in range(49):
        off = (t // 7 - 3) * width + (t % 7 - 3)
        shifted = _shifted(h1, off, HW)
        p2_ref[pl.ds(t * Cr, Cr), :] = shifted * mask_ref[pl.ds(t, 1), :]

    y2 = jax.lax.dot_general(cw2_ref[...], p2_ref[...],     # (Cout,49Cr) @ (49Cr,HW)
                             (((1,), (0,)), ((), ())),
                             preferred_element_type=jnp.float32)
    spatial = jax.nn.sigmoid(y2 * s2_ref[...] + sb2_ref[...])   # conv2 + BN2

    out_ref[0] = (x_ca * spatial).astype(out_ref.dtype)


def sccsa_forward(x_nchw, params):
    (w1, b1, w2, b2, cw1, s1, sb1, cw2, s2, sb2) = params
    B, C, H, W = x_nchw.shape
    Cr = cw1.shape[2]
    Cout = cw2.shape[2]
    assert Cout == C, "out_channels must equal in_channels for x * spatial_att"
    HW = H * W

    # NCHW -> (B, C, H*W): free reshape, lane-dense (HW multiple of 128) blocks.
    x = x_nchw.reshape(B, C, HW)

    # Kernel-layout parameters (channels-first, lane-dense weight tiles).
    w1t = w1.T                                   # (Cr, C)
    b1c = b1.reshape(Cr, 1)
    w2t = w2.T                                   # (C, Cr)
    b2c = b2.reshape(C, 1)
    cw1k = jnp.transpose(cw1, (2, 0, 1)).reshape(Cr, 49 * C)      # (Cr, 49*C)
    cw2k = jnp.transpose(cw2, (2, 0, 1)).reshape(Cout, 49 * Cr)   # (Cout, 49*Cr)
    s1c, sb1c = s1.reshape(Cr, 1), sb1.reshape(Cr, 1)
    s2c, sb2c = s2.reshape(Cout, 1), sb2.reshape(Cout, 1)

    # Per-tap validity mask for the roll-based im2col (handles zero padding
    # and row wraparound of the flattened spatial axis).
    ys = jnp.repeat(jnp.arange(H, dtype=jnp.int32), W)
    xs = jnp.tile(jnp.arange(W, dtype=jnp.int32), H)
    tap_masks = []
    for t in range(49):
        dy, dx = t // 7 - 3, t % 7 - 3
        tap_masks.append((ys + dy >= 0) & (ys + dy < H) &
                         (xs + dx >= 0) & (xs + dx < W))
    mask = jnp.stack(tap_masks).astype(jnp.float32)               # (49, HW)

    def _rep(a):  # full-array block, constant index map -> fetched once
        return pl.BlockSpec(a.shape, lambda i, _n=a.ndim: (0,) * _n)

    kernel = functools.partial(sccsa_kernel, width=W)

    out = pl.pallas_call(
        kernel,
        out_shape=jax.ShapeDtypeStruct((B, C, HW), x.dtype),
        grid_spec=pltpu.PrefetchScalarGridSpec(
            num_scalar_prefetch=0,
            grid=(B,),
            in_specs=[
                pl.BlockSpec((1, C, HW), lambda i: (i, 0, 0)),
                _rep(w1t), _rep(b1c), _rep(w2t), _rep(b2c),
                _rep(cw1k), _rep(s1c), _rep(sb1c),
                _rep(cw2k), _rep(s2c), _rep(sb2c),
                _rep(mask),
            ],
            out_specs=pl.BlockSpec((1, C, HW), lambda i: (i, 0, 0)),
            scratch_shapes=[
                pltpu.VMEM((49 * C, HW), jnp.float32),   # im2col patches, conv1
                pltpu.VMEM((49 * Cr, HW), jnp.float32),  # im2col patches, conv2
            ]),
        compiler_params=pltpu.CompilerParams(
            dimension_semantics=("parallel",)),
    )(x, w1t, b1c, w2t, b2c, cw1k, s1c, sb1c, cw2k, s2c, sb2c, mask)

    return out.reshape(B, C, H, W)


def sccsa_reference(x_nchw, params):
    """Pure-JAX reference with identical semantics (for verification)."""
    (w1, b1, w2, b2, cw1, s1, sb1, cw2, s2, sb2) = params
    B, C, H, W = x_nchw.shape
    x = jnp.transpose(x_nchw, (0, 2, 3, 1))
    att = jnp.maximum(x @ w1 + b1[0], 0.0) @ w2 + b2[0]
    x_ca = x * att
    k1 = cw1.reshape(7, 7, C, -1)
    y = jax.lax.conv_general_dilated(
        x_ca, k1, (1, 1), ((3, 3), (3, 3)),
        dimension_numbers=('NHWC', 'HWIO', 'NHWC'))
    y = jnp.maximum(y * s1[0] + sb1[0], 0.0)
    k2 = cw2.reshape(7, 7, k1.shape[3], -1)
    z = jax.lax.conv_general_dilated(
        y, k2, (1, 1), ((3, 3), (3, 3)),
        dimension_numbers=('NHWC', 'HWIO', 'NHWC'))
    sp = jax.nn.sigmoid(z * s2[0] + sb2[0])
    return jnp.transpose(x_ca * sp, (0, 3, 1, 2))


def make_params(key, in_channels, out_channels, rate=4, eps=1e-5):
    cr = in_channels // rate
    ks = jax.random.split(key, 16)
    f32 = jnp.float32
    # channel attention (Linear C->Cr, Linear Cr->C); stored as (in, out)
    w1 = jax.random.normal(ks[0], (in_channels, cr), f32) * 0.1
    b1 = jax.random.normal(ks[1], (1, cr), f32) * 0.1
    w2 = jax.random.normal(ks[2], (cr, in_channels), f32) * 0.1
    b2 = jax.random.normal(ks[3], (1, in_channels), f32) * 0.1
    # conv1 7x7 (C -> Cr) + BN1, conv2 7x7 (Cr -> Cout) + BN2, eval-mode BN fused
    cw1 = jax.random.normal(ks[4], (7, 7, in_channels, cr), f32) * 0.05
    cb1 = jax.random.normal(ks[5], (cr,), f32) * 0.1
    g1 = 1.0 + 0.1 * jax.random.normal(ks[6], (cr,), f32)
    be1 = 0.1 * jax.random.normal(ks[7], (cr,), f32)
    rm1 = 0.1 * jax.random.normal(ks[8], (cr,), f32)
    rv1 = 1.0 + 0.1 * jax.random.uniform(ks[9], (cr,), f32)
    s1 = (g1 / jnp.sqrt(rv1 + eps)).reshape(1, cr)
    sb1 = (be1 + (cb1 - rm1) * s1[0]).reshape(1, cr)

    cw2 = jax.random.normal(ks[10], (7, 7, cr, out_channels), f32) * 0.05
    cb2 = jax.random.normal(ks[11], (out_channels,), f32) * 0.1
    g2 = 1.0 + 0.1 * jax.random.normal(ks[12], (out_channels,), f32)
    be2 = 0.1 * jax.random.normal(ks[13], (out_channels,), f32)
    rm2 = 0.1 * jax.random.normal(ks[14], (out_channels,), f32)
    rv2 = 1.0 + 0.1 * jax.random.uniform(ks[15], (out_channels,), f32)
    s2 = (g2 / jnp.sqrt(rv2 + eps)).reshape(1, out_channels)
    sb2 = (be2 + (cb2 - rm2) * s2[0]).reshape(1, out_channels)

    return (w1, b1, w2, b2,
            cw1.reshape(49, in_channels, cr), s1, sb1,
            cw2.reshape(49, cr, out_channels), s2, sb2)


if __name__ == "__main__":
    B, C, H, W = 2, 16, 16, 16   # out_channels == in_channels (needed for x * spatial_att)
    key = jax.random.PRNGKey(0)
    kx, kp = jax.random.split(key)
    x = jax.random.normal(kx, (B, C, H, W), jnp.float32)
    params = make_params(kp, in_channels=C, out_channels=C, rate=4)

    out = jax.block_until_ready(sccsa_forward(x, params))
    ref = jax.block_until_ready(sccsa_reference(x, params))

    assert out.shape == (B, C, H, W)
    err = float(jnp.max(jnp.abs(out - ref)))
    assert jnp.allclose(out, ref, atol=5e-4, rtol=5e-4), err
    print("KERNEL_OK")
</pallas_src>

<mosaic_0001>
module attributes {stable_mosaic.version = 11 : i64} {
  func.func @sccsa_kernel(%arg0: i32, %arg1: memref<1x16x256xf32, #tpu.memory_space<vmem>>, %arg2: memref<4x16xf32, #tpu.memory_space<vmem>>, %arg3: memref<4x1xf32, #tpu.memory_space<vmem>>, %arg4: memref<16x4xf32, #tpu.memory_space<vmem>>, %arg5: memref<16x1xf32, #tpu.memory_space<vmem>>, %arg6: memref<4x784xf32, #tpu.memory_space<vmem>>, %arg7: memref<4x1xf32, #tpu.memory_space<vmem>>, %arg8: memref<4x1xf32, #tpu.memory_space<vmem>>, %arg9: memref<16x196xf32, #tpu.memory_space<vmem>>, %arg10: memref<16x1xf32, #tpu.memory_space<vmem>>, %arg11: memref<16x1xf32, #tpu.memory_space<vmem>>, %arg12: memref<49x256xf32, #tpu.memory_space<vmem>>, %arg13: memref<1x16x256xf32, #tpu.memory_space<vmem>>, %arg14: memref<784x256xf32, #tpu.memory_space<vmem>>, %arg15: memref<196x256xf32, #tpu.memory_space<vmem>>) attributes {dimension_semantics = [#tpu.dimension_semantics<parallel>], iteration_bounds = array<i64: 2>, scalar_prefetch = 0 : i64, scratch_operands = 2 : i64, tpu.core_type = #tpu.core_type<tc>, window_params = [{transform_indices = @transform_0, window_bounds = array<i64: 1, 16, 256>}, {pipeline_mode = #tpu.pipeline_mode<synchronous>, transform_indices = @transform_1, window_bounds = array<i64: 4, 16>}, {pipeline_mode = #tpu.pipeline_mode<synchronous>, transform_indices = @transform_2, window_bounds = array<i64: 4, 1>}, {pipeline_mode = #tpu.pipeline_mode<synchronous>, transform_indices = @transform_3, window_bounds = array<i64: 16, 4>}, {pipeline_mode = #tpu.pipeline_mode<synchronous>, transform_indices = @transform_4, window_bounds = array<i64: 16, 1>}, {pipeline_mode = #tpu.pipeline_mode<synchronous>, transform_indices = @transform_5, window_bounds = array<i64: 4, 784>}, {pipeline_mode = #tpu.pipeline_mode<synchronous>, transform_indices = @transform_6, window_bounds = array<i64: 4, 1>}, {pipeline_mode = #tpu.pipeline_mode<synchronous>, transform_indices = @transform_7, window_bounds = array<i64: 4, 1>}, {pipeline_mode = #tpu.pipeline_mode<synchronous>, transform_indices = @transform_8, window_bounds = array<i64: 16, 196>}, {pipeline_mode = #tpu.pipeline_mode<synchronous>, transform_indices = @transform_9, window_bounds = array<i64: 16, 1>}, {pipeline_mode = #tpu.pipeline_mode<synchronous>, transform_indices = @transform_10, window_bounds = array<i64: 16, 1>}, {pipeline_mode = #tpu.pipeline_mode<synchronous>, transform_indices = @transform_11, window_bounds = array<i64: 49, 256>}, {transform_indices = @transform_12, window_bounds = array<i64: 1, 16, 256>}]} {
    %c0 = arith.constant 0 : index
    %c0_0 = arith.constant 0 : index
    %c0_1 = arith.constant 0 : index
    %0 = vector.load %arg1[%c0, %c0_0, %c0_1] : memref<1x16x256xf32, #tpu.memory_space<vmem>>, vector<1x16x256xf32>
    %1 = vector.shape_cast %0 : vector<1x16x256xf32> to vector<16x256xf32>
    %c0_2 = arith.constant 0 : index
    %c0_3 = arith.constant 0 : index
    %2 = vector.load %arg2[%c0_2, %c0_3] : memref<4x16xf32, #tpu.memory_space<vmem>>, vector<4x16xf32>
    %cst = arith.constant dense<0.000000e+00> : vector<4x256xf32>
    %3 = tpu.matmul %2, %1, %cst {dimension_numbers = #tpu.dot_dimension_numbers<[1], [0], [0], [1], [0, 0, 1, 1], [], []>} : vector<4x16xf32>, vector<16x256xf32>, vector<4x256xf32> -> vector<4x256xf32>
    %c0_4 = arith.constant 0 : index
    %c0_5 = arith.constant 0 : index
    %4 = vector.load %arg3[%c0_4, %c0_5] : memref<4x1xf32, #tpu.memory_space<vmem>>, vector<4x1xf32>
    %5 = vector.broadcast %4 : vector<4x1xf32> to vector<4x256xf32>
    %6 = arith.addf %3, %5 : vector<4x256xf32>
    %cst_6 = arith.constant 0.000000e+00 : f32
    %7 = vector.broadcast %cst_6 : f32 to vector<4x256xf32>
    %8 = arith.maximumf %6, %7 : vector<4x256xf32>
    %c0_7 = arith.constant 0 : index
    %c0_8 = arith.constant 0 : index
    %9 = vector.load %arg4[%c0_7, %c0_8] : memref<16x4xf32, #tpu.memory_space<vmem>>, vector<16x4xf32>
    %cst_9 = arith.constant dense<0.000000e+00> : vector<16x256xf32>
    %10 = tpu.matmul %9, %8, %cst_9 {dimension_numbers = #tpu.dot_dimension_numbers<[1], [0], [0], [1], [0, 0, 1, 1], [], []>} : vector<16x4xf32>, vector<4x256xf32>, vector<16x256xf32> -> vector<16x256xf32>
    %c0_10 = arith.constant 0 : index
    %c0_11 = arith.constant 0 : index
    %11 = vector.load %arg5[%c0_10, %c0_11] : memref<16x1xf32, #tpu.memory_space<vmem>>, vector<16x1xf32>
    %12 = vector.broadcast %11 : vector<16x1xf32> to vector<16x256xf32>
    %13 = arith.addf %10, %12 : vector<16x256xf32>
    %14 = arith.mulf %1, %13 : vector<16x256xf32>
    %c51_i32 = arith.constant 51 : i32
    %15 = tpu.dynamic_rotate %14 by %c51_i32 dim 1 : vector<16x256xf32>, i32 -> vector<16x256xf32>
    %c0_12 = arith.constant 0 : index
    %c0_13 = arith.constant 0 : index
    %16 = vector.load %arg12[%c0_12, %c0_13] : memref<49x256xf32, #tpu.memory_space<vmem>>, vector<1x256xf32>
    %17 = vector.broadcast %16 : vector<1x256xf32> to vector<16x256xf32>
    %18 = arith.mulf %15, %17 : vector<16x256xf32>
    %c0_14 = arith.constant 0 : index
    %c0_15 = arith.constant 0 : index
    %19 = vector.load %arg14[%c0_14, %c0_15] : memref<784x256xf32, #tpu.memory_space<vmem>>, vector<16x256xf32>
    tpu.vector_store %arg14[%c0_14, %c0_15], %18 {strides = array<i32>} : memref<784x256xf32, #tpu.memory_space<vmem>>, vector<16x256xf32>,
    %c50_i32 = arith.constant 50 : i32
    %20 = tpu.dynamic_rotate %14 by %c50_i32 dim 1 : vector<16x256xf32>, i32 -> vector<16x256xf32>
    %c1 = arith.constant 1 : index
    %c0_16 = arith.constant 0 : index
    %21 = vector.load %arg12[%c1, %c0_16] : memref<49x256xf32, #tpu.memory_space<vmem>>, vector<1x256xf32>
    %22 = vector.broadcast %21 : vector<1x256xf32> to vector<16x256xf32>
    %23 = arith.mulf %20, %22 : vector<16x256xf32>
    %c16 = arith.constant 16 : index
    %c0_17 = arith.constant 0 : index
    %24 = vector.load %arg14[%c16, %c0_17] : memref<784x256xf32, #tpu.memory_space<vmem>>, vector<16x256xf32>
    tpu.vector_store %arg14[%c16, %c0_17], %23 {strides = array<i32>} : memref<784x256xf32, #tpu.memory_space<vmem>>, vector<16x256xf32>,
    %c49_i32 = arith.constant 49 : i32
    %25 = tpu.dynamic_rotate %14 by %c49_i32 dim 1 : vector<16x256xf32>, i32 -> vector<16x256xf32>
    %c2 = arith.constant 2 : index
    %c0_18 = arith.constant 0 : index
    %26 = vector.load %arg12[%c2, %c0_18] : memref<49x256xf32, #tpu.memory_space<vmem>>, vector<1x256xf32>
    %27 = vector.broadcast %26 : vector<1x256xf32> to vector<16x256xf32>
    %28 = arith.mulf %25, %27 : vector<16x256xf32>
    %c32 = arith.constant 32 : index
    %c0_19 = arith.constant 0 : index
    %29 = vector.load %arg14[%c32, %c0_19] : memref<784x256xf32, #tpu.memory_space<vmem>>, vector<16x256xf32>
    tpu.vector_store %arg14[%c32, %c0_19], %28 {strides = array<i32>} : memref<784x256xf32, #tpu.memory_space<vmem>>, vector<16x256xf32>,
    %c48_i32 = arith.constant 48 : i32
    %30 = tpu.dynamic_rotate %14 by %c48_i32 dim 1 : vector<16x256xf32>, i32 -> vector<16x256xf32>
    %c3 = arith.constant 3 : index
    %c0_20 = arith.constant 0 : index
    %31 = vector.load %arg12[%c3, %c0_20] : memref<49x256xf32, #tpu.memory_space<vmem>>, vector<1x256xf32>
    %32 = vector.broadcast %31 : vector<1x256xf32> to vector<16x256xf32>
    %33 = arith.mulf %30, %32 : vector<16x256xf32>
    %c48 = arith.constant 48 : index
    %c0_21 = arith.constant 0 : index
    %34 = vector.load %arg14[%c48, %c0_21] : memref<784x256xf32, #tpu.memory_space<vmem>>, vector<16x256xf32>
    tpu.vector_store %arg14[%c48, %c0_21], %33 {strides = array<i32>} : memref<784x256xf32, #tpu.memory_space<vmem>>, vector<16x256xf32>,
    %c47_i32 = arith.constant 47 : i32
    %35 = tpu.dynamic_rotate %14 by %c47_i32 dim 1 : vector<16x256xf32>, i32 -> vector<16x256xf32>
    %c4 = arith.constant 4 : index
    %c0_22 = arith.constant 0 : index
    %36 = vector.load %arg12[%c4, %c0_22] : memref<49x256xf32, #tpu.memory_space<vmem>>, vector<1x256xf32>
    %37 = vector.broadcast %36 : vector<1x256xf32> to vector<16x256xf32>
    %38 = arith.mulf %35, %37 : vector<16x256xf32>
    %c64 = arith.constant 64 : index
    %c0_23 = arith.constant 0 : index
    %39 = vector.load %arg14[%c64, %c0_23] : memref<784x256xf32, #tpu.memory_space<vmem>>, vector<16x256xf32>
    tpu.vector_store %arg14[%c64, %c0_23], %38 {strides = array<i32>} : memref<784x256xf32, #tpu.memory_space<vmem>>, vector<16x256xf32>,
    %c46_i32 = arith.constant 46 : i32
    %40 = tpu.dynamic_rotate %14 by %c46_i32 dim 1 : vector<16x256xf32>, i32 -> vector<16x256xf32>
    %c5 = arith.constant 5 : index
    %c0_24 = arith.constant 0 : index
    %41 = vector.load %arg12[%c5, %c0_24] : memref<49x256xf32, #tpu.memory_space<vmem>>, vector<1x256xf32>
    %42 = vector.broadcast %41 : vector<1x256xf32> to vector<16x256xf32>
    %43 = arith.mulf %40, %42 : vector<16x256xf32>
    %c80 = arith.constant 80 : index
    %c0_25 = arith.constant 0 : index
    %44 = vector.load %arg14[%c80, %c0_25] : memref<784x256xf32, #tpu.memory_space<vmem>>, vector<16x256xf32>
    tpu.vector_store %arg14[%c80, %c0_25], %43 {strides = array<i32>} : memref<784x256xf32, #tpu.memory_space<vmem>>, vector<16x256xf32>,
    %c45_i32 = arith.constant 45 : i32
    %45 = tpu.dynamic_rotate %14 by %c45_i32 dim 1 : vector<16x256xf32>, i32 -> vector<16x256xf32>
    %c6 = arith.constant 6 : index
    %c0_26 = arith.constant 0 : index
    %46 = vector.load %arg12[%c6, %c0_26] : memref<49x256xf32, #tpu.memory_space<vmem>>, vector<1x256xf32>
    %47 = vector.broadcast %46 : vector<1x256xf32> to vector<16x256xf32>
    %48 = arith.mulf %45, %47 : vector<16x256xf32>
    %c96 = arith.constant 96 : index
    %c0_27 = arith.constant 0 : index
    %49 = vector.load %arg14[%c96, %c0_27] : memref<784x256xf32, #tpu.memory_space<vmem>>, vector<16x256xf32>
    tpu.vector_store %arg14[%c96, %c0_27], %48 {strides = array<i32>} : memref<784x256xf32, #tpu.memory_space<vmem>>, vector<16x256xf32>,
    %c35_i32 = arith.constant 35 : i32
    %50 = tpu.dynamic_rotate %14 by %c35_i32 dim 1 : vector<16x256xf32>, i32 -> vector<16x256xf32>
    %c7 = arith.constant 7 : index
    %c0_28 = arith.constant 0 : index
    %51 = vector.load %arg12[%c7, %c0_28] : memref<49x256xf32, #tpu.memory_space<vmem>>, vector<1x256xf32>
    %52 = vector.broadcast %51 : vector<1x256xf32> to vector<16x256xf32>
    %53 = arith.mulf %50, %52 : vector<16x256xf32>
    %c112 = arith.constant 112 : index
    %c0_29 = arith.constant 0 : index
    %54 = vector.load %arg14[%c112, %c0_29] : memref<784x256xf32, #tpu.memory_space<vmem>>, vector<16x256xf32>
    tpu.vector_store %arg14[%c112, %c0_29], %53 {strides = array<i32>} : memref<784x256xf32, #tpu.memory_space<vmem>>, vector<16x256xf32>,
    %c34_i32 = arith.constant 34 : i32
    %55 = tpu.dynamic_rotate %14 by %c34_i32 dim 1 : vector<16x256xf32>, i32 -> vector<16x256xf32>
    %c8 = arith.constant 8 : index
    %c0_30 = arith.constant 0 : index
    %56 = vector.load %arg12[%c8, %c0_30] : memref<49x256xf32, #tpu.memory_space<vmem>>, vector<1x256xf32>
    %57 = vector.broadcast %56 : vector<1x256xf32> to vector<16x256xf32>
    %58 = arith.mulf %55, %57 : vector<16x256xf32>
    %c128 = arith.constant 128 : index
    %c0_31 = arith.constant 0 : index
    %59 = vector.load %arg14[%c128, %c0_31] : memref<784x256xf32, #tpu.memory_space<vmem>>, vector<16x256xf32>
    tpu.vector_store %arg14[%c128, %c0_31], %58 {strides = array<i32>} : memref<784x256xf32, #tpu.memory_space<vmem>>, vector<16x256xf32>,
    %c33_i32 = arith.constant 33 : i32
    %60 = tpu.dynamic_rotate %14 by %c33_i32 dim 1 : vector<16x256xf32>, i32 -> vector<16x256xf32>
    %c9 = arith.constant 9 : index
    %c0_32 = arith.constant 0 : index
    %61 = vector.load %arg12[%c9, %c0_32] : memref<49x256xf32, #tpu.memory_space<vmem>>, vector<1x256xf32>
    %62 = vector.broadcast %61 : vector<1x256xf32> to vector<16x256xf32>
    %63 = arith.mulf %60, %62 : vector<16x256xf32>
    %c144 = arith.constant 144 : index
    %c0_33 = arith.constant 0 : index
    %64 = vector.load %arg14[%c144, %c0_33] : memref<784x256xf32, #tpu.memory_space<vmem>>, vector<16x256xf32>
    tpu.vector_store %arg14[%c144, %c0_33], %63 {strides = array<i32>} : memref<784x256xf32, #tpu.memory_space<vmem>>, vector<16x256xf32>,
    %c32_i32 = arith.constant 32 : i32
    %65 = tpu.dynamic_rotate %14 by %c32_i32 dim 1 : vector<16x256xf32>, i32 -> vector<16x256xf32>
    %c10 = arith.constant 10 : index
    %c0_34 = arith.constant 0 : index
    %66 = vector.load %arg12[%c10, %c0_34] : memref<49x256xf32, #tpu.memory_space<vmem>>, vector<1x256xf32>
    %67 = vector.broadcast %66 : vector<1x256xf32> to vector<16x256xf32>
    %68 = arith.mulf %65, %67 : vector<16x256xf32>
    %c160 = arith.constant 160 : index
    %c0_35 = arith.constant 0 : index
    %69 = vector.load %arg14[%c160, %c0_35] : memref<784x256xf32, #tpu.memory_space<vmem>>, vector<16x256xf32>
    tpu.vector_store %arg14[%c160, %c0_35], %68 {strides = array<i32>} : memref<784x256xf32, #tpu.memory_space<vmem>>, vector<16x256xf32>,
    %c31_i32 = arith.constant 31 : i32
    %70 = tpu.dynamic_rotate %14 by %c31_i32 dim 1 : vector<16x256xf32>, i32 -> vector<16x256xf32>
    %c11 = arith.constant 11 : index
    %c0_36 = arith.constant 0 : index
    %71 = vector.load %arg12[%c11, %c0_36] : memref<49x256xf32, #tpu.memory_space<vmem>>, vector<1x256xf32>
    %72 = vector.broadcast %71 : vector<1x256xf32> to vector<16x256xf32>
    %73 = arith.mulf %70, %72 : vector<16x256xf32>
    %c176 = arith.constant 176 : index
    %c0_37 = arith.constant 0 : index
    %74 = vector.load %arg14[%c176, %c0_37] : memref<784x256xf32, #tpu.memory_space<vmem>>, vector<16x256xf32>
    tpu.vector_store %arg14[%c176, %c0_37], %73 {strides = array<i32>} : memref<784x256xf32, #tpu.memory_space<vmem>>, vector<16x256xf32>,
    %c30_i32 = arith.constant 30 : i32
    %75 = tpu.dynamic_rotate %14 by %c30_i32 dim 1 : vector<16x256xf32>, i32 -> vector<16x256xf32>
    %c12 = arith.constant 12 : index
    %c0_38 = arith.constant 0 : index
    %76 = vector.load %arg12[%c12, %c0_38] : memref<49x256xf32, #tpu.memory_space<vmem>>, vector<1x256xf32>
    %77 = vector.broadcast %76 : vector<1x256xf32> to vector<16x256xf32>
    %78 = arith.mulf %75, %77 : vector<16x256xf32>
    %c192 = arith.constant 192 : index
    %c0_39 = arith.constant 0 : index
    %79 = vector.load %arg14[%c192, %c0_39] : memref<784x256xf32, #tpu.memory_space<vmem>>, vector<16x256xf32>
    tpu.vector_store %arg14[%c192, %c0_39], %78 {strides = array<i32>} : memref<784x256xf32, #tpu.memory_space<vmem>>, vector<16x256xf32>,
    %c29_i32 = arith.constant 29 : i32
    %80 = tpu.dynamic_rotate %14 by %c29_i32 dim 1 : vector<16x256xf32>, i32 -> vector<16x256xf32>
    %c13 = arith.constant 13 : index
    %c0_40 = arith.constant 0 : index
    %81 = vector.load %arg12[%c13, %c0_40] : memref<49x256xf32, #tpu.memory_space<vmem>>, vector<1x256xf32>
    %82 = vector.broadcast %81 : vector<1x256xf32> to vector<16x256xf32>
    %83 = arith.mulf %80, %82 : vector<16x256xf32>
    %c208 = arith.constant 208 : index
    %c0_41 = arith.constant 0 : index
    %84 = vector.load %arg14[%c208, %c0_41] : memref<784x256xf32, #tpu.memory_space<vmem>>, vector<16x256xf32>
    tpu.vector_store %arg14[%c208, %c0_41], %83 {strides = array<i32>} : memref<784x256xf32, #tpu.memory_space<vmem>>, vector<16x256xf32>,
    %c19_i32 = arith.constant 19 : i32
    %85 = tpu.dynamic_rotate %14 by %c19_i32 dim 1 : vector<16x256xf32>, i32 -> vector<16x256xf32>
    %c14 = arith.constant 14 : index
    %c0_42 = arith.constant 0 : index
    %86 = vector.load %arg12[%c14, %c0_42] : memref<49x256xf32, #tpu.memory_space<vmem>>, vector<1x256xf32>
    %87 = vector.broadcast %86 : vector<1x256xf32> to vector<16x256xf32>
    %88 = arith.mulf %85, %87 : vector<16x256xf32>
    %c224 = arith.constant 224 : index
    %c0_43 = arith.constant 0 : index
    %89 = vector.load %arg14[%c224, %c0_43] : memref<784x256xf32, #tpu.memory_space<vmem>>, vector<16x256xf32>
    tpu.vector_store %arg14[%c224, %c0_43], %88 {strides = array<i32>} : memref<784x256xf32, #tpu.memory_space<vmem>>, vector<16x256xf32>,
    %c18_i32 = arith.constant 18 : i32
    %90 = tpu.dynamic_rotate %14 by %c18_i32 dim 1 : vector<16x256xf32>, i32 -> vector<16x256xf32>
    %c15 = arith.constant 15 : index
    %c0_44 = arith.constant 0 : index
    %91 = vector.load %arg12[%c15, %c0_44] : memref<49x256xf32, #tpu.memory_space<vmem>>, vector<1x256xf32>
    %92 = vector.broadcast %91 : vector<1x256xf32> to vector<16x256xf32>
    %93 = arith.mulf %90, %92 : vector<16x256xf32>
    %c240 = arith.constant 240 : index
    %c0_45 = arith.constant 0 : index
    %94 = vector.load %arg14[%c240, %c0_45] : memref<784x256xf32, #tpu.memory_space<vmem>>, vector<16x256xf32>
    tpu.vector_store %arg14[%c240, %c0_45], %93 {strides = array<i32>} : memref<784x256xf32, #tpu.memory_space<vmem>>, vector<16x256xf32>,
    %c17_i32 = arith.constant 17 : i32
    %95 = tpu.dynamic_rotate %14 by %c17_i32 dim 1 : vector<16x256xf32>, i32 -> vector<16x256xf32>
    %c16_46 = arith.constant 16 : index
    %c0_47 = arith.constant 0 : index
    %96 = vector.load %arg12[%c16_46, %c0_47] : memref<49x256xf32, #tpu.memory_space<vmem>>, vector<1x256xf32>
    %97 = vector.broadcast %96 : vector<1x256xf32> to vector<16x256xf32>
    %98 = arith.mulf %95, %97 : vector<16x256xf32>
    %c256 = arith.constant 256 : index
    %c0_48 = arith.constant 0 : index
    %99 = vector.load %arg14[%c256, %c0_48] : memref<784x256xf32, #tpu.memory_space<vmem>>, vector<16x256xf32>
    tpu.vector_store %arg14[%c256, %c0_48], %98 {strides = array<i32>} : memref<784x256xf32, #tpu.memory_space<vmem>>, vector<16x256xf32>,
    %c16_i32 = arith.constant 16 : i32
    %100 = tpu.dynamic_rotate %14 by %c16_i32 dim 1 : vector<16x256xf32>, i32 -> vector<16x256xf32>
    %c17 = arith.constant 17 : index
    %c0_49 = arith.constant 0 : index
    %101 = vector.load %arg12[%c17, %c0_49] : memref<49x256xf32, #tpu.memory_space<vmem>>, vector<1x256xf32>
    %102 = vector.broadcast %101 : vector<1x256xf32> to vector<16x256xf32>
    %103 = arith.mulf %100, %102 : vector<16x256xf32>
    %c272 = arith.constant 272 : index
    %c0_50 = arith.constant 0 : index
    %104 = vector.load %arg14[%c272, %c0_50] : memref<784x256xf32, #tpu.memory_space<vmem>>, vector<16x256xf32>
    tpu.vector_store %arg14[%c272, %c0_50], %103 {strides = array<i32>} : memref<784x256xf32, #tpu.memory_space<vmem>>, vector<16x256xf32>,
    %c15_i32 = arith.constant 15 : i32
    %105 = tpu.dynamic_rotate %14 by %c15_i32 dim 1 : vector<16x256xf32>, i32 -> vector<16x256xf32>
    %c18 = arith.constant 18 : index
    %c0_51 = arith.constant 0 : index
    %106 = vector.load %arg12[%c18, %c0_51] : memref<49x256xf32, #tpu.memory_space<vmem>>, vector<1x256xf32>
    %107 = vector.broadcast %106 : vector<1x256xf32> to vector<16x256xf32>
    %108 = arith.mulf %105, %107 : vector<16x256xf32>
    %c288 = arith.constant 288 : index
    %c0_52 = arith.constant 0 : index
    %109 = vector.load %arg14[%c288, %c0_52] : memref<784x256xf32, #tpu.memory_space<vmem>>, vector<16x256xf32>
    tpu.vector_store %arg14[%c288, %c0_52], %108 {strides = array<i32>} : memref<784x256xf32, #tpu.memory_space<vmem>>, vector<16x256xf32>,
    %c14_i32 = arith.constant 14 : i32
    %110 = tpu.dynamic_rotate %14 by %c14_i32 dim 1 : vector<16x256xf32>, i32 -> vector<16x256xf32>
    %c19 = arith.constant 19 : index
    %c0_53 = arith.constant 0 : index
    %111 = vector.load %arg12[%c19, %c0_53] : memref<49x256xf32, #tpu.memory_space<vmem>>, vector<1x256xf32>
    %112 = vector.broadcast %111 : vector<1x256xf32> to vector<16x256xf32>
    %113 = arith.mulf %110, %112 : vector<16x256xf32>
    %c304 = arith.constant 304 : index
    %c0_54 = arith.constant 0 : index
    %114 = vector.load %arg14[%c304, %c0_54] : memref<784x256xf32, #tpu.memory_space<vmem>>, vector<16x256xf32>
    tpu.vector_store %arg14[%c304, %c0_54], %113 {strides = array<i32>} : memref<784x256xf32, #tpu.memory_space<vmem>>, vector<16x256xf32>,
    %c13_i32 = arith.constant 13 : i32
    %115 = tpu.dynamic_rotate %14 by %c13_i32 dim 1 : vector<16x256xf32>, i32 -> vector<16x256xf32>
    %c20 = arith.constant 20 : index
    %c0_55 = arith.constant 0 : index
    %116 = vector.load %arg12[%c20, %c0_55] : memref<49x256xf32, #tpu.memory_space<vmem>>, vector<1x256xf32>
    %117 = vector.broadcast %116 : vector<1x256xf32> to vector<16x256xf32>
    %118 = arith.mulf %115, %117 : vector<16x256xf32>
    %c320 = arith.constant 320 : index
    %c0_56 = arith.constant 0 : index
    %119 = vector.load %arg14[%c320, %c0_56] : memref<784x256xf32, #tpu.memory_space<vmem>>, vector<16x256xf32>
    tpu.vector_store %arg14[%c320, %c0_56], %118 {strides = array<i32>} : memref<784x256xf32, #tpu.memory_space<vmem>>, vector<16x256xf32>,
    %c3_i32 = arith.constant 3 : i32
    %120 = tpu.dynamic_rotate %14 by %c3_i32 dim 1 : vector<16x256xf32>, i32 -> vector<16x256xf32>
    %c21 = arith.constant 21 : index
    %c0_57 = arith.constant 0 : index
    %121 = vector.load %arg12[%c21, %c0_57] : memref<49x256xf32, #tpu.memory_space<vmem>>, vector<1x256xf32>
    %122 = vector.broadcast %121 : vector<1x256xf32> to vector<16x256xf32>
    %123 = arith.mulf %120, %122 : vector<16x256xf32>
    %c336 = arith.constant 336 : index
    %c0_58 = arith.constant 0 : index
    %124 = vector.load %arg14[%c336, %c0_58] : memref<784x256xf32, #tpu.memory_space<vmem>>, vector<16x256xf32>
    tpu.vector_store %arg14[%c336, %c0_58], %123 {strides = array<i32>} : memref<784x256xf32, #tpu.memory_space<vmem>>, vector<16x256xf32>,
    %c2_i32 = arith.constant 2 : i32
    %125 = tpu.dynamic_rotate %14 by %c2_i32 dim 1 : vector<16x256xf32>, i32 -> vector<16x256xf32>
    %c22 = arith.constant 22 : index
    %c0_59 = arith.constant 0 : index
    %126 = vector.load %arg12[%c22, %c0_59] : memref<49x256xf32, #tpu.memory_space<vmem>>, vector<1x256xf32>
    %127 = vector.broadcast %126 : vector<1x256xf32> to vector<16x256xf32>
    %128 = arith.mulf %125, %127 : vector<16x256xf32>
    %c352 = arith.constant 352 : index
    %c0_60 = arith.constant 0 : index
    %129 = vector.load %arg14[%c352, %c0_60] : memref<784x256xf32, #tpu.memory_space<vmem>>, vector<16x256xf32>
    tpu.vector_store %arg14[%c352, %c0_60], %128 {strides = array<i32>} : memref<784x256xf32, #tpu.memory_space<vmem>>, vector<16x256xf32>,
    %c1_i32 = arith.constant 1 : i32
    %130 = tpu.dynamic_rotate %14 by %c1_i32 dim 1 : vector<16x256xf32>, i32 -> vector<16x256xf32>
    %c23 = arith.constant 23 : index
    %c0_61 = arith.constant 0 : index
    %131 = vector.load %arg12[%c23, %c0_61] : memref<49x256xf32, #tpu.memory_space<vmem>>, vector<1x256xf32>
    %132 = vector.broadcast %131 : vector<1x256xf32> to vector<16x256xf32>
    %133 = arith.mulf %130, %132 : vector<16x256xf32>
    %c368 = arith.constant 368 : index
    %c0_62 = arith.constant 0 : index
    %134 = vector.load %arg14[%c368, %c0_62] : memref<784x256xf32, #tpu.memory_space<vmem>>, vector<16x256xf32>
    tpu.vector_store %arg14[%c368, %c0_62], %133 {strides = array<i32>} : memref<784x256xf32, #tpu.memory_space<vmem>>, vector<16x256xf32>,
    %c24 = arith.constant 24 : index
    %c0_63 = arith.constant 0 : index
    %135 = vector.load %arg12[%c24, %c0_63] : memref<49x256xf32, #tpu.memory_space<vmem>>, vector<1x256xf32>
    %136 = vector.broadcast %135 : vector<1x256xf32> to vector<16x256xf32>
    %137 = arith.mulf %14, %136 : vector<16x256xf32>
    %c384 = arith.constant 384 : index
    %c0_64 = arith.constant 0 : index
    %138 = vector.load %arg14[%c384, %c0_64] : memref<784x256xf32, #tpu.memory_space<vmem>>, vector<16x256xf32>
    tpu.vector_store %arg14[%c384, %c0_64], %137 {strides = array<i32>} : memref<784x256xf32, #tpu.memory_space<vmem>>, vector<16x256xf32>,
    %c255_i32 = arith.constant 255 : i32
    %139 = tpu.dynamic_rotate %14 by %c255_i32 dim 1 : vector<16x256xf32>, i32 -> vector<16x256xf32>
    %c25 = arith.constant 25 : index
    %c0_65 = arith.constant 0 : index
    %140 = vector.load %arg12[%c25, %c0_65] : memref<49x256xf32, #tpu.memory_space<vmem>>, vector<1x256xf32>
    %141 = vector.broadcast %140 : vector<1x256xf32> to vector<16x256xf32>
    %142 = arith.mulf %139, %141 : vector<16x256xf32>
    %c400 = arith.constant 400 : index
    %c0_66 = arith.constant 0 : index
    %143 = vector.load %arg14[%c400, %c0_66] : memref<784x256xf32, #tpu.memory_space<vmem>>, vector<16x256xf32>
    tpu.vector_store %arg14[%c400, %c0_66], %142 {strides = array<i32>} : memref<784x256xf32, #tpu.memory_space<vmem>>, vector<16x256xf32>,
    %c254_i32 = arith.constant 254 : i32
    %144 = tpu.dynamic_rotate %14 by %c254_i32 dim 1 : vector<16x256xf32>, i32 -> vector<16x256xf32>
    %c26 = arith.constant 26 : index
    %c0_67 = arith.constant 0 : index
    %145 = vector.load %arg12[%c26, %c0_67] : memref<49x256xf32, #tpu.memory_space<vmem>>, vector<1x256xf32>
    %146 = vector.broadcast %145 : vector<1x256xf32> to vector<16x256xf32>
    %147 = arith.mulf %144, %146 : vector<16x256xf32>
    %c416 = arith.constant 416 : index
    %c0_68 = arith.constant 0 : index
    %148 = vector.load %arg14[%c416, %c0_68] : memref<784x256xf32, #tpu.memory_space<vmem>>, vector<16x256xf32>
    tpu.vector_store %arg14[%c416, %c0_68], %147 {strides = array<i32>} : memref<784x256xf32, #tpu.memory_space<vmem>>, vector<16x256xf32>,
    %c253_i32 = arith.constant 253 : i32
    %149 = tpu.dynamic_rotate %14 by %c253_i32 dim 1 : vector<16x256xf32>, i32 -> vector<16x256xf32>
    %c27 = arith.constant 27 : index
    %c0_69 = arith.constant 0 : index
    %150 = vector.load %arg12[%c27, %c0_69] : memref<49x256xf32, #tpu.memory_space<vmem>>, vector<1x256xf32>
    %151 = vector.broadcast %150 : vector<1x256xf32> to vector<16x256xf32>
    %152 = arith.mulf %149, %151 : vector<16x256xf32>
    %c432 = arith.constant 432 : index
    %c0_70 = arith.constant 0 : index
    %153 = vector.load %arg14[%c432, %c0_70] : memref<784x256xf32, #tpu.memory_space<vmem>>, vector<16x256xf32>
    tpu.vector_store %arg14[%c432, %c0_70], %152 {strides = array<i32>} : memref<784x256xf32, #tpu.memory_space<vmem>>, vector<16x256xf32>,
    %c243_i32 = arith.constant 243 : i32
    %154 = tpu.dynamic_rotate %14 by %c243_i32 dim 1 : vector<16x256xf32>, i32 -> vector<16x256xf32>
    %c28 = arith.constant 28 : index
    %c0_71 = arith.constant 0 : index
    %155 = vector.load %arg12[%c28, %c0_71] : memref<49x256xf32, #tpu.memory_space<vmem>>, vector<1x256xf32>
    %156 = vector.broadcast %155 : vector<1x256xf32> to vector<16x256xf32>
    %157 = arith.mulf %154, %156 : vector<16x256xf32>
    %c448 = arith.constant 448 : index
    %c0_72 = arith.constant 0 : index
    %158 = vector.load %arg14[%c448, %c0_72] : memref<784x256xf32, #tpu.memory_space<vmem>>, vector<16x256xf32>
    tpu.vector_store %arg14[%c448, %c0_72], %157 {strides = array<i32>} : memref<784x256xf32, #tpu.memory_space<vmem>>, vector<16x256xf32>,
    %c242_i32 = arith.constant 242 : i32
    %159 = tpu.dynamic_rotate %14 by %c242_i32 dim 1 : vector<16x256xf32>, i32 -> vector<16x256xf32>
    %c29 = arith.constant 29 : index
    %c0_73 = arith.constant 0 : index
    %160 = vector.load %arg12[%c29, %c0_73] : memref<49x256xf32, #tpu.memory_space<vmem>>, vector<1x256xf32>
    %161 = vector.broadcast %160 : vector<1x256xf32> to vector<16x256xf32>
    %162 = arith.mulf %159, %161 : vector<16x256xf32>
    %c464 = arith.constant 464 : index
    %c0_74 = arith.constant 0 : index
    %163 = vector.load %arg14[%c464, %c0_74] : memref<784x256xf32, #tpu.memory_space<vmem>>, vector<16x256xf32>
    tpu.vector_store %arg14[%c464, %c0_74], %162 {strides = array<i32>} : memref<784x256xf32, #tpu.memory_space<vmem>>, vector<16x256xf32>,
    %c241_i32 = arith.constant 241 : i32
    %164 = tpu.dynamic_rotate %14 by %c241_i32 dim 1 : vector<16x256xf32>, i32 -> vector<16x256xf32>
    %c30 = arith.constant 30 : index
    %c0_75 = arith.constant 0 : index
    %165 = vector.load %arg12[%c30, %c0_75] : memref<49x256xf32, #tpu.memory_space<vmem>>, vector<1x256xf32>
    %166 = vector.broadcast %165 : vector<1x256xf32> to vector<16x256xf32>
    %167 = arith.mulf %164, %166 : vector<16x256xf32>
    %c480 = arith.constant 480 : index
    %c0_76 = arith.constant 0 : index
    %168 = vector.load %arg14[%c480, %c0_76] : memref<784x256xf32, #tpu.memory_space<vmem>>, vector<16x256xf32>
    tpu.vector_store %arg14[%c480, %c0_76], %167 {strides = array<i32>} : memref<784x256xf32, #tpu.memory_space<vmem>>, vector<16x256xf32>,
    %c240_i32 = arith.constant 240 : i32
    %169 = tpu.dynamic_rotate %14 by %c240_i32 dim 1 : vector<16x256xf32>, i32 -> vector<16x256xf32>
    %c31 = arith.constant 31 : index
    %c0_77 = arith.constant 0 : index
    %170 = vector.load %arg12[%c31, %c0_77] : memref<49x256xf32, #tpu.memory_space<vmem>>, vector<1x256xf32>
    %171 = vector.broadcast %170 : vector<1x256xf32> to vector<16x256xf32>
    %172 = arith.mulf %169, %171 : vector<16x256xf32>
    %c496 = arith.constant 496 : index
    %c0_78 = arith.constant 0 : index
    %173 = vector.load %arg14[%c496, %c0_78] : memref<784x256xf32, #tpu.memory_space<vmem>>, vector<16x256xf32>
    tpu.vector_store %arg14[%c496, %c0_78], %172 {strides = array<i32>} : memref<784x256xf32, #tpu.memory_space<vmem>>, vector<16x256xf32>,
    %c239_i32 = arith.constant 239 : i32
    %174 = tpu.dynamic_rotate %14 by %c239_i32 dim 1 : vector<16x256xf32>, i32 -> vector<16x256xf32>
    %c32_79 = arith.constant 32 : index
    %c0_80 = arith.constant 0 : index
    %175 = vector.load %arg12[%c32_79, %c0_80] : memref<49x256xf32, #tpu.memory_space<vmem>>, vector<1x256xf32>
    %176 = vector.broadcast %175 : vector<1x256xf32> to vector<16x256xf32>
    %177 = arith.mulf %174, %176 : vector<16x256xf32>
    %c512 = arith.constant 512 : index
    %c0_81 = arith.constant 0 : index
    %178 = vector.load %arg14[%c512, %c0_81] : memref<784x256xf32, #tpu.memory_space<vmem>>, vector<16x256xf32>
    tpu.vector_store %arg14[%c512, %c0_81], %177 {strides = array<i32>} : memref<784x256xf32, #tpu.memory_space<vmem>>, vector<16x256xf32>,
    %c238_i32 = arith.constant 238 : i32
    %179 = tpu.dynamic_rotate %14 by %c238_i32 dim 1 : vector<16x256xf32>, i32 -> vector<16x256xf32>
    %c33 = arith.constant 33 : index
    %c0_82 = arith.constant 0 : index
    %180 = vector.load %arg12[%c33, %c0_82] : memref<49x256xf32, #tpu.memory_space<vmem>>, vector<1x256xf32>
    %181 = vector.broadcast %180 : vector<1x256xf32> to vector<16x256xf32>
    %182 = arith.mulf %179, %181 : vector<16x256xf32>
    %c528 = arith.constant 528 : index
    %c0_83 = arith.constant 0 : index
    %183 = vector.load %arg14[%c528, %c0_83] : memref<784x256xf32, #tpu.memory_space<vmem>>, vector<16x256xf32>
    tpu.vector_store %arg14[%c528, %c0_83], %182 {strides = array<i32>} : memref<784x256xf32, #tpu.memory_space<vmem>>, vector<16x256xf32>,
    %c237_i32 = arith.constant 237 : i32
    %184 = tpu.dynamic_rotate %14 by %c237_i32 dim 1 : vector<16x256xf32>, i32 -> vector<16x256xf32>
    %c34 = arith.constant 34 : index
    %c0_84 = arith.constant 0 : index
    %185 = vector.load %arg12[%c34, %c0_84] : memref<49x256xf32, #tpu.memory_space<vmem>>, vector<1x256xf32>
    %186 = vector.broadcast %185 : vector<1x256xf32> to vector<16x256xf32>
    %187 = arith.mulf %184, %186 : vector<16x256xf32>
    %c544 = arith.constant 544 : index
    %c0_85 = arith.constant 0 : index
    %188 = vector.load %arg14[%c544, %c0_85] : memref<784x256xf32, #tpu.memory_space<vmem>>, vector<16x256xf32>
    tpu.vector_store %arg14[%c544, %c0_85], %187 {strides = array<i32>} : memref<784x256xf32, #tpu.memory_space<vmem>>, vector<16x256xf32>,
    %c227_i32 = arith.constant 227 : i32
    %189 = tpu.dynamic_rotate %14 by %c227_i32 dim 1 : vector<16x256xf32>, i32 -> vector<16x256xf32>
    %c35 = arith.constant 35 : index
    %c0_86 = arith.constant 0 : index
    %190 = vector.load %arg12[%c35, %c0_86] : memref<49x256xf32, #tpu.memory_space<vmem>>, vector<1x256xf32>
    %191 = vector.broadcast %190 : vector<1x256xf32> to vector<16x256xf32>
    %192 = arith.mulf %189, %191 : vector<16x256xf32>
    %c560 = arith.constant 560 : index
    %c0_87 = arith.constant 0 : index
    %193 = vector.load %arg14[%c560, %c0_87] : memref<784x256xf32, #tpu.memory_space<vmem>>, vector<16x256xf32>
    tpu.vector_store %arg14[%c560, %c0_87], %192 {strides = array<i32>} : memref<784x256xf32, #tpu.memory_space<vmem>>, vector<16x256xf32>,
    %c226_i32 = arith.constant 226 : i32
    %194 = tpu.dynamic_rotate %14 by %c226_i32 dim 1 : vector<16x256xf32>, i32 -> vector<16x256xf32>
    %c36 = arith.constant 36 : index
    %c0_88 = arith.constant 0 : index
    %195 = vector.load %arg12[%c36, %c0_88] : memref<49x256xf32, #tpu.memory_space<vmem>>, vector<1x256xf32>
    %196 = vector.broadcast %195 : vector<1x256xf32> to vector<16x256xf32>
    %197 = arith.mulf %194, %196 : vector<16x256xf32>
    %c576 = arith.constant 576 : index
    %c0_89 = arith.constant 0 : index
    %198 = vector.load %arg14[%c576, %c0_89] : memref<784x256xf32, #tpu.memory_space<vmem>>, vector<16x256xf32>
    tpu.vector_store %arg14[%c576, %c0_89], %197 {strides = array<i32>} : memref<784x256xf32, #tpu.memory_space<vmem>>, vector<16x256xf32>,
    %c225_i32 = arith.constant 225 : i32
    %199 = tpu.dynamic_rotate %14 by %c225_i32 dim 1 : vector<16x256xf32>, i32 -> vector<16x256xf32>
    %c37 = arith.constant 37 : index
    %c0_90 = arith.constant 0 : index
    %200 = vector.load %arg12[%c37, %c0_90] : memref<49x256xf32, #tpu.memory_space<vmem>>, vector<1x256xf32>
    %201 = vector.broadcast %200 : vector<1x256xf32> to vector<16x256xf32>
    %202 = arith.mulf %199, %201 : vector<16x256xf32>
    %c592 = arith.constant 592 : index
    %c0_91 = arith.constant 0 : index
    %203 = vector.load %arg14[%c592, %c0_91] : memref<784x256xf32, #tpu.memory_space<vmem>>, vector<16x256xf32>
    tpu.vector_store %arg14[%c592, %c0_91], %202 {strides = array<i32>} : memref<784x256xf32, #tpu.memory_space<vmem>>, vector<16x256xf32>,
    %c224_i32 = arith.constant 224 : i32
    %204 = tpu.dynamic_rotate %14 by %c224_i32 dim 1 : vector<16x256xf32>, i32 -> vector<16x256xf32>
    %c38 = arith.constant 38 : index
    %c0_92 = arith.constant 0 : index
    %205 = vector.load %arg12[%c38, %c0_92] : memref<49x256xf32, #tpu.memory_space<vmem>>, vector<1x256xf32>
    %206 = vector.broadcast %205 : vector<1x256xf32> to vector<16x256xf32>
    %207 = arith.mulf %204, %206 : vector<16x256xf32>
    %c608 = arith.constant 608 : index
    %c0_93 = arith.constant 0 : index
    %208 = vector.load %arg14[%c608, %c0_93] : memref<784x256xf32, #tpu.memory_space<vmem>>, vector<16x256xf32>
    tpu.vector_store %arg14[%c608, %c0_93], %207 {strides = array<i32>} : memref<784x256xf32, #tpu.memory_space<vmem>>, vector<16x256xf32>,
    %c223_i32 = arith.constant 223 : i32
    %209 = tpu.dynamic_rotate %14 by %c223_i32 dim 1 : vector<16x256xf32>, i32 -> vector<16x256xf32>
    %c39 = arith.constant 39 : index
    %c0_94 = arith.constant 0 : index
    %210 = vector.load %arg12[%c39, %c0_94] : memref<49x256xf32, #tpu.memory_space<vmem>>, vector<1x256xf32>
    %211 = vector.broadcast %210 : vector<1x256xf32> to vector<16x256xf32>
    %212 = arith.mulf %209, %211 : vector<16x256xf32>
    %c624 = arith.constant 624 : index
    %c0_95 = arith.constant 0 : index
    %213 = vector.load %arg14[%c624, %c0_95] : memref<784x256xf32, #tpu.memory_space<vmem>>, vector<16x256xf32>
    tpu.vector_store %arg14[%c624, %c0_95], %212 {strides = array<i32>} : memref<784x256xf32, #tpu.memory_space<vmem>>, vector<16x256xf32>,
    %c222_i32 = arith.constant 222 : i32
    %214 = tpu.dynamic_rotate %14 by %c222_i32 dim 1 : vector<16x256xf32>, i32 -> vector<16x256xf32>
    %c40 = arith.constant 40 : index
    %c0_96 = arith.constant 0 : index
    %215 = vector.load %arg12[%c40, %c0_96] : memref<49x256xf32, #tpu.memory_space<vmem>>, vector<1x256xf32>
    %216 = vector.broadcast %215 : vector<1x256xf32> to vector<16x256xf32>
    %217 = arith.mulf %214, %216 : vector<16x256xf32>
    %c640 = arith.constant 640 : index
    %c0_97 = arith.constant 0 : index
    %218 = vector.load %arg14[%c640, %c0_97] : memref<784x256xf32, #tpu.memory_space<vmem>>, vector<16x256xf32>
    tpu.vector_store %arg14[%c640, %c0_97], %217 {strides = array<i32>} : memref<784x256xf32, #tpu.memory_space<vmem>>, vector<16x256xf32>,
    %c221_i32 = arith.constant 221 : i32
    %219 = tpu.dynamic_rotate %14 by %c221_i32 dim 1 : vector<16x256xf32>, i32 -> vector<16x256xf32>
    %c41 = arith.constant 41 : index
    %c0_98 = arith.constant 0 : index
    %220 = vector.load %arg12[%c41, %c0_98] : memref<49x256xf32, #tpu.memory_space<vmem>>, vector<1x256xf32>
    %221 = vector.broadcast %220 : vector<1x256xf32> to vector<16x256xf32>
    %222 = arith.mulf %219, %221 : vector<16x256xf32>
    %c656 = arith.constant 656 : index
    %c0_99 = arith.constant 0 : index
    %223 = vector.load %arg14[%c656, %c0_99] : memref<784x256xf32, #tpu.memory_space<vmem>>, vector<16x256xf32>
    tpu.vector_store %arg14[%c656, %c0_99], %222 {strides = array<i32>} : memref<784x256xf32, #tpu.memory_space<vmem>>, vector<16x256xf32>,
    %c211_i32 = arith.constant 211 : i32
    %224 = tpu.dynamic_rotate %14 by %c211_i32 dim 1 : vector<16x256xf32>, i32 -> vector<16x256xf32>
    %c42 = arith.constant 42 : index
    %c0_100 = arith.constant 0 : index
    %225 = vector.load %arg12[%c42, %c0_100] : memref<49x256xf32, #tpu.memory_space<vmem>>, vector<1x256xf32>
    %226 = vector.broadcast %225 : vector<1x256xf32> to vector<16x256xf32>
    %227 = arith.mulf %224, %226 : vector<16x256xf32>
    %c672 = arith.constant 672 : index
    %c0_101 = arith.constant 0 : index
    %228 = vector.load %arg14[%c672, %c0_101] : memref<784x256xf32, #tpu.memory_space<vmem>>, vector<16x256xf32>
    tpu.vector_store %arg14[%c672, %c0_101], %227 {strides = array<i32>} : memref<784x256xf32, #tpu.memory_space<vmem>>, vector<16x256xf32>,
    %c210_i32 = arith.constant 210 : i32
    %229 = tpu.dynamic_rotate %14 by %c210_i32 dim 1 : vector<16x256xf32>, i32 -> vector<16x256xf32>
    %c43 = arith.constant 43 : index
    %c0_102 = arith.constant 0 : index
    %230 = vector.load %arg12[%c43, %c0_102] : memref<49x256xf32, #tpu.memory_space<vmem>>, vector<1x256xf32>
    %231 = vector.broadcast %230 : vector<1x256xf32> to vector<16x256xf32>
    %232 = arith.mulf %229, %231 : vector<16x256xf32>
    %c688 = arith.constant 688 : index
    %c0_103 = arith.constant 0 : index
    %233 = vector.load %arg14[%c688, %c0_103] : memref<784x256xf32, #tpu.memory_space<vmem>>, vector<16x256xf32>
    tpu.vector_store %arg14[%c688, %c0_103], %232 {strides = array<i32>} : memref<784x256xf32, #tpu.memory_space<vmem>>, vector<16x256xf32>,
    %c209_i32 = arith.constant 209 : i32
    %234 = tpu.dynamic_rotate %14 by %c209_i32 dim 1 : vector<16x256xf32>, i32 -> vector<16x256xf32>
    %c44 = arith.constant 44 : index
    %c0_104 = arith.constant 0 : index
    %235 = vector.load %arg12[%c44, %c0_104] : memref<49x256xf32, #tpu.memory_space<vmem>>, vector<1x256xf32>
    %236 = vector.broadcast %235 : vector<1x256xf32> to vector<16x256xf32>
    %237 = arith.mulf %234, %236 : vector<16x256xf32>
    %c704 = arith.constant 704 : index
    %c0_105 = arith.constant 0 : index
    %238 = vector.load %arg14[%c704, %c0_105] : memref<784x256xf32, #tpu.memory_space<vmem>>, vector<16x256xf32>
    tpu.vector_store %arg14[%c704, %c0_105], %237 {strides = array<i32>} : memref<784x256xf32, #tpu.memory_space<vmem>>, vector<16x256xf32>,
    %c208_i32 = arith.constant 208 : i32
    %239 = tpu.dynamic_rotate %14 by %c208_i32 dim 1 : vector<16x256xf32>, i32 -> vector<16x256xf32>
    %c45 = arith.constant 45 : index
    %c0_106 = arith.constant 0 : index
    %240 = vector.load %arg12[%c45, %c0_106] : memref<49x256xf32, #tpu.memory_space<vmem>>, vector<1x256xf32>
    %241 = vector.broadcast %240 : vector<1x256xf32> to vector<16x256xf32>
    %242 = arith.mulf %239, %241 : vector<16x256xf32>
    %c720 = arith.constant 720 : index
    %c0_107 = arith.constant 0 : index
    %243 = vector.load %arg14[%c720, %c0_107] : memref<784x256xf32, #tpu.memory_space<vmem>>, vector<16x256xf32>
    tpu.vector_store %arg14[%c720, %c0_107], %242 {strides = array<i32>} : memref<784x256xf32, #tpu.memory_space<vmem>>, vector<16x256xf32>,
    %c207_i32 = arith.constant 207 : i32
    %244 = tpu.dynamic_rotate %14 by %c207_i32 dim 1 : vector<16x256xf32>, i32 -> vector<16x256xf32>
    %c46 = arith.constant 46 : index
    %c0_108 = arith.constant 0 : index
    %245 = vector.load %arg12[%c46, %c0_108] : memref<49x256xf32, #tpu.memory_space<vmem>>, vector<1x256xf32>
    %246 = vector.broadcast %245 : vector<1x256xf32> to vector<16x256xf32>
    %247 = arith.mulf %244, %246 : vector<16x256xf32>
    %c736 = arith.constant 736 : index
    %c0_109 = arith.constant 0 : index
    %248 = vector.load %arg14[%c736, %c0_109] : memref<784x256xf32, #tpu.memory_space<vmem>>, vector<16x256xf32>
    tpu.vector_store %arg14[%c736, %c0_109], %247 {strides = array<i32>} : memref<784x256xf32, #tpu.memory_space<vmem>>, vector<16x256xf32>,
    %c206_i32 = arith.constant 206 : i32
    %249 = tpu.dynamic_rotate %14 by %c206_i32 dim 1 : vector<16x256xf32>, i32 -> vector<16x256xf32>
    %c47 = arith.constant 47 : index
    %c0_110 = arith.constant 0 : index
    %250 = vector.load %arg12[%c47, %c0_110] : memref<49x256xf32, #tpu.memory_space<vmem>>, vector<1x256xf32>
    %251 = vector.broadcast %250 : vector<1x256xf32> to vector<16x256xf32>
    %252 = arith.mulf %249, %251 : vector<16x256xf32>
    %c752 = arith.constant 752 : index
    %c0_111 = arith.constant 0 : index
    %253 = vector.load %arg14[%c752, %c0_111] : memref<784x256xf32, #tpu.memory_space<vmem>>, vector<16x256xf32>
    tpu.vector_store %arg14[%c752, %c0_111], %252 {strides = array<i32>} : memref<784x256xf32, #tpu.memory_space<vmem>>, vector<16x256xf32>,
    %c205_i32 = arith.constant 205 : i32
    %254 = tpu.dynamic_rotate %14 by %c205_i32 dim 1 : vector<16x256xf32>, i32 -> vector<16x256xf32>
    %c48_112 = arith.constant 48 : index
    %c0_113 = arith.constant 0 : index
    %255 = vector.load %arg12[%c48_112, %c0_113] : memref<49x256xf32, #tpu.memory_space<vmem>>, vector<1x256xf32>
    %256 = vector.broadcast %255 : vector<1x256xf32> to vector<16x256xf32>
    %257 = arith.mulf %254, %256 : vector<16x256xf32>
    %c768 = arith.constant 768 : index
    %c0_114 = arith.constant 0 : index
    %258 = vector.load %arg14[%c768, %c0_114] : memref<784x256xf32, #tpu.memory_space<vmem>>, vector<16x256xf32>
    tpu.vector_store %arg14[%c768, %c0_114], %257 {strides = array<i32>} : memref<784x256xf32, #tpu.memory_space<vmem>>, vector<16x256xf32>,
    %c0_115 = arith.constant 0 : index
    %c0_116 = arith.constant 0 : index
    %259 = vector.load %arg6[%c0_115, %c0_116] : memref<4x784xf32, #tpu.memory_space<vmem>>, vector<4x784xf32>
    %c0_117 = arith.constant 0 : index
    %c0_118 = arith.constant 0 : index
    %260 = vector.load %arg14[%c0_117, %c0_118] : memref<784x256xf32, #tpu.memory_space<vmem>>, vector<784x256xf32>
    %cst_119 = arith.constant dense<0.000000e+00> : vector<4x256xf32>
    %261 = tpu.matmul %259, %260, %cst_119 {dimension_numbers = #tpu.dot_dimension_numbers<[1], [0], [0], [1], [0, 0, 1, 1], [], []>} : vector<4x784xf32>, vector<784x256xf32>, vector<4x256xf32> -> vector<4x256xf32>
    %c0_120 = arith.constant 0 : index
    %c0_121 = arith.constant 0 : index
    %262 = vector.load %arg7[%c0_120, %c0_121] : memref<4x1xf32, #tpu.memory_space<vmem>>, vector<4x1xf32>
    %263 = vector.broadcast %262 : vector<4x1xf32> to vector<4x256xf32>
    %264 = arith.mulf %261, %263 : vector<4x256xf32>
    %c0_122 = arith.constant 0 : index
    %c0_123 = arith.constant 0 : index
    %265 = vector.load %arg8[%c0_122, %c0_123] : memref<4x1xf32, #tpu.memory_space<vmem>>, vector<4x1xf32>
    %266 = vector.broadcast %265 : vector<4x1xf32> to vector<4x256xf32>
    %267 = arith.addf %264, %266 : vector<4x256xf32>
    %cst_124 = arith.constant 0.000000e+00 : f32
    %268 = vector.broadcast %cst_124 : f32 to vector<4x256xf32>
    %269 = arith.maximumf %267, %268 : vector<4x256xf32>
    %c51_i32_125 = arith.constant 51 : i32
    %270 = tpu.dynamic_rotate %269 by %c51_i32_125 dim 1 : vector<4x256xf32>, i32 -> vector<4x256xf32>
    %c0_126 = arith.constant 0 : index
    %c0_127 = arith.constant 0 : index
    %271 = vector.load %arg12[%c0_126, %c0_127] : memref<49x256xf32, #tpu.memory_space<vmem>>, vector<1x256xf32>
    %272 = vector.broadcast %271 : vector<1x256xf32> to vector<4x256xf32>
    %273 = arith.mulf %270, %272 : vector<4x256xf32>
    %c0_128 = arith.constant 0 : index
    %c0_129 = arith.constant 0 : index
    %274 = vector.load %arg15[%c0_128, %c0_129] : memref<196x256xf32, #tpu.memory_space<vmem>>, vector<4x256xf32>
    tpu.vector_store %arg15[%c0_128, %c0_129], %273 {strides = array<i32>} : memref<196x256xf32, #tpu.memory_space<vmem>>, vector<4x256xf32>,
    %c50_i32_130 = arith.constant 50 : i32
    %275 = tpu.dynamic_rotate %269 by %c50_i32_130 dim 1 : vector<4x256xf32>, i32 -> vector<4x256xf32>
    %c1_131 = arith.constant 1 : index
    %c0_132 = arith.constant 0 : index
    %276 = vector.load %arg12[%c1_131, %c0_132] : memref<49x256xf32, #tpu.memory_space<vmem>>, vector<1x256xf32>
    %277 = vector.broadcast %276 : vector<1x256xf32> to vector<4x256xf32>
    %278 = arith.mulf %275, %277 : vector<4x256xf32>
    %c4_133 = arith.constant 4 : index
    %c0_134 = arith.constant 0 : index
    %279 = vector.load %arg15[%c4_133, %c0_134] : memref<196x256xf32, #tpu.memory_space<vmem>>, vector<4x256xf32>
    tpu.vector_store %arg15[%c4_133, %c0_134], %278 {strides = array<i32>} : memref<196x256xf32, #tpu.memory_space<vmem>>, vector<4x256xf32>,
    %c49_i32_135 = arith.constant 49 : i32
    %280 = tpu.dynamic_rotate %269 by %c49_i32_135 dim 1 : vector<4x256xf32>, i32 -> vector<4x256xf32>
    %c2_136 = arith.constant 2 : index
    %c0_137 = arith.constant 0 : index
    %281 = vector.load %arg12[%c2_136, %c0_137] : memref<49x256xf32, #tpu.memory_space<vmem>>, vector<1x256xf32>
    %282 = vector.broadcast %281 : vector<1x256xf32> to vector<4x256xf32>
    %283 = arith.mulf %280, %282 : vector<4x256xf32>
    %c8_138 = arith.constant 8 : index
    %c0_139 = arith.constant 0 : index
    %284 = vector.load %arg15[%c8_138, %c0_139] : memref<196x256xf32, #tpu.memory_space<vmem>>, vector<4x256xf32>
    tpu.vector_store %arg15[%c8_138, %c0_139], %283 {strides = array<i32>} : memref<196x256xf32, #tpu.memory_space<vmem>>, vector<4x256xf32>,
    %c48_i32_140 = arith.constant 48 : i32
    %285 = tpu.dynamic_rotate %269 by %c48_i32_140 dim 1 : vector<4x256xf32>, i32 -> vector<4x256xf32>
    %c3_141 = arith.constant 3 : index
    %c0_142 = arith.constant 0 : index
    %286 = vector.load %arg12[%c3_141, %c0_142] : memref<49x256xf32, #tpu.memory_space<vmem>>, vector<1x256xf32>
    %287 = vector.broadcast %286 : vector<1x256xf32> to vector<4x256xf32>
    %288 = arith.mulf %285, %287 : vector<4x256xf32>
    %c12_143 = arith.constant 12 : index
    %c0_144 = arith.constant 0 : index
    %289 = vector.load %arg15[%c12_143, %c0_144] : memref<196x256xf32, #tpu.memory_space<vmem>>, vector<4x256xf32>
    tpu.vector_store %arg15[%c12_143, %c0_144], %288 {strides = array<i32>} : memref<196x256xf32, #tpu.memory_space<vmem>>, vector<4x256xf32>,
    %c47_i32_145 = arith.constant 47 : i32
    %290 = tpu.dynamic_rotate %269 by %c47_i32_145 dim 1 : vector<4x256xf32>, i32 -> vector<4x256xf32>
    %c4_146 = arith.constant 4 : index
    %c0_147 = arith.constant 0 : index
    %291 = vector.load %arg12[%c4_146, %c0_147] : memref<49x256xf32, #tpu.memory_space<vmem>>, vector<1x256xf32>
    %292 = vector.broadcast %291 : vector<1x256xf32> to vector<4x256xf32>
    %293 = arith.mulf %290, %292 : vector<4x256xf32>
    %c16_148 = arith.constant 16 : index
    %c0_149 = arith.constant 0 : index
    %294 = vector.load %arg15[%c16_148, %c0_149] : memref<196x256xf32, #tpu.memory_space<vmem>>, vector<4x256xf32>
    tpu.vector_store %arg15[%c16_148, %c0_149], %293 {strides = array<i32>} : memref<196x256xf32, #tpu.memory_space<vmem>>, vector<4x256xf32>,
    %c46_i32_150 = arith.constant 46 : i32
    %295 = tpu.dynamic_rotate %269 by %c46_i32_150 dim 1 : vector<4x256xf32>, i32 -> vector<4x256xf32>
    %c5_151 = arith.constant 5 : index
    %c0_152 = arith.constant 0 : index
    %296 = vector.load %arg12[%c5_151, %c0_152] : memref<49x256xf32, #tpu.memory_space<vmem>>, vector<1x256xf32>
    %297 = vector.broadcast %296 : vector<1x256xf32> to vector<4x256xf32>
    %298 = arith.mulf %295, %297 : vector<4x256xf32>
    %c20_153 = arith.constant 20 : index
    %c0_154 = arith.constant 0 : index
    %299 = vector.load %arg15[%c20_153, %c0_154] : memref<196x256xf32, #tpu.memory_space<vmem>>, vector<4x256xf32>
    tpu.vector_store %arg15[%c20_153, %c0_154], %298 {strides = array<i32>} : memref<196x256xf32, #tpu.memory_space<vmem>>, vector<4x256xf32>,
    %c45_i32_155 = arith.constant 45 : i32
    %300 = tpu.dynamic_rotate %269 by %c45_i32_155 dim 1 : vector<4x256xf32>, i32 -> vector<4x256xf32>
    %c6_156 = arith.constant 6 : index
    %c0_157 = arith.constant 0 : index
    %301 = vector.load %arg12[%c6_156, %c0_157] : memref<49x256xf32, #tpu.memory_space<vmem>>, vector<1x256xf32>
    %302 = vector.broadcast %301 : vector<1x256xf32> to vector<4x256xf32>
    %303 = arith.mulf %300, %302 : vector<4x256xf32>
    %c24_158 = arith.constant 24 : index
    %c0_159 = arith.constant 0 : index
    %304 = vector.load %arg15[%c24_158, %c0_159] : memref<196x256xf32, #tpu.memory_space<vmem>>, vector<4x256xf32>
    tpu.vector_store %arg15[%c24_158, %c0_159], %303 {strides = array<i32>} : memref<196x256xf32, #tpu.memory_space<vmem>>, vector<4x256xf32>,
    %c35_i32_160 = arith.constant 35 : i32
    %305 = tpu.dynamic_rotate %269 by %c35_i32_160 dim 1 : vector<4x256xf32>, i32 -> vector<4x256xf32>
    %c7_161 = arith.constant 7 : index
    %c0_162 = arith.constant 0 : index
    %306 = vector.load %arg12[%c7_161, %c0_162] : memref<49x256xf32, #tpu.memory_space<vmem>>, vector<1x256xf32>
    %307 = vector.broadcast %306 : vector<1x256xf32> to vector<4x256xf32>
    %308 = arith.mulf %305, %307 : vector<4x256xf32>
    %c28_163 = arith.constant 28 : index
    %c0_164 = arith.constant 0 : index
    %309 = vector.load %arg15[%c28_163, %c0_164] : memref<196x256xf32, #tpu.memory_space<vmem>>, vector<4x256xf32>
    tpu.vector_store %arg15[%c28_163, %c0_164], %308 {strides = array<i32>} : memref<196x256xf32, #tpu.memory_space<vmem>>, vector<4x256xf32>,
    %c34_i32_165 = arith.constant 34 : i32
    %310 = tpu.dynamic_rotate %269 by %c34_i32_165 dim 1 : vector<4x256xf32>, i32 -> vector<4x256xf32>
    %c8_166 = arith.constant 8 : index
    %c0_167 = arith.constant 0 : index
    %311 = vector.load %arg12[%c8_166, %c0_167] : memref<49x256xf32, #tpu.memory_space<vmem>>, vector<1x256xf32>
    %312 = vector.broadcast %311 : vector<1x256xf32> to vector<4x256xf32>
    %313 = arith.mulf %310, %312 : vector<4x256xf32>
    %c32_168 = arith.constant 32 : index
    %c0_169 = arith.constant 0 : index
    %314 = vector.load %arg15[%c32_168, %c0_169] : memref<196x256xf32, #tpu.memory_space<vmem>>, vector<4x256xf32>
    tpu.vector_store %arg15[%c32_168, %c0_169], %313 {strides = array<i32>} : memref<196x256xf32, #tpu.memory_space<vmem>>, vector<4x256xf32>,
    %c33_i32_170 = arith.constant 33 : i32
    %315 = tpu.dynamic_rotate %269 by %c33_i32_170 dim 1 : vector<4x256xf32>, i32 -> vector<4x256xf32>
    %c9_171 = arith.constant 9 : index
    %c0_172 = arith.constant 0 : index
    %316 = vector.load %arg12[%c9_171, %c0_172] : memref<49x256xf32, #tpu.memory_space<vmem>>, vector<1x256xf32>
    %317 = vector.broadcast %316 : vector<1x256xf32> to vector<4x256xf32>
    %318 = arith.mulf %315, %317 : vector<4x256xf32>
    %c36_173 = arith.constant 36 : index
    %c0_174 = arith.constant 0 : index
    %319 = vector.load %arg15[%c36_173, %c0_174] : memref<196x256xf32, #tpu.memory_space<vmem>>, vector<4x256xf32>
    tpu.vector_store %arg15[%c36_173, %c0_174], %318 {strides = array<i32>} : memref<196x256xf32, #tpu.memory_space<vmem>>, vector<4x256xf32>,
    %c32_i32_175 = arith.constant 32 : i32
    %320 = tpu.dynamic_rotate %269 by %c32_i32_175 dim 1 : vector<4x256xf32>, i32 -> vector<4x256xf32>
    %c10_176 = arith.constant 10 : index
    %c0_177 = arith.constant 0 : index
    %321 = vector.load %arg12[%c10_176, %c0_177] : memref<49x256xf32, #tpu.memory_space<vmem>>, vector<1x256xf32>
    %322 = vector.broadcast %321 : vector<1x256xf32> to vector<4x256xf32>
    %323 = arith.mulf %320, %322 : vector<4x256xf32>
    %c40_178 = arith.constant 40 : index
    %c0_179 = arith.constant 0 : index
    %324 = vector.load %arg15[%c40_178, %c0_179] : memref<196x256xf32, #tpu.memory_space<vmem>>, vector<4x256xf32>
    tpu.vector_store %arg15[%c40_178, %c0_179], %323 {strides = array<i32>} : memref<196x256xf32, #tpu.memory_space<vmem>>, vector<4x256xf32>,
    %c31_i32_180 = arith.constant 31 : i32
    %325 = tpu.dynamic_rotate %269 by %c31_i32_180 dim 1 : vector<4x256xf32>, i32 -> vector<4x256xf32>
    %c11_181 = arith.constant 11 : index
    %c0_182 = arith.constant 0 : index
    %326 = vector.load %arg12[%c11_181, %c0_182] : memref<49x256xf32, #tpu.memory_space<vmem>>, vector<1x256xf32>
    %327 = vector.broadcast %326 : vector<1x256xf32> to vector<4x256xf32>
    %328 = arith.mulf %325, %327 : vector<4x256xf32>
    %c44_183 = arith.constant 44 : index
    %c0_184 = arith.constant 0 : index
    %329 = vector.load %arg15[%c44_183, %c0_184] : memref<196x256xf32, #tpu.memory_space<vmem>>, vector<4x256xf32>
    tpu.vector_store %arg15[%c44_183, %c0_184], %328 {strides = array<i32>} : memref<196x256xf32, #tpu.memory_space<vmem>>, vector<4x256xf32>,
    %c30_i32_185 = arith.constant 30 : i32
    %330 = tpu.dynamic_rotate %269 by %c30_i32_185 dim 1 : vector<4x256xf32>, i32 -> vector<4x256xf32>
    %c12_186 = arith.constant 12 : index
    %c0_187 = arith.constant 0 : index
    %331 = vector.load %arg12[%c12_186, %c0_187] : memref<49x256xf32, #tpu.memory_space<vmem>>, vector<1x256xf32>
    %332 = vector.broadcast %331 : vector<1x256xf32> to vector<4x256xf32>
    %333 = arith.mulf %330, %332 : vector<4x256xf32>
    %c48_188 = arith.constant 48 : index
    %c0_189 = arith.constant 0 : index
    %334 = vector.load %arg15[%c48_188, %c0_189] : memref<196x256xf32, #tpu.memory_space<vmem>>, vector<4x256xf32>
    tpu.vector_store %arg15[%c48_188, %c0_189], %333 {strides = array<i32>} : memref<196x256xf32, #tpu.memory_space<vmem>>, vector<4x256xf32>,
    %c29_i32_190 = arith.constant 29 : i32
    %335 = tpu.dynamic_rotate %269 by %c29_i32_190 dim 1 : vector<4x256xf32>, i32 -> vector<4x256xf32>
    %c13_191 = arith.constant 13 : index
    %c0_192 = arith.constant 0 : index
    %336 = vector.load %arg12[%c13_191, %c0_192] : memref<49x256xf32, #tpu.memory_space<vmem>>, vector<1x256xf32>
    %337 = vector.broadcast %336 : vector<1x256xf32> to vector<4x256xf32>
    %338 = arith.mulf %335, %337 : vector<4x256xf32>
    %c52 = arith.constant 52 : index
    %c0_193 = arith.constant 0 : index
    %339 = vector.load %arg15[%c52, %c0_193] : memref<196x256xf32, #tpu.memory_space<vmem>>, vector<4x256xf32>
    tpu.vector_store %arg15[%c52, %c0_193], %338 {strides = array<i32>} : memref<196x256xf32, #tpu.memory_space<vmem>>, vector<4x256xf32>,
    %c19_i32_194 = arith.constant 19 : i32
    %340 = tpu.dynamic_rotate %269 by %c19_i32_194 dim 1 : vector<4x256xf32>, i32 -> vector<4x256xf32>
    %c14_195 = arith.constant 14 : index
    %c0_196 = arith.constant 0 : index
    %341 = vector.load %arg12[%c14_195, %c0_196] : memref<49x256xf32, #tpu.memory_space<vmem>>, vector<1x256xf32>
    %342 = vector.broadcast %341 : vector<1x256xf32> to vector<4x256xf32>
    %343 = arith.mulf %340, %342 : vector<4x256xf32>
    %c56 = arith.constant 56 : index
    %c0_197 = arith.constant 0 : index
    %344 = vector.load %arg15[%c56, %c0_197] : memref<196x256xf32, #tpu.memory_space<vmem>>, vector<4x256xf32>
    tpu.vector_store %arg15[%c56, %c0_197], %343 {strides = array<i32>} : memref<196x256xf32, #tpu.memory_space<vmem>>, vector<4x256xf32>,
    %c18_i32_198 = arith.constant 18 : i32
    %345 = tpu.dynamic_rotate %269 by %c18_i32_198 dim 1 : vector<4x256xf32>, i32 -> vector<4x256xf32>
    %c15_199 = arith.constant 15 : index
    %c0_200 = arith.constant 0 : index
    %346 = vector.load %arg12[%c15_199, %c0_200] : memref<49x256xf32, #tpu.memory_space<vmem>>, vector<1x256xf32>
    %347 = vector.broadcast %346 : vector<1x256xf32> to vector<4x256xf32>
    %348 = arith.mulf %345, %347 : vector<4x256xf32>
    %c60 = arith.constant 60 : index
    %c0_201 = arith.constant 0 : index
    %349 = vector.load %arg15[%c60, %c0_201] : memref<196x256xf32, #tpu.memory_space<vmem>>, vector<4x256xf32>
    tpu.vector_store %arg15[%c60, %c0_201], %348 {strides = array<i32>} : memref<196x256xf32, #tpu.memory_space<vmem>>, vector<4x256xf32>,
    %c17_i32_202 = arith.constant 17 : i32
    %350 = tpu.dynamic_rotate %269 by %c17_i32_202 dim 1 : vector<4x256xf32>, i32 -> vector<4x256xf32>
    %c16_203 = arith.constant 16 : index
    %c0_204 = arith.constant 0 : index
    %351 = vector.load %arg12[%c16_203, %c0_204] : memref<49x256xf32, #tpu.memory_space<vmem>>, vector<1x256xf32>
    %352 = vector.broadcast %351 : vector<1x256xf32> to vector<4x256xf32>
    %353 = arith.mulf %350, %352 : vector<4x256xf32>
    %c64_205 = arith.constant 64 : index
    %c0_206 = arith.constant 0 : index
    %354 = vector.load %arg15[%c64_205, %c0_206] : memref<196x256xf32, #tpu.memory_space<vmem>>, vector<4x256xf32>
    tpu.vector_store %arg15[%c64_205, %c0_206], %353 {strides = array<i32>} : memref<196x256xf32, #tpu.memory_space<vmem>>, vector<4x256xf32>,
    %c16_i32_207 = arith.constant 16 : i32
    %355 = tpu.dynamic_rotate %269 by %c16_i32_207 dim 1 : vector<4x256xf32>, i32 -> vector<4x256xf32>
    %c17_208 = arith.constant 17 : index
    %c0_209 = arith.constant 0 : index
    %356 = vector.load %arg12[%c17_208, %c0_209] : memref<49x256xf32, #tpu.memory_space<vmem>>, vector<1x256xf32>
    %357 = vector.broadcast %356 : vector<1x256xf32> to vector<4x256xf32>
    %358 = arith.mulf %355, %357 : vector<4x256xf32>
    %c68 = arith.constant 68 : index
    %c0_210 = arith.constant 0 : index
    %359 = vector.load %arg15[%c68, %c0_210] : memref<196x256xf32, #tpu.memory_space<vmem>>, vector<4x256xf32>
    tpu.vector_store %arg15[%c68, %c0_210], %358 {strides = array<i32>} : memref<196x256xf32, #tpu.memory_space<vmem>>, vector<4x256xf32>,
    %c15_i32_211 = arith.constant 15 : i32
    %360 = tpu.dynamic_rotate %269 by %c15_i32_211 dim 1 : vector<4x256xf32>, i32 -> vector<4x256xf32>
    %c18_212 = arith.constant 18 : index
    %c0_213 = arith.constant 0 : index
    %361 = vector.load %arg12[%c18_212, %c0_213] : memref<49x256xf32, #tpu.memory_space<vmem>>, vector<1x256xf32>
    %362 = vector.broadcast %361 : vector<1x256xf32> to vector<4x256xf32>
    %363 = arith.mulf %360, %362 : vector<4x256xf32>
    %c72 = arith.constant 72 : index
    %c0_214 = arith.constant 0 : index
    %364 = vector.load %arg15[%c72, %c0_214] : memref<196x256xf32, #tpu.memory_space<vmem>>, vector<4x256xf32>
    tpu.vector_store %arg15[%c72, %c0_214], %363 {strides = array<i32>} : memref<196x256xf32, #tpu.memory_space<vmem>>, vector<4x256xf32>,
    %c14_i32_215 = arith.constant 14 : i32
    %365 = tpu.dynamic_rotate %269 by %c14_i32_215 dim 1 : vector<4x256xf32>, i32 -> vector<4x256xf32>
    %c19_216 = arith.constant 19 : index
    %c0_217 = arith.constant 0 : index
    %366 = vector.load %arg12[%c19_216, %c0_217] : memref<49x256xf32, #tpu.memory_space<vmem>>, vector<1x256xf32>
    %367 = vector.broadcast %366 : vector<1x256xf32> to vector<4x256xf32>
    %368 = arith.mulf %365, %367 : vector<4x256xf32>
    %c76 = arith.constant 76 : index
    %c0_218 = arith.constant 0 : index
    %369 = vector.load %arg15[%c76, %c0_218] : memref<196x256xf32, #tpu.memory_space<vmem>>, vector<4x256xf32>
    tpu.vector_store %arg15[%c76, %c0_218], %368 {strides = array<i32>} : memref<196x256xf32, #tpu.memory_space<vmem>>, vector<4x256xf32>,
    %c13_i32_219 = arith.constant 13 : i32
    %370 = tpu.dynamic_rotate %269 by %c13_i32_219 dim 1 : vector<4x256xf32>, i32 -> vector<4x256xf32>
    %c20_220 = arith.constant 20 : index
    %c0_221 = arith.constant 0 : index
    %371 = vector.load %arg12[%c20_220, %c0_221] : memref<49x256xf32, #tpu.memory_space<vmem>>, vector<1x256xf32>
    %372 = vector.broadcast %371 : vector<1x256xf32> to vector<4x256xf32>
    %373 = arith.mulf %370, %372 : vector<4x256xf32>
    %c80_222 = arith.constant 80 : index
    %c0_223 = arith.constant 0 : index
    %374 = vector.load %arg15[%c80_222, %c0_223] : memref<196x256xf32, #tpu.memory_space<vmem>>, vector<4x256xf32>
    tpu.vector_store %arg15[%c80_222, %c0_223], %373 {strides = array<i32>} : memref<196x256xf32, #tpu.memory_space<vmem>>, vector<4x256xf32>,
    %c3_i32_224 = arith.constant 3 : i32
    %375 = tpu.dynamic_rotate %269 by %c3_i32_224 dim 1 : vector<4x256xf32>, i32 -> vector<4x256xf32>
    %c21_225 = arith.constant 21 : index
    %c0_226 = arith.constant 0 : index
    %376 = vector.load %arg12[%c21_225, %c0_226] : memref<49x256xf32, #tpu.memory_space<vmem>>, vector<1x256xf32>
    %377 = vector.broadcast %376 : vector<1x256xf32> to vector<4x256xf32>
    %378 = arith.mulf %375, %377 : vector<4x256xf32>
    %c84 = arith.constant 84 : index
    %c0_227 = arith.constant 0 : index
    %379 = vector.load %arg15[%c84, %c0_227] : memref<196x256xf32, #tpu.memory_space<vmem>>, vector<4x256xf32>
    tpu.vector_store %arg15[%c84, %c0_227], %378 {strides = array<i32>} : memref<196x256xf32, #tpu.memory_space<vmem>>, vector<4x256xf32>,
    %c2_i32_228 = arith.constant 2 : i32
    %380 = tpu.dynamic_rotate %269 by %c2_i32_228 dim 1 : vector<4x256xf32>, i32 -> vector<4x256xf32>
    %c22_229 = arith.constant 22 : index
    %c0_230 = arith.constant 0 : index
    %381 = vector.load %arg12[%c22_229, %c0_230] : memref<49x256xf32, #tpu.memory_space<vmem>>, vector<1x256xf32>
    %382 = vector.broadcast %381 : vector<1x256xf32> to vector<4x256xf32>
    %383 = arith.mulf %380, %382 : vector<4x256xf32>
    %c88 = arith.constant 88 : index
    %c0_231 = arith.constant 0 : index
    %384 = vector.load %arg15[%c88, %c0_231] : memref<196x256xf32, #tpu.memory_space<vmem>>, vector<4x256xf32>
    tpu.vector_store %arg15[%c88, %c0_231], %383 {strides = array<i32>} : memref<196x256xf32, #tpu.memory_space<vmem>>, vector<4x256xf32>,
    %c1_i32_232 = arith.constant 1 : i32
    %385 = tpu.dynamic_rotate %269 by %c1_i32_232 dim 1 : vector<4x256xf32>, i32 -> vector<4x256xf32>
    %c23_233 = arith.constant 23 : index
    %c0_234 = arith.constant 0 : index
    %386 = vector.load %arg12[%c23_233, %c0_234] : memref<49x256xf32, #tpu.memory_space<vmem>>, vector<1x256xf32>
    %387 = vector.broadcast %386 : vector<1x256xf32> to vector<4x256xf32>
    %388 = arith.mulf %385, %387 : vector<4x256xf32>
    %c92 = arith.constant 92 : index
    %c0_235 = arith.constant 0 : index
    %389 = vector.load %arg15[%c92, %c0_235] : memref<196x256xf32, #tpu.memory_space<vmem>>, vector<4x256xf32>
    tpu.vector_store %arg15[%c92, %c0_235], %388 {strides = array<i32>} : memref<196x256xf32, #tpu.memory_space<vmem>>, vector<4x256xf32>,
    %c24_236 = arith.constant 24 : index
    %c0_237 = arith.constant 0 : index
    %390 = vector.load %arg12[%c24_236, %c0_237] : memref<49x256xf32, #tpu.memory_space<vmem>>, vector<1x256xf32>
    %391 = vector.broadcast %390 : vector<1x256xf32> to vector<4x256xf32>
    %392 = arith.mulf %269, %391 : vector<4x256xf32>
    %c96_238 = arith.constant 96 : index
    %c0_239 = arith.constant 0 : index
    %393 = vector.load %arg15[%c96_238, %c0_239] : memref<196x256xf32, #tpu.memory_space<vmem>>, vector<4x256xf32>
    tpu.vector_store %arg15[%c96_238, %c0_239], %392 {strides = array<i32>} : memref<196x256xf32, #tpu.memory_space<vmem>>, vector<4x256xf32>,
    %c255_i32_240 = arith.constant 255 : i32
    %394 = tpu.dynamic_rotate %269 by %c255_i32_240 dim 1 : vector<4x256xf32>, i32 -> vector<4x256xf32>
    %c25_241 = arith.constant 25 : index
    %c0_242 = arith.constant 0 : index
    %395 = vector.load %arg12[%c25_241, %c0_242] : memref<49x256xf32, #tpu.memory_space<vmem>>, vector<1x256xf32>
    %396 = vector.broadcast %395 : vector<1x256xf32> to vector<4x256xf32>
    %397 = arith.mulf %394, %396 : vector<4x256xf32>
    %c100 = arith.constant 100 : index
    %c0_243 = arith.constant 0 : index
    %398 = vector.load %arg15[%c100, %c0_243] : memref<196x256xf32, #tpu.memory_space<vmem>>, vector<4x256xf32>
    tpu.vector_store %arg15[%c100, %c0_243], %397 {strides = array<i32>} : memref<196x256xf32, #tpu.memory_space<vmem>>, vector<4x256xf32>,
    %c254_i32_244 = arith.constant 254 : i32
    %399 = tpu.dynamic_rotate %269 by %c254_i32_244 dim 1 : vector<4x256xf32>, i32 -> vector<4x256xf32>
    %c26_245 = arith.constant 26 : index
    %c0_246 = arith.constant 0 : index
    %400 = vector.load %arg12[%c26_245, %c0_246] : memref<49x256xf32, #tpu.memory_space<vmem>>, vector<1x256xf32>
    %401 = vector.broadcast %400 : vector<1x256xf32> to vector<4x256xf32>
    %402 = arith.mulf %399, %401 : vector<4x256xf32>
    %c104 = arith.constant 104 : index
    %c0_247 = arith.constant 0 : index
    %403 = vector.load %arg15[%c104, %c0_247] : memref<196x256xf32, #tpu.memory_space<vmem>>, vector<4x256xf32>
    tpu.vector_store %arg15[%c104, %c0_247], %402 {strides = array<i32>} : memref<196x256xf32, #tpu.memory_space<vmem>>, vector<4x256xf32>,
    %c253_i32_248 = arith.constant 253 : i32
    %404 = tpu.dynamic_rotate %269 by %c253_i32_248 dim 1 : vector<4x256xf32>, i32 -> vector<4x256xf32>
    %c27_249 = arith.constant 27 : index
    %c0_250 = arith.constant 0 : index
    %405 = vector.load %arg12[%c27_249, %c0_250] : memref<49x256xf32, #tpu.memory_space<vmem>>, vector<1x256xf32>
    %406 = vector.broadcast %405 : vector<1x256xf32> to vector<4x256xf32>
    %407 = arith.mulf %404, %406 : vector<4x256xf32>
    %c108 = arith.constant 108 : index
    %c0_251 = arith.constant 0 : index
    %408 = vector.load %arg15[%c108, %c0_251] : memref<196x256xf32, #tpu.memory_space<vmem>>, vector<4x256xf32>
    tpu.vector_store %arg15[%c108, %c0_251], %407 {strides = array<i32>} : memref<196x256xf32, #tpu.memory_space<vmem>>, vector<4x256xf32>,
    %c243_i32_252 = arith.constant 243 : i32
    %409 = tpu.dynamic_rotate %269 by %c243_i32_252 dim 1 : vector<4x256xf32>, i32 -> vector<4x256xf32>
    %c28_253 = arith.constant 28 : index
    %c0_254 = arith.constant 0 : index
    %410 = vector.load %arg12[%c28_253, %c0_254] : memref<49x256xf32, #tpu.memory_space<vmem>>, vector<1x256xf32>
    %411 = vector.broadcast %410 : vector<1x256xf32> to vector<4x256xf32>
    %412 = arith.mulf %409, %411 : vector<4x256xf32>
    %c112_255 = arith.constant 112 : index
    %c0_256 = arith.constant 0 : index
    %413 = vector.load %arg15[%c112_255, %c0_256] : memref<196x256xf32, #tpu.memory_space<vmem>>, vector<4x256xf32>
    tpu.vector_store %arg15[%c112_255, %c0_256], %412 {strides = array<i32>} : memref<196x256xf32, #tpu.memory_space<vmem>>, vector<4x256xf32>,
    %c242_i32_257 = arith.constant 242 : i32
    %414 = tpu.dynamic_rotate %269 by %c242_i32_257 dim 1 : vector<4x256xf32>, i32 -> vector<4x256xf32>
    %c29_258 = arith.constant 29 : index
    %c0_259 = arith.constant 0 : index
    %415 = vector.load %arg12[%c29_258, %c0_259] : memref<49x256xf32, #tpu.memory_space<vmem>>, vector<1x256xf32>
    %416 = vector.broadcast %415 : vector<1x256xf32> to vector<4x256xf32>
    %417 = arith.mulf %414, %416 : vector<4x256xf32>
    %c116 = arith.constant 116 : index
    %c0_260 = arith.constant 0 : index
    %418 = vector.load %arg15[%c116, %c0_260] : memref<196x256xf32, #tpu.memory_space<vmem>>, vector<4x256xf32>
    tpu.vector_store %arg15[%c116, %c0_260], %417 {strides = array<i32>} : memref<196x256xf32, #tpu.memory_space<vmem>>, vector<4x256xf32>,
    %c241_i32_261 = arith.constant 241 : i32
    %419 = tpu.dynamic_rotate %269 by %c241_i32_261 dim 1 : vector<4x256xf32>, i32 -> vector<4x256xf32>
    %c30_262 = arith.constant 30 : index
    %c0_263 = arith.constant 0 : index
    %420 = vector.load %arg12[%c30_262, %c0_263] : memref<49x256xf32, #tpu.memory_space<vmem>>, vector<1x256xf32>
    %421 = vector.broadcast %420 : vector<1x256xf32> to vector<4x256xf32>
    %422 = arith.mulf %419, %421 : vector<4x256xf32>
    %c120 = arith.constant 120 : index
    %c0_264 = arith.constant 0 : index
    %423 = vector.load %arg15[%c120, %c0_264] : memref<196x256xf32, #tpu.memory_space<vmem>>, vector<4x256xf32>
    tpu.vector_store %arg15[%c120, %c0_264], %422 {strides = array<i32>} : memref<196x256xf32, #tpu.memory_space<vmem>>, vector<4x256xf32>,
    %c240_i32_265 = arith.constant 240 : i32
    %424 = tpu.dynamic_rotate %269 by %c240_i32_265 dim 1 : vector<4x256xf32>, i32 -> vector<4x256xf32>
    %c31_266 = arith.constant 31 : index
    %c0_267 = arith.constant 0 : index
    %425 = vector.load %arg12[%c31_266, %c0_267] : memref<49x256xf32, #tpu.memory_space<vmem>>, vector<1x256xf32>
    %426 = vector.broadcast %425 : vector<1x256xf32> to vector<4x256xf32>
    %427 = arith.mulf %424, %426 : vector<4x256xf32>
    %c124 = arith.constant 124 : index
    %c0_268 = arith.constant 0 : index
    %428 = vector.load %arg15[%c124, %c0_268] : memref<196x256xf32, #tpu.memory_space<vmem>>, vector<4x256xf32>
    tpu.vector_store %arg15[%c124, %c0_268], %427 {strides = array<i32>} : memref<196x256xf32, #tpu.memory_space<vmem>>, vector<4x256xf32>,
    %c239_i32_269 = arith.constant 239 : i32
    %429 = tpu.dynamic_rotate %269 by %c239_i32_269 dim 1 : vector<4x256xf32>, i32 -> vector<4x256xf32>
    %c32_270 = arith.constant 32 : index
    %c0_271 = arith.constant 0 : index
    %430 = vector.load %arg12[%c32_270, %c0_271] : memref<49x256xf32, #tpu.memory_space<vmem>>, vector<1x256xf32>
    %431 = vector.broadcast %430 : vector<1x256xf32> to vector<4x256xf32>
    %432 = arith.mulf %429, %431 : vector<4x256xf32>
    %c128_272 = arith.constant 128 : index
    %c0_273 = arith.constant 0 : index
    %433 = vector.load %arg15[%c128_272, %c0_273] : memref<196x256xf32, #tpu.memory_space<vmem>>, vector<4x256xf32>
    tpu.vector_store %arg15[%c128_272, %c0_273], %432 {strides = array<i32>} : memref<196x256xf32, #tpu.memory_space<vmem>>, vector<4x256xf32>,
    %c238_i32_274 = arith.constant 238 : i32
    %434 = tpu.dynamic_rotate %269 by %c238_i32_274 dim 1 : vector<4x256xf32>, i32 -> vector<4x256xf32>
    %c33_275 = arith.constant 33 : index
    %c0_276 = arith.constant 0 : index
    %435 = vector.load %arg12[%c33_275, %c0_276] : memref<49x256xf32, #tpu.memory_space<vmem>>, vector<1x256xf32>
    %436 = vector.broadcast %435 : vector<1x256xf32> to vector<4x256xf32>
    %437 = arith.mulf %434, %436 : vector<4x256xf32>
    %c132 = arith.constant 132 : index
    %c0_277 = arith.constant 0 : index
    %438 = vector.load %arg15[%c132, %c0_277] : memref<196x256xf32, #tpu.memory_space<vmem>>, vector<4x256xf32>
    tpu.vector_store %arg15[%c132, %c0_277], %437 {strides = array<i32>} : memref<196x256xf32, #tpu.memory_space<vmem>>, vector<4x256xf32>,
    %c237_i32_278 = arith.constant 237 : i32
    %439 = tpu.dynamic_rotate %269 by %c237_i32_278 dim 1 : vector<4x256xf32>, i32 -> vector<4x256xf32>
    %c34_279 = arith.constant 34 : index
    %c0_280 = arith.constant 0 : index
    %440 = vector.load %arg12[%c34_279, %c0_280] : memref<49x256xf32, #tpu.memory_space<vmem>>, vector<1x256xf32>
    %441 = vector.broadcast %440 : vector<1x256xf32> to vector<4x256xf32>
    %442 = arith.mulf %439, %441 : vector<4x256xf32>
    %c136 = arith.constant 136 : index
    %c0_281 = arith.constant 0 : index
    %443 = vector.load %arg15[%c136, %c0_281] : memref<196x256xf32, #tpu.memory_space<vmem>>, vector<4x256xf32>
    tpu.vector_store %arg15[%c136, %c0_281], %442 {strides = array<i32>} : memref<196x256xf32, #tpu.memory_space<vmem>>, vector<4x256xf32>,
    %c227_i32_282 = arith.constant 227 : i32
    %444 = tpu.dynamic_rotate %269 by %c227_i32_282 dim 1 : vector<4x256xf32>, i32 -> vector<4x256xf32>
    %c35_283 = arith.constant 35 : index
    %c0_284 = arith.constant 0 : index
    %445 = vector.load %arg12[%c35_283, %c0_284] : memref<49x256xf32, #tpu.memory_space<vmem>>, vector<1x256xf32>
    %446 = vector.broadcast %445 : vector<1x256xf32> to vector<4x256xf32>
    %447 = arith.mulf %444, %446 : vector<4x256xf32>
    %c140 = arith.constant 140 : index
    %c0_285 = arith.constant 0 : index
    %448 = vector.load %arg15[%c140, %c0_285] : memref<196x256xf32, #tpu.memory_space<vmem>>, vector<4x256xf32>
    tpu.vector_store %arg15[%c140, %c0_285], %447 {strides = array<i32>} : memref<196x256xf32, #tpu.memory_space<vmem>>, vector<4x256xf32>,
    %c226_i32_286 = arith.constant 226 : i32
    %449 = tpu.dynamic_rotate %269 by %c226_i32_286 dim 1 : vector<4x256xf32>, i32 -> vector<4x256xf32>
    %c36_287 = arith.constant 36 : index
    %c0_288 = arith.constant 0 : index
    %450 = vector.load %arg12[%c36_287, %c0_288] : memref<49x256xf32, #tpu.memory_space<vmem>>, vector<1x256xf32>
    %451 = vector.broadcast %450 : vector<1x256xf32> to vector<4x256xf32>
    %452 = arith.mulf %449, %451 : vector<4x256xf32>
    %c144_289 = arith.constant 144 : index
    %c0_290 = arith.constant 0 : index
    %453 = vector.load %arg15[%c144_289, %c0_290] : memref<196x256xf32, #tpu.memory_space<vmem>>, vector<4x256xf32>
    tpu.vector_store %arg15[%c144_289, %c0_290], %452 {strides = array<i32>} : memref<196x256xf32, #tpu.memory_space<vmem>>, vector<4x256xf32>,
    %c225_i32_291 = arith.constant 225 : i32
    %454 = tpu.dynamic_rotate %269 by %c225_i32_291 dim 1 : vector<4x256xf32>, i32 -> vector<4x256xf32>
    %c37_292 = arith.constant 37 : index
    %c0_293 = arith.constant 0 : index
    %455 = vector.load %arg12[%c37_292, %c0_293] : memref<49x256xf32, #tpu.memory_space<vmem>>, vector<1x256xf32>
    %456 = vector.broadcast %455 : vector<1x256xf32> to vector<4x256xf32>
    %457 = arith.mulf %454, %456 : vector<4x256xf32>
    %c148 = arith.constant 148 : index
    %c0_294 = arith.constant 0 : index
    %458 = vector.load %arg15[%c148, %c0_294] : memref<196x256xf32, #tpu.memory_space<vmem>>, vector<4x256xf32>
    tpu.vector_store %arg15[%c148, %c0_294], %457 {strides = array<i32>} : memref<196x256xf32, #tpu.memory_space<vmem>>, vector<4x256xf32>,
    %c224_i32_295 = arith.constant 224 : i32
    %459 = tpu.dynamic_rotate %269 by %c224_i32_295 dim 1 : vector<4x256xf32>, i32 -> vector<4x256xf32>
    %c38_296 = arith.constant 38 : index
    %c0_297 = arith.constant 0 : index
    %460 = vector.load %arg12[%c38_296, %c0_297] : memref<49x256xf32, #tpu.memory_space<vmem>>, vector<1x256xf32>
    %461 = vector.broadcast %460 : vector<1x256xf32> to vector<4x256xf32>
    %462 = arith.mulf %459, %461 : vector<4x256xf32>
    %c152 = arith.constant 152 : index
    %c0_298 = arith.constant 0 : index
    %463 = vector.load %arg15[%c152, %c0_298] : memref<196x256xf32, #tpu.memory_space<vmem>>, vector<4x256xf32>
    tpu.vector_store %arg15[%c152, %c0_298], %462 {strides = array<i32>} : memref<196x256xf32, #tpu.memory_space<vmem>>, vector<4x256xf32>,
    %c223_i32_299 = arith.constant 223 : i32
    %464 = tpu.dynamic_rotate %269 by %c223_i32_299 dim 1 : vector<4x256xf32>, i32 -> vector<4x256xf32>
    %c39_300 = arith.constant 39 : index
    %c0_301 = arith.constant 0 : index
    %465 = vector.load %arg12[%c39_300, %c0_301] : memref<49x256xf32, #tpu.memory_space<vmem>>, vector<1x256xf32>
    %466 = vector.broadcast %465 : vector<1x256xf32> to vector<4x256xf32>
    %467 = arith.mulf %464, %466 : vector<4x256xf32>
    %c156 = arith.constant 156 : index
    %c0_302 = arith.constant 0 : index
    %468 = vector.load %arg15[%c156, %c0_302] : memref<196x256xf32, #tpu.memory_space<vmem>>, vector<4x256xf32>
    tpu.vector_store %arg15[%c156, %c0_302], %467 {strides = array<i32>} : memref<196x256xf32, #tpu.memory_space<vmem>>, vector<4x256xf32>,
    %c222_i32_303 = arith.constant 222 : i32
    %469 = tpu.dynamic_rotate %269 by %c222_i32_303 dim 1 : vector<4x256xf32>, i32 -> vector<4x256xf32>
    %c40_304 = arith.constant 40 : index
    %c0_305 = arith.constant 0 : index
    %470 = vector.load %arg12[%c40_304, %c0_305] : memref<49x256xf32, #tpu.memory_space<vmem>>, vector<1x256xf32>
    %471 = vector.broadcast %470 : vector<1x256xf32> to vector<4x256xf32>
    %472 = arith.mulf %469, %471 : vector<4x256xf32>
    %c160_306 = arith.constant 160 : index
    %c0_307 = arith.constant 0 : index
    %473 = vector.load %arg15[%c160_306, %c0_307] : memref<196x256xf32, #tpu.memory_space<vmem>>, vector<4x256xf32>
    tpu.vector_store %arg15[%c160_306, %c0_307], %472 {strides = array<i32>} : memref<196x256xf32, #tpu.memory_space<vmem>>, vector<4x256xf32>,
    %c221_i32_308 = arith.constant 221 : i32
    %474 = tpu.dynamic_rotate %269 by %c221_i32_308 dim 1 : vector<4x256xf32>, i32 -> vector<4x256xf32>
    %c41_309 = arith.constant 41 : index
    %c0_310 = arith.constant 0 : index
    %475 = vector.load %arg12[%c41_309, %c0_310] : memref<49x256xf32, #tpu.memory_space<vmem>>, vector<1x256xf32>
    %476 = vector.broadcast %475 : vector<1x256xf32> to vector<4x256xf32>
    %477 = arith.mulf %474, %476 : vector<4x256xf32>
    %c164 = arith.constant 164 : index
    %c0_311 = arith.constant 0 : index
    %478 = vector.load %arg15[%c164, %c0_311] : memref<196x256xf32, #tpu.memory_space<vmem>>, vector<4x256xf32>
    tpu.vector_store %arg15[%c164, %c0_311], %477 {strides = array<i32>} : memref<196x256xf32, #tpu.memory_space<vmem>>, vector<4x256xf32>,
    %c211_i32_312 = arith.constant 211 : i32
    %479 = tpu.dynamic_rotate %269 by %c211_i32_312 dim 1 : vector<4x256xf32>, i32 -> vector<4x256xf32>
    %c42_313 = arith.constant 42 : index
    %c0_314 = arith.constant 0 : index
    %480 = vector.load %arg12[%c42_313, %c0_314] : memref<49x256xf32, #tpu.memory_space<vmem>>, vector<1x256xf32>
    %481 = vector.broadcast %480 : vector<1x256xf32> to vector<4x256xf32>
    %482 = arith.mulf %479, %481 : vector<4x256xf32>
    %c168 = arith.constant 168 : index
    %c0_315 = arith.constant 0 : index
    %483 = vector.load %arg15[%c168, %c0_315] : memref<196x256xf32, #tpu.memory_space<vmem>>, vector<4x256xf32>
    tpu.vector_store %arg15[%c168, %c0_315], %482 {strides = array<i32>} : memref<196x256xf32, #tpu.memory_space<vmem>>, vector<4x256xf32>,
    %c210_i32_316 = arith.constant 210 : i32
    %484 = tpu.dynamic_rotate %269 by %c210_i32_316 dim 1 : vector<4x256xf32>, i32 -> vector<4x256xf32>
    %c43_317 = arith.constant 43 : index
    %c0_318 = arith.constant 0 : index
    %485 = vector.load %arg12[%c43_317, %c0_318] : memref<49x256xf32, #tpu.memory_space<vmem>>, vector<1x256xf32>
    %486 = vector.broadcast %485 : vector<1x256xf32> to vector<4x256xf32>
    %487 = arith.mulf %484, %486 : vector<4x256xf32>
    %c172 = arith.constant 172 : index
    %c0_319 = arith.constant 0 : index
    %488 = vector.load %arg15[%c172, %c0_319] : memref<196x256xf32, #tpu.memory_space<vmem>>, vector<4x256xf32>
    tpu.vector_store %arg15[%c172, %c0_319], %487 {strides = array<i32>} : memref<196x256xf32, #tpu.memory_space<vmem>>, vector<4x256xf32>,
    %c209_i32_320 = arith.constant 209 : i32
    %489 = tpu.dynamic_rotate %269 by %c209_i32_320 dim 1 : vector<4x256xf32>, i32 -> vector<4x256xf32>
    %c44_321 = arith.constant 44 : index
    %c0_322 = arith.constant 0 : index
    %490 = vector.load %arg12[%c44_321, %c0_322] : memref<49x256xf32, #tpu.memory_space<vmem>>, vector<1x256xf32>
    %491 = vector.broadcast %490 : vector<1x256xf32> to vector<4x256xf32>
    %492 = arith.mulf %489, %491 : vector<4x256xf32>
    %c176_323 = arith.constant 176 : index
    %c0_324 = arith.constant 0 : index
    %493 = vector.load %arg15[%c176_323, %c0_324] : memref<196x256xf32, #tpu.memory_space<vmem>>, vector<4x256xf32>
    tpu.vector_store %arg15[%c176_323, %c0_324], %492 {strides = array<i32>} : memref<196x256xf32, #tpu.memory_space<vmem>>, vector<4x256xf32>,
    %c208_i32_325 = arith.constant 208 : i32
    %494 = tpu.dynamic_rotate %269 by %c208_i32_325 dim 1 : vector<4x256xf32>, i32 -> vector<4x256xf32>
    %c45_326 = arith.constant 45 : index
    %c0_327 = arith.constant 0 : index
    %495 = vector.load %arg12[%c45_326, %c0_327] : memref<49x256xf32, #tpu.memory_space<vmem>>, vector<1x256xf32>
    %496 = vector.broadcast %495 : vector<1x256xf32> to vector<4x256xf32>
    %497 = arith.mulf %494, %496 : vector<4x256xf32>
    %c180 = arith.constant 180 : index
    %c0_328 = arith.constant 0 : index
    %498 = vector.load %arg15[%c180, %c0_328] : memref<196x256xf32, #tpu.memory_space<vmem>>, vector<4x256xf32>
    tpu.vector_store %arg15[%c180, %c0_328], %497 {strides = array<i32>} : memref<196x256xf32, #tpu.memory_space<vmem>>, vector<4x256xf32>,
    %c207_i32_329 = arith.constant 207 : i32
    %499 = tpu.dynamic_rotate %269 by %c207_i32_329 dim 1 : vector<4x256xf32>, i32 -> vector<4x256xf32>
    %c46_330 = arith.constant 46 : index
    %c0_331 = arith.constant 0 : index
    %500 = vector.load %arg12[%c46_330, %c0_331] : memref<49x256xf32, #tpu.memory_space<vmem>>, vector<1x256xf32>
    %501 = vector.broadcast %500 : vector<1x256xf32> to vector<4x256xf32>
    %502 = arith.mulf %499, %501 : vector<4x256xf32>
    %c184 = arith.constant 184 : index
    %c0_332 = arith.constant 0 : index
    %503 = vector.load %arg15[%c184, %c0_332] : memref<196x256xf32, #tpu.memory_space<vmem>>, vector<4x256xf32>
    tpu.vector_store %arg15[%c184, %c0_332], %502 {strides = array<i32>} : memref<196x256xf32, #tpu.memory_space<vmem>>, vector<4x256xf32>,
    %c206_i32_333 = arith.constant 206 : i32
    %504 = tpu.dynamic_rotate %269 by %c206_i32_333 dim 1 : vector<4x256xf32>, i32 -> vector<4x256xf32>
    %c47_334 = arith.constant 47 : index
    %c0_335 = arith.constant 0 : index
    %505 = vector.load %arg12[%c47_334, %c0_335] : memref<49x256xf32, #tpu.memory_space<vmem>>, vector<1x256xf32>
    %506 = vector.broadcast %505 : vector<1x256xf32> to vector<4x256xf32>
    %507 = arith.mulf %504, %506 : vector<4x256xf32>
    %c188 = arith.constant 188 : index
    %c0_336 = arith.constant 0 : index
    %508 = vector.load %arg15[%c188, %c0_336] : memref<196x256xf32, #tpu.memory_space<vmem>>, vector<4x256xf32>
    tpu.vector_store %arg15[%c188, %c0_336], %507 {strides = array<i32>} : memref<196x256xf32, #tpu.memory_space<vmem>>, vector<4x256xf32>,
    %c205_i32_337 = arith.constant 205 : i32
    %509 = tpu.dynamic_rotate %269 by %c205_i32_337 dim 1 : vector<4x256xf32>, i32 -> vector<4x256xf32>
    %c48_338 = arith.constant 48 : index
    %c0_339 = arith.constant 0 : index
    %510 = vector.load %arg12[%c48_338, %c0_339] : memref<49x256xf32, #tpu.memory_space<vmem>>, vector<1x256xf32>
    %511 = vector.broadcast %510 : vector<1x256xf32> to vector<4x256xf32>
    %512 = arith.mulf %509, %511 : vector<4x256xf32>
    %c192_340 = arith.constant 192 : index
    %c0_341 = arith.constant 0 : index
    %513 = vector.load %arg15[%c192_340, %c0_341] : memref<196x256xf32, #tpu.memory_space<vmem>>, vector<4x256xf32>
    tpu.vector_store %arg15[%c192_340, %c0_341], %512 {strides = array<i32>} : memref<196x256xf32, #tpu.memory_space<vmem>>, vector<4x256xf32>,
    %c0_342 = arith.constant 0 : index
    %c0_343 = arith.constant 0 : index
    %514 = vector.load %arg9[%c0_342, %c0_343] : memref<16x196xf32, #tpu.memory_space<vmem>>, vector<16x196xf32>
    %c0_344 = arith.constant 0 : index
    %c0_345 = arith.constant 0 : index
    %515 = vector.load %arg15[%c0_344, %c0_345] : memref<196x256xf32, #tpu.memory_space<vmem>>, vector<196x256xf32>
    %cst_346 = arith.constant dense<0.000000e+00> : vector<16x256xf32>
    %516 = tpu.matmul %514, %515, %cst_346 {dimension_numbers = #tpu.dot_dimension_numbers<[1], [0], [0], [1], [0, 0, 1, 1], [], []>} : vector<16x196xf32>, vector<196x256xf32>, vector<16x256xf32> -> vector<16x256xf32>
    %c0_347 = arith.constant 0 : index
    %c0_348 = arith.constant 0 : index
    %517 = vector.load %arg10[%c0_347, %c0_348] : memref<16x1xf32, #tpu.memory_space<vmem>>, vector<16x1xf32>
    %518 = vector.broadcast %517 : vector<16x1xf32> to vector<16x256xf32>
    %519 = arith.mulf %516, %518 : vector<16x256xf32>
    %c0_349 = arith.constant 0 : index
    %c0_350 = arith.constant 0 : index
    %520 = vector.load %arg11[%c0_349, %c0_350] : memref<16x1xf32, #tpu.memory_space<vmem>>, vector<16x1xf32>
    %521 = vector.broadcast %520 : vector<16x1xf32> to vector<16x256xf32>
    %522 = arith.addf %519, %521 : vector<16x256xf32>
    %523 = arith.negf %522 : vector<16x256xf32>
    %524 = math.exp %523 : vector<16x256xf32>
    %cst_351 = arith.constant 1.000000e+00 : f32
    %525 = vector.broadcast %cst_351 : f32 to vector<16x256xf32>
    %526 = arith.addf %525, %524 : vector<16x256xf32>
    %527 = arith.divf %525, %526 : vector<16x256xf32>
    %528 = arith.mulf %14, %527 : vector<16x256xf32>
    %c0_352 = arith.constant 0 : index
    %c0_353 = arith.constant 0 : index
    %c0_354 = arith.constant 0 : index
    %529 = vector.load %arg13[%c0_352, %c0_353, %c0_354] : memref<1x16x256xf32, #tpu.memory_space<vmem>>, vector<1x16x256xf32>
    %530 = vector.shape_cast %529 : vector<1x16x256xf32> to vector<16x256xf32>
    %531 = vector.shape_cast %528 : vector<16x256xf32> to vector<1x16x256xf32>
    tpu.vector_store %arg13[%c0_352, %c0_353, %c0_354], %531 {strides = array<i32>} : memref<1x16x256xf32, #tpu.memory_space<vmem>>, vector<1x16x256xf32>,
    return
  }
  func.func @transform_0(%arg0: i32) -> (i32, i32, i32) {
    %c0_i32 = arith.constant 0 : i32
    %c0_i32_0 = arith.constant 0 : i32
    %c0_i32_1 = arith.constant 0 : i32
    return %arg0, %c0_i32, %c0_i32_0 : i32, i32, i32
  }
  func.func @transform_1(%arg0: i32) -> (i32, i32) {
    %c0_i32 = arith.constant 0 : i32
    %c0_i32_0 = arith.constant 0 : i32
    %c0_i32_1 = arith.constant 0 : i32
    return %c0_i32, %c0_i32_0 : i32, i32
  }
  func.func @transform_2(%arg0: i32) -> (i32, i32) {
    %c0_i32 = arith.constant 0 : i32
    %c0_i32_0 = arith.constant 0 : i32
    %c0_i32_1 = arith.constant 0 : i32
    return %c0_i32, %c0_i32_0 : i32, i32
  }
  func.func @transform_3(%arg0: i32) -> (i32, i32) {
    %c0_i32 = arith.constant 0 : i32
    %c0_i32_0 = arith.constant 0 : i32
    %c0_i32_1 = arith.constant 0 : i32
    return %c0_i32, %c0_i32_0 : i32, i32
  }
  func.func @transform_4(%arg0: i32) -> (i32, i32) {
    %c0_i32 = arith.constant 0 : i32
    %c0_i32_0 = arith.constant 0 : i32
    %c0_i32_1 = arith.constant 0 : i32
    return %c0_i32, %c0_i32_0 : i32, i32
  }
  func.func @transform_5(%arg0: i32) -> (i32, i32) {
    %c0_i32 = arith.constant 0 : i32
    %c0_i32_0 = arith.constant 0 : i32
    %c0_i32_1 = arith.constant 0 : i32
    return %c0_i32, %c0_i32_0 : i32, i32
  }
  func.func @transform_6(%arg0: i32) -> (i32, i32) {
    %c0_i32 = arith.constant 0 : i32
    %c0_i32_0 = arith.constant 0 : i32
    %c0_i32_1 = arith.constant 0 : i32
    return %c0_i32, %c0_i32_0 : i32, i32
  }
  func.func @transform_7(%arg0: i32) -> (i32, i32) {
    %c0_i32 = arith.constant 0 : i32
    %c0_i32_0 = arith.constant 0 : i32
    %c0_i32_1 = arith.constant 0 : i32
    return %c0_i32, %c0_i32_0 : i32, i32
  }
  func.func @transform_8(%arg0: i32) -> (i32, i32) {
    %c0_i32 = arith.constant 0 : i32
    %c0_i32_0 = arith.constant 0 : i32
    %c0_i32_1 = arith.constant 0 : i32
    return %c0_i32, %c0_i32_0 : i32, i32
  }
  func.func @transform_9(%arg0: i32) -> (i32, i32) {
    %c0_i32 = arith.constant 0 : i32
    %c0_i32_0 = arith.constant 0 : i32
    %c0_i32_1 = arith.constant 0 : i32
    return %c0_i32, %c0_i32_0 : i32, i32
  }
  func.func @transform_10(%arg0: i32) -> (i32, i32) {
    %c0_i32 = arith.constant 0 : i32
    %c0_i32_0 = arith.constant 0 : i32
    %c0_i32_1 = arith.constant 0 : i32
    return %c0_i32, %c0_i32_0 : i32, i32
  }
  func.func @transform_11(%arg0: i32) -> (i32, i32) {
    %c0_i32 = arith.constant 0 : i32
    %c0_i32_0 = arith.constant 0 : i32
    %c0_i32_1 = arith.constant 0 : i32
    return %c0_i32, %c0_i32_0 : i32, i32
  }
  func.func @transform_12(%arg0: i32) -> (i32, i32, i32) {
    %c0_i32 = arith.constant 0 : i32
    %c0_i32_0 = arith.constant 0 : i32
    %c0_i32_1 = arith.constant 0 : i32
    return %arg0, %c0_i32, %c0_i32_0 : i32, i32, i32
  }
}

</mosaic_0001>

<llo_original>
// kernel: tpu_custom_call.1
$region0: #{tpu_custom_call.1}
  #allocation0 [shape = 'u32[]', space=smem, size = 0x4, offset = 0x4, fixed_abs, tag = 'smem constant byte address 0x4 - core index']
  #allocation1 [shape = 'u32[144,128]{1,0:T(1,128)}', space=vmem, size = 0x12000, scoped, tag = 'internal scratch']
  #allocation2 [shape = 'f32[784,256]{1,0:T(8,128)}', space=vmem, size = 0xc4000, scoped, tag = 'scratch operand']
  #allocation3 [shape = 'f32[196,256]{1,0:T(8,128)}', space=vmem, size = 0x32000, scoped, tag = 'scratch operand']
  %s0 = inlined_call_operand.hbm [shape: f32[2,16,256], index: 0, kind: input, shape index: {}]
  %s1 = inlined_call_operand.vmem [shape: f32[4,16], index: 1, kind: input, shape index: {}]
  %s2 = inlined_call_operand.vmem [shape: f32[4,1], index: 2, kind: input, shape index: {}]
  %s3 = inlined_call_operand.vmem [shape: f32[16,4], index: 3, kind: input, shape index: {}]
  %s4 = inlined_call_operand.vmem [shape: f32[16,1], index: 4, kind: input, shape index: {}]
  %s5 = inlined_call_operand.hbm [shape: f32[4,784], index: 5, kind: input, shape index: {}]
  %s6 = inlined_call_operand.vmem [shape: f32[4,1], index: 6, kind: input, shape index: {}]
  %s7 = inlined_call_operand.vmem [shape: f32[4,1], index: 7, kind: input, shape index: {}]
  %s8 = inlined_call_operand.hbm [shape: f32[16,196], index: 8, kind: input, shape index: {}]
  %s9 = inlined_call_operand.vmem [shape: f32[16,1], index: 9, kind: input, shape index: {}]
  %s10 = inlined_call_operand.vmem [shape: f32[16,1], index: 10, kind: input, shape index: {}]
  %s11 = inlined_call_operand.vmem [shape: f32[49,256], index: 11, kind: input, shape index: {}]
  %s12 = inlined_call_operand.hbm [shape: f32[2,16,256], index: 12, kind: output, shape index: {}]
  %s13 = sld [smem:[#allocation0]]
  $region93: #{tpu_custom_call.1} parent=0
    _
  %s15 = ssub.s32 1, %s13
  %s16 = scalar_select 0, %s15, %s13
  $region1: #{tpu_custom_call.1} parent=0
    #allocation4 [shape = 'u8[32768]{0}', space=vmem, size = 0x8000, scoped, tag = 'input window, operand 0']
    #allocation5 [shape = 's32[2]{0}', space=sflag, size = 0x8, scoped, tag = 'scoped memory for tpu_custom_call.1']
    #allocation6 [shape = 's32[2]{0}', space=sflag, size = 0x8, scoped, tag = 'scoped memory for tpu_custom_call.1']
    #allocation7 [shape = 'u8[14336]{0}', space=vmem, size = 0x3800, scoped, tag = 'input window, operand 5, single buffered']
    #allocation8 [shape = 's32[1]{0}', space=sflag, size = 0x4, scoped, tag = 'scoped memory for tpu_custom_call.1']
    #allocation9 [shape = 'u8[16384]{0}', space=vmem, size = 0x4000, scoped, tag = 'input window, operand 8, single buffered']
    #allocation10 [shape = 'u8[32768]{0}', space=vmem, size = 0x8000, scoped, tag = 'output window, operand 0']
    %17 = vsyncpa [#allocation5], 0
    %s18 = scalar_lea.sflag [#allocation5], 1
    %19 = vsyncpa %s18, 0
    %20 = vsyncpa [#allocation8], 0
    %21 = vsyncpa [#allocation6], 0
    %s22 = scalar_lea.sflag [#allocation6], 1
    %23 = vsyncpa %s22, 0
    loop: start=0, step=1, limit=4
    $region2: #{tpu_custom_call.1} parent=1 // loop_pre_header
      _
    $region3: #{tpu_custom_call.1} parent=1 // loop_header
      %s25 = sphi 0, %s29
      %p26 = scmp.ge.s32.totalorder %s25, 4
      %s35 = sphi 0, %s37
      %s38 = sphi 0, %s35
      %s39 = sphi 0, %s38
      %s55 = sphi 0, %s39
      %s59 = sphi 0, %s59
      %s61 = sphi 0, %s59
      %s62 = sphi 0, %s61
      %s76 = sphi 0, %s62
      %s80 = sphi 0, %s80
      %s82 = sphi 0, %s80
      %s83 = sphi 0, %s82
      %s97 = sphi 0, %s83
      %s101 = sphi 0, %s101
      %s103 = sphi 0, %s101
      %s104 = sphi 0, %s103
      %s118 = sphi 0, %s104
      %s122 = sphi 0, %s122
      %s124 = sphi 0, %s122
      %s125 = sphi 0, %s124
      %s139 = sphi 0, %s125
      %s143 = sphi 0, %s143
      %s145 = sphi 0, %s143
      %s146 = sphi 0, %s145
      %s160 = sphi 0, %s146
      %s164 = sphi 0, %s164
      %s166 = sphi 0, %s164
      %s167 = sphi 0, %s166
      %s181 = sphi 0, %s167
      %s185 = sphi 0, %s185
      %s187 = sphi 0, %s185
      %s188 = sphi 0, %s187
      %s202 = sphi 0, %s188
      %s206 = sphi 0, %s206
      %s208 = sphi 0, %s206
      %s209 = sphi 0, %s208
      %s223 = sphi 0, %s209
      %s227 = sphi 0, %s227
      %s229 = sphi 0, %s227
      %s230 = sphi 0, %s229
      %s244 = sphi 0, %s230
      %s248 = sphi 0, %s248
      %s250 = sphi 0, %s248
      %s251 = sphi 0, %s250
      %s265 = sphi 0, %s251
      %s269 = sphi 0, %s269
      %s271 = sphi 0, %s269
      %s272 = sphi 0, %s271
      %s286 = sphi 0, %s272
      %s292 = sphi 0, %s294
      %s295 = sphi 0, %s292
      %s296 = sphi 0, %s295
      %s312 = sphi 0, %s296
    $region4: #{tpu_custom_call.1} parent=1 // loop_header_branch
      %28 = sbr.rel (%p26) target = $region8
    $region5: #{tpu_custom_call.1} parent=1 // loop_body
      %s30 = ssub.s32 %s25, 1
      %s31 = ssub.s32 %s25, 2
      %s32 = sadd.s32 %s25, 1
      %s33 = ssub.s32 %s25, %s32
      %p34 = scmp.eq.s32.totalorder %s33, 0
      %s36 = sadd.s32 %s35, 1
      %s37 = scalar_select %p34, %s35, %s36
      %p40 = pneg %p34
      %p41 = scmp.eq.s32.totalorder %s25, 1
      %p42 = por %p40, %p41
      %p43 = scmp.ne.s32.totalorder %s35, %s38
      %p44 = scmp.eq.s32.totalorder %s25, 0
      %p45 = por %p43, %p44
      %p46 = scmp.ne.s32.totalorder %s35, %s38
      %p47 = scmp.eq.s32.totalorder %s30, 1
      %p48 = por %p46, %p47
      %p49 = scmp.ne.s32.totalorder %s38, %s39
      %p50 = scmp.eq.s32.totalorder %s30, 0
      %p51 = por %p49, %p50
      %p52 = scmp.ne.s32.totalorder %s38, %s39
      %p53 = scmp.eq.s32.totalorder %s31, 1
      %p54 = por %p52, %p53
      %p56 = scmp.ne.s32.totalorder %s39, %s55
      %p57 = scmp.eq.s32.totalorder %s31, 0
      %p58 = por %p56, %p57
      %s60 = sadd.s32 %s59, 1
      %p63 = scmp.eq.s32.totalorder %s25, 1
      %p64 = scmp.ne.s32.totalorder %s59, %s61
      %p65 = scmp.eq.s32.totalorder %s25, 0
      %p66 = por %p64, %p65
      %p67 = scmp.ne.s32.totalorder %s59, %s61
      %p68 = scmp.eq.s32.totalorder %s30, 1
      %p69 = por %p67, %p68
      %p70 = scmp.ne.s32.totalorder %s61, %s62
      %p71 = scmp.eq.s32.totalorder %s30, 0
      %p72 = por %p70, %p71
      %p73 = scmp.ne.s32.totalorder %s61, %s62
      %p74 = scmp.eq.s32.totalorder %s31, 1
      %p75 = por %p73, %p74
      %p77 = scmp.ne.s32.totalorder %s62, %s76
      %p78 = scmp.eq.s32.totalorder %s31, 0
      %p79 = por %p77, %p78
      %s81 = sadd.s32 %s80, 1
      %p84 = scmp.eq.s32.totalorder %s25, 1
      %p85 = scmp.ne.s32.totalorder %s80, %s82
      %p86 = scmp.eq.s32.totalorder %s25, 0
      %p87 = por %p85, %p86
      %p88 = scmp.ne.s32.totalorder %s80, %s82
      %p89 = scmp.eq.s32.totalorder %s30, 1
      %p90 = por %p88, %p89
      %p91 = scmp.ne.s32.totalorder %s82, %s83
      %p92 = scmp.eq.s32.totalorder %s30, 0
      %p93 = por %p91, %p92
      %p94 = scmp.ne.s32.totalorder %s82, %s83
      %p95 = scmp.eq.s32.totalorder %s31, 1
      %p96 = por %p94, %p95
      %p98 = scmp.ne.s32.totalorder %s83, %s97
      %p99 = scmp.eq.s32.totalorder %s31, 0
      %p100 = por %p98, %p99
      %s102 = sadd.s32 %s101, 1
      %p105 = scmp.eq.s32.totalorder %s25, 1
      %p106 = scmp.ne.s32.totalorder %s101, %s103
      %p107 = scmp.eq.s32.totalorder %s25, 0
      %p108 = por %p106, %p107
      %p109 = scmp.ne.s32.totalorder %s101, %s103
      %p110 = scmp.eq.s32.totalorder %s30, 1
      %p111 = por %p109, %p110
      %p112 = scmp.ne.s32.totalorder %s103, %s104
      %p113 = scmp.eq.s32.totalorder %s30, 0
      %p114 = por %p112, %p113
      %p115 = scmp.ne.s32.totalorder %s103, %s104
      %p116 = scmp.eq.s32.totalorder %s31, 1
      %p117 = por %p115, %p116
      %p119 = scmp.ne.s32.totalorder %s104, %s118
      %p120 = scmp.eq.s32.totalorder %s31, 0
      %p121 = por %p119, %p120
      %s123 = sadd.s32 %s122, 1
      %p126 = scmp.eq.s32.totalorder %s25, 1
      %p127 = scmp.ne.s32.totalorder %s122, %s124
      %p128 = scmp.eq.s32.totalorder %s25, 0
      %p129 = por %p127, %p128
      %p130 = scmp.ne.s32.totalorder %s122, %s124
      %p131 = scmp.eq.s32.totalorder %s30, 1
      %p132 = por %p130, %p131
      %p133 = scmp.ne.s32.totalorder %s124, %s125
      %p134 = scmp.eq.s32.totalorder %s30, 0
      %p135 = por %p133, %p134
      %p136 = scmp.ne.s32.totalorder %s124, %s125
      %p137 = scmp.eq.s32.totalorder %s31, 1
      %p138 = por %p136, %p137
      %p140 = scmp.ne.s32.totalorder %s125, %s139
      %p141 = scmp.eq.s32.totalorder %s31, 0
      %p142 = por %p140, %p141
      %s144 = sadd.s32 %s143, 1
      %p147 = scmp.eq.s32.totalorder %s25, 1
      %p148 = scmp.ne.s32.totalorder %s143, %s145
      %p149 = scmp.eq.s32.totalorder %s25, 0
      %p150 = por %p148, %p149
      %p151 = scmp.ne.s32.totalorder %s143, %s145
      %p152 = scmp.eq.s32.totalorder %s30, 1
      %p153 = por %p151, %p152
      %p154 = scmp.ne.s32.totalorder %s145, %s146
      %p155 = scmp.eq.s32.totalorder %s30, 0
      %p156 = por %p154, %p155
      %p157 = scmp.ne.s32.totalorder %s145, %s146
      %p158 = scmp.eq.s32.totalorder %s31, 1
      %p159 = por %p157, %p158
      %p161 = scmp.ne.s32.totalorder %s146, %s160
      %p162 = scmp.eq.s32.totalorder %s31, 0
      %p163 = por %p161, %p162
      %s165 = sadd.s32 %s164, 1
      %p168 = scmp.eq.s32.totalorder %s25, 1
      %p169 = scmp.ne.s32.totalorder %s164, %s166
      %p170 = scmp.eq.s32.totalorder %s25, 0
      %p171 = por %p169, %p170
      %p172 = scmp.ne.s32.totalorder %s164, %s166
      %p173 = scmp.eq.s32.totalorder %s30, 1
      %p174 = por %p172, %p173
      %p175 = scmp.ne.s32.totalorder %s166, %s167
      %p176 = scmp.eq.s32.totalorder %s30, 0
      %p177 = por %p175, %p176
      %p178 = scmp.ne.s32.totalorder %s166, %s167
      %p179 = scmp.eq.s32.totalorder %s31, 1
      %p180 = por %p178, %p179
      %p182 = scmp.ne.s32.totalorder %s167, %s181
      %p183 = scmp.eq.s32.totalorder %s31, 0
      %p184 = por %p182, %p183
      %s186 = sadd.s32 %s185, 1
      %p189 = scmp.eq.s32.totalorder %s25, 1
      %p190 = scmp.ne.s32.totalorder %s185, %s187
      %p191 = scmp.eq.s32.totalorder %s25, 0
      %p192 = por %p190, %p191
      %p193 = scmp.ne.s32.totalorder %s185, %s187
      %p194 = scmp.eq.s32.totalorder %s30, 1
      %p195 = por %p193, %p194
      %p196 = scmp.ne.s32.totalorder %s187, %s188
      %p197 = scmp.eq.s32.totalorder %s30, 0
      %p198 = por %p196, %p197
      %p199 = scmp.ne.s32.totalorder %s187, %s188
      %p200 = scmp.eq.s32.totalorder %s31, 1
      %p201 = por %p199, %p200
      %p203 = scmp.ne.s32.totalorder %s188, %s202
      %p204 = scmp.eq.s32.totalorder %s31, 0
      %p205 = por %p203, %p204
      %s207 = sadd.s32 %s206, 1
      %p210 = scmp.eq.s32.totalorder %s25, 1
      %p211 = scmp.ne.s32.totalorder %s206, %s208
      %p212 = scmp.eq.s32.totalorder %s25, 0
      %p213 = por %p211, %p212
      %p214 = scmp.ne.s32.totalorder %s206, %s208
      %p215 = scmp.eq.s32.totalorder %s30, 1
      %p216 = por %p214, %p215
      %p217 = scmp.ne.s32.totalorder %s208, %s209
      %p218 = scmp.eq.s32.totalorder %s30, 0
      %p219 = por %p217, %p218
      %p220 = scmp.ne.s32.totalorder %s208, %s209
      %p221 = scmp.eq.s32.totalorder %s31, 1
      %p222 = por %p220, %p221
      %p224 = scmp.ne.s32.totalorder %s209, %s223
      %p225 = scmp.eq.s32.totalorder %s31, 0
      %p226 = por %p224, %p225
      %s228 = sadd.s32 %s227, 1
      %p231 = scmp.eq.s32.totalorder %s25, 1
      %p232 = scmp.ne.s32.totalorder %s227, %s229
      %p233 = scmp.eq.s32.totalorder %s25, 0
      %p234 = por %p232, %p233
      %p235 = scmp.ne.s32.totalorder %s227, %s229
      %p236 = scmp.eq.s32.totalorder %s30, 1
      %p237 = por %p235, %p236
      %p238 = scmp.ne.s32.totalorder %s229, %s230
      %p239 = scmp.eq.s32.totalorder %s30, 0
      %p240 = por %p238, %p239
      %p241 = scmp.ne.s32.totalorder %s229, %s230
      %p242 = scmp.eq.s32.totalorder %s31, 1
      %p243 = por %p241, %p242
      %p245 = scmp.ne.s32.totalorder %s230, %s244
      %p246 = scmp.eq.s32.totalorder %s31, 0
      %p247 = por %p245, %p246
      %s249 = sadd.s32 %s248, 1
      %p252 = scmp.eq.s32.totalorder %s25, 1
      %p253 = scmp.ne.s32.totalorder %s248, %s250
      %p254 = scmp.eq.s32.totalorder %s25, 0
      %p255 = por %p253, %p254
      %p256 = scmp.ne.s32.totalorder %s248, %s250
      %p257 = scmp.eq.s32.totalorder %s30, 1
      %p258 = por %p256, %p257
      %p259 = scmp.ne.s32.totalorder %s250, %s251
      %p260 = scmp.eq.s32.totalorder %s30, 0
      %p261 = por %p259, %p260
      %p262 = scmp.ne.s32.totalorder %s250, %s251
      %p263 = scmp.eq.s32.totalorder %s31, 1
      %p264 = por %p262, %p263
      %p266 = scmp.ne.s32.totalorder %s251, %s265
      %p267 = scmp.eq.s32.totalorder %s31, 0
      %p268 = por %p266, %p267
      %s270 = sadd.s32 %s269, 1
      %p273 = scmp.eq.s32.totalorder %s25, 1
      %p274 = scmp.ne.s32.totalorder %s269, %s271
      %p275 = scmp.eq.s32.totalorder %s25, 0
      %p276 = por %p274, %p275
      %p277 = scmp.ne.s32.totalorder %s269, %s271
      %p278 = scmp.eq.s32.totalorder %s30, 1
      %p279 = por %p277, %p278
      %p280 = scmp.ne.s32.totalorder %s271, %s272
      %p281 = scmp.eq.s32.totalorder %s30, 0
      %p282 = por %p280, %p281
      %p283 = scmp.ne.s32.totalorder %s271, %s272
      %p284 = scmp.eq.s32.totalorder %s31, 1
      %p285 = por %p283, %p284
      %p287 = scmp.ne.s32.totalorder %s272, %s286
      %p288 = scmp.eq.s32.totalorder %s31, 0
      %p289 = por %p287, %p288
      %s290 = ssub.s32 %s25, %s32
      %p291 = scmp.eq.s32.totalorder %s290, 0
      %s293 = sadd.s32 %s292, 1
      %s294 = scalar_select %p291, %s292, %s293
      %p297 = pneg %p291
      %p298 = scmp.eq.s32.totalorder %s25, 1
      %p299 = por %p297, %p298
      %p300 = scmp.ne.s32.totalorder %s292, %s295
      %p301 = scmp.eq.s32.totalorder %s25, 0
      %p302 = por %p300, %p301
      %p303 = scmp.ne.s32.totalorder %s292, %s295
      %p304 = scmp.eq.s32.totalorder %s30, 1
      %p305 = por %p303, %p304
      %p306 = scmp.ne.s32.totalorder %s295, %s296
      %p307 = scmp.eq.s32.totalorder %s30, 0
      %p308 = por %p306, %p307
      %p309 = scmp.ne.s32.totalorder %s295, %s296
      %p310 = scmp.eq.s32.totalorder %s31, 1
      %p311 = por %p309, %p310
      %p313 = scmp.ne.s32.totalorder %s296, %s312
      %p314 = scmp.eq.s32.totalorder %s31, 0
      %p315 = por %p313, %p314
      %p316 = scmp.le.s32.totalorder 1, %s25
      %p317 = scmp.lt.s32.totalorder %s25, 3
      %p318 = pnand %p316, %p317
      %p319 = pneg %p318
      // Predicated region
      $region9: #{tpu_custom_call.1} parent=5 // pred_check
        _
      $region10: #{tpu_custom_call.1} parent=5 // pred_check_branch
        %321 = sbr.rel (%p318) target = $region12
      $region11: #{tpu_custom_call.1} parent=5 // pred_region
        %s322 = ssub.s32 %s25, 1
        // Predicated region
        $region13: #{tpu_custom_call.1} parent=11 // pred_check
          %p323 = pneg %p72
        $region14: #{tpu_custom_call.1} parent=11 // pred_check_branch
          %325 = sbr.rel (%p323) target = $region16
        $region15: #{tpu_custom_call.1} parent=11 // pred_region
          _
        $region16: #{tpu_custom_call.1} parent=11 // pred_fallthru
          _
        // Predicated region
        $region17: #{tpu_custom_call.1} parent=11 // pred_check
          %p326 = pneg %p93
        $region18: #{tpu_custom_call.1} parent=11 // pred_check_branch
          %328 = sbr.rel (%p326) target = $region20
        $region19: #{tpu_custom_call.1} parent=11 // pred_region
          _
        $region20: #{tpu_custom_call.1} parent=11 // pred_fallthru
          _
        // Predicated region
        $region21: #{tpu_custom_call.1} parent=11 // pred_check
          %p329 = pneg %p114
        $region22: #{tpu_custom_call.1} parent=11 // pred_check_branch
          %331 = sbr.rel (%p329) target = $region24
        $region23: #{tpu_custom_call.1} parent=11 // pred_region
          _
        $region24: #{tpu_custom_call.1} parent=11 // pred_fallthru
          _
        // Predicated region
        $region25: #{tpu_custom_call.1} parent=11 // pred_check
          %p332 = pneg %p135
        $region26: #{tpu_custom_call.1} parent=11 // pred_check_branch
          %334 = sbr.rel (%p332) target = $region28
        $region27: #{tpu_custom_call.1} parent=11 // pred_region
          _
        $region28: #{tpu_custom_call.1} parent=11 // pred_fallthru
          _
        // Predicated region
        $region29: #{tpu_custom_call.1} parent=11 // pred_check
          %p335 = pneg %p156
        $region30: #{tpu_custom_call.1} parent=11 // pred_check_branch
          %337 = sbr.rel (%p335) target = $region32
        $region31: #{tpu_custom_call.1} parent=11 // pred_region
          %s339 = ssub.s32 448, 448
          %340 = vsyncadd [#allocation8], %s339
          %s342 = sshll.u32 [#allocation7], 4
          %s343 = int_to_ptr.vmem [resolvable:$true] %s342
          %345 = dma.hbm_to_vmem [thread:$0]  %s5, 448, %s343, [#allocation8]
        $region32: #{tpu_custom_call.1} parent=11 // pred_fallthru
          _
        // Predicated region
        $region33: #{tpu_custom_call.1} parent=11 // pred_check
          %p346 = pneg %p177
        $region34: #{tpu_custom_call.1} parent=11 // pred_check_branch
          %348 = sbr.rel (%p346) target = $region36
        $region35: #{tpu_custom_call.1} parent=11 // pred_region
          _
        $region36: #{tpu_custom_call.1} parent=11 // pred_fallthru
          _
        // Predicated region
        $region37: #{tpu_custom_call.1} parent=11 // pred_check
          %p349 = pneg %p198
        $region38: #{tpu_custom_call.1} parent=11 // pred_check_branch
          %351 = sbr.rel (%p349) target = $region40
        $region39: #{tpu_custom_call.1} parent=11 // pred_region
          _
        $region40: #{tpu_custom_call.1} parent=11 // pred_fallthru
          _
        // Predicated region
        $region41: #{tpu_custom_call.1} parent=11 // pred_check
          %p352 = pneg %p219
        $region42: #{tpu_custom_call.1} parent=11 // pred_check_branch
          %354 = sbr.rel (%p352) target = $region44
        $region43: #{tpu_custom_call.1} parent=11 // pred_region
          %s356 = ssub.s32 512, 512
          %357 = vsyncadd [#allocation8], %s356
          %s358 = sshll.u32 [#allocation9], 4
          %s359 = int_to_ptr.vmem [resolvable:$true] %s358
          %364 = dma.hbm_to_vmem [thread:$0]  %s8, 512, %s359, [#allocation8], 256, 256, 16
        $region44: #{tpu_custom_call.1} parent=11 // pred_fallthru
          _
        // Predicated region
        $region45: #{tpu_custom_call.1} parent=11 // pred_check
          %p365 = pneg %p240
        $region46: #{tpu_custom_call.1} parent=11 // pred_check_branch
          %367 = sbr.rel (%p365) target = $region48
        $region47: #{tpu_custom_call.1} parent=11 // pred_region
          _
        $region48: #{tpu_custom_call.1} parent=11 // pred_fallthru
          _
        // Predicated region
        $region49: #{tpu_custom_call.1} parent=11 // pred_check
          %p368 = pneg %p261
        $region50: #{tpu_custom_call.1} parent=11 // pred_check_branch
          %370 = sbr.rel (%p368) target = $region52
        $region51: #{tpu_custom_call.1} parent=11 // pred_region
          _
        $region52: #{tpu_custom_call.1} parent=11 // pred_fallthru
          _
        // Predicated region
        $region53: #{tpu_custom_call.1} parent=11 // pred_check
          %p371 = pneg %p282
        $region54: #{tpu_custom_call.1} parent=11 // pred_check_branch
          %373 = sbr.rel (%p371) target = $region56
        $region55: #{tpu_custom_call.1} parent=11 // pred_region
          _
        $region56: #{tpu_custom_call.1} parent=11 // pred_fallthru
          _
      $region12: #{tpu_custom_call.1} parent=5 // pred_fallthru
        _
      %p374 = scmp.lt.s32.totalorder %s25, 2
      // Predicated region
      $region57: #{tpu_custom_call.1} parent=5 // pred_check
        %p375 = pneg %p374
      $region58: #{tpu_custom_call.1} parent=5 // pred_check_branch
        %377 = sbr.rel (%p375) target = $region60
      $region59: #{tpu_custom_call.1} parent=5 // pred_region
        // Predicated region
        $region61: #{tpu_custom_call.1} parent=59 // pred_check
          %p378 = pneg %p45
        $region62: #{tpu_custom_call.1} parent=59 // pred_check_branch
          %380 = sbr.rel (%p378) target = $region64
        $region63: #{tpu_custom_call.1} parent=59 // pred_region
          %s381 = sand.u32 %s35, 1
          %s382 = scalar_lea.sflag [#allocation5], %s381
          %s383 = sand.u32 %s35, 1
          %s384 = smul.addr %s383, 32
          %s385 = scalar_lea.vmem [#allocation4], %s384
          %s387 = ssub.s32 512, 512
          %388 = vsyncadd %s382, %s387
          %s389 = smul.addr %s25, 4
          %s390 = smul.addr %s389, 128
          %s391 = scalar_lea.hbm %s0, %s390
          %s392 = sshll.u32 %s385, 4
          %s393 = int_to_ptr.vmem [resolvable:$true] %s392
          %398 = dma.hbm_to_vmem [thread:$0]  %s391, 512, %s393, %s382, 256, 256, 16
        $region64: #{tpu_custom_call.1} parent=59 // pred_fallthru
          _
      $region60: #{tpu_custom_call.1} parent=5 // pred_fallthru
        _
      %p399 = scmp.le.s32.totalorder 1, %s25
      %p400 = scmp.lt.s32.totalorder %s25, 3
      %p401 = pnand %p399, %p400
      %p402 = pneg %p401
      // Predicated region
      $region65: #{tpu_custom_call.1} parent=5 // pred_check
        _
      $region66: #{tpu_custom_call.1} parent=5 // pred_check_branch
        %404 = sbr.rel (%p401) target = $region68
      $region67: #{tpu_custom_call.1} parent=5 // pred_region
        %s405 = ssub.s32 %s25, 1
        %s406 = sand.u32 %s38, 1
        %s407 = scalar_lea.sflag [#allocation5], %s406
        %s408 = sand.u32 %s38, 1
        %s409 = smul.addr %s408, 32
        %s410 = scalar_lea.vmem [#allocation4], %s409
        // Predicated region
        $region69: #{tpu_custom_call.1} parent=67 // pred_check
          %p411 = pneg %p51
        $region70: #{tpu_custom_call.1} parent=67 // pred_check_branch
          %413 = sbr.rel (%p411) target = $region72
        $region71: #{tpu_custom_call.1} parent=67 // pred_region
          %414 = dma.done %s407, 512
        $region72: #{tpu_custom_call.1} parent=67 // pred_fallthru
          _
        // Predicated region
        $region73: #{tpu_custom_call.1} parent=67 // pred_check
          %p415 = pneg %p156
        $region74: #{tpu_custom_call.1} parent=67 // pred_check_branch
          %417 = sbr.rel (%p415) target = $region76
        $region75: #{tpu_custom_call.1} parent=67 // pred_region
          %418 = dma.done [#allocation8], 448
        $region76: #{tpu_custom_call.1} parent=67 // pred_fallthru
          _
        // Predicated region
        $region77: #{tpu_custom_call.1} parent=67 // pred_check
          %p419 = pneg %p219
        $region78: #{tpu_custom_call.1} parent=67 // pred_check_branch
          %421 = sbr.rel (%p419) target = $region80
        $region79: #{tpu_custom_call.1} parent=67 // pred_region
          %422 = dma.done [#allocation8], 512
        $region80: #{tpu_custom_call.1} parent=67 // pred_fallthru
          _
        %s423 = sand.u32 %s38, 1
        %s424 = scalar_lea.sflag [#allocation5], %s423
        %s425 = sand.u32 %s38, 1
        %s426 = smul.addr %s425, 32
        %s427 = scalar_lea.vmem [#allocation4], %s426
        %p428 = pneg %p51
        %p429 = pneg %p48
        %p430 = pneg %p72
        %p431 = pneg %p69
        %p432 = pneg %p93
        %p433 = pneg %p90
        %p434 = pneg %p114
        %p435 = pneg %p111
        %p436 = pneg %p135
        %p437 = pneg %p132
        %p438 = pneg %p156
        %p439 = pneg %p153
        %p440 = pneg %p177
        %p441 = pneg %p174
        %p442 = pneg %p198
        %p443 = pneg %p195
        %p444 = pneg %p219
        %p445 = pneg %p216
        %p446 = pneg %p240
        %p447 = pneg %p237
        %p448 = pneg %p261
        %p449 = pneg %p258
        %p450 = pneg %p282
        %p451 = pneg %p279
        %p452 = pneg %p308
        %p453 = pneg %p305
        %s454 = sand.u32 %s295, 1
        %s455 = scalar_lea.sflag [#allocation6], %s454
        %s456 = sand.u32 %s295, 1
        %s457 = smul.addr %s456, 32
        %s458 = scalar_lea.vmem [#allocation10], %s457
        %v459 = vld [vmem:[%s410] sm:$0xff]
        %v460 = vld [vmem:[%s410 + $0x8] sm:$0xff]
        %v461 = vld [vmem:[%s410 + $0x10] sm:$0xff]
        %v462 = vld [vmem:[%s410 + $0x18] sm:$0xff]
        %v463 = vld [vmem:[%s1] sm:$0xf]
        %v464 = vld [vmem:[%s2] sm:$0xf]
        %466 = vset.pattern.permute.xlu0 0
        %467 = vperm.xlu0 %466, %v464
        %v468 = vpop.permute.xlu0 %467
        %vm470 = vcmask 130048
        %v472 = vsel %vm470, %v463, 0
        %474 = vmatprep.subr.mxu0 %v460
        %475 = vmatpush1.msra.mxu0 %v459
        %476 = vmatprep.subr.mxu0 %v462
        %477 = vmatpush1.msra.mxu0 %v461
        %478 = vmatprep.subr.mxu0 0.0
        %479 = vmatpush1.msra.mxu0 0.0
        %480 = vmatprep.subr.mxu0 0.0
        %481 = vmatpush1.msra.mxu0 0.0
        %482 = vmatprep.subr.mxu0 0.0
        %483 = vmatpush1.msra.mxu0 0.0
        %484 = vmatprep.subr.mxu0 0.0
        %485 = vmatpush1.msra.mxu0 0.0
        %486 = vmatprep.subr.mxu0 0.0
        %487 = vmatpush1.msra.mxu0 0.0
        %488 = vmatprep.subr.mxu0 0.0
        %489 = vmatpush1.msra.mxu0 0.0
        %490 = vmatprep.subr.mxu0 0.0
        %491 = vmatpush1.msra.mxu0 0.0
        %492 = vmatprep.subr.mxu0 0.0
        %493 = vmatpush1.msra.mxu0 0.0
        %494 = vmatprep.subr.mxu0 0.0
        %495 = vmatpush1.msra.mxu0 0.0
        %496 = vmatprep.subr.mxu0 0.0
        %497 = vmatpush1.msra.mxu0 0.0
        %498 = vmatprep.subr.mxu0 0.0
        %499 = vmatpush1.msra.mxu0 0.0
        %500 = vmatprep.subr.mxu0 0.0
        %501 = vmatpush1.msra.mxu0 0.0
        %502 = vmatprep.subr.mxu0 0.0
        %503 = vmatpush1.msra.mxu0 0.0
        %504 = vmatprep.subr.mxu0 0.0
        %505 = vmatpush1.msra.mxu0 0.0
        %506 = vmatprep.subr.mxu0 0.0
        %507 = vmatpush1.msra.mxu0 0.0
        %508 = vmatprep.subr.mxu0 0.0
        %509 = vmatpush1.msra.mxu0 0.0
        %510 = vmatprep.subr.mxu0 0.0
        %511 = vmatpush1.msra.mxu0 0.0
        %512 = vmatprep.subr.mxu0 0.0
        %513 = vmatpush1.msra.mxu0 0.0
        %514 = vmatprep.subr.mxu0 0.0
        %515 = vmatpush1.msra.mxu0 0.0
        %516 = vmatprep.subr.mxu0 0.0
        %517 = vmatpush1.msra.mxu0 0.0
        %518 = vmatprep.subr.mxu0 0.0
        %519 = vmatpush1.msra.mxu0 0.0
        %520 = vmatprep.subr.mxu0 0.0
        %521 = vmatpush1.msra.mxu0 0.0
        %522 = vmatprep.subr.mxu0 0.0
        %523 = vmatpush1.msra.mxu0 0.0
        %524 = vmatprep.subr.mxu0 0.0
        %525 = vmatpush1.msra.mxu0 0.0
        %526 = vmatprep.subr.mxu0 0.0
        %527 = vmatpush1.msra.mxu0 0.0
        %528 = vmatprep.subr.mxu0 0.0
        %529 = vmatpush1.msra.mxu0 0.0
        %530 = vmatprep.subr.mxu0 0.0
        %531 = vmatpush1.msra.mxu0 0.0
        %532 = vmatprep.subr.mxu0 0.0
        %533 = vmatpush1.msra.mxu0 0.0
        %534 = vmatprep.subr.mxu0 0.0
        %535 = vmatpush1.msra.mxu0 0.0
        %536 = vmatprep.subr.mxu0 0.0
        %537 = vmatpush1.msra.mxu0 0.0
        %538 = vmatprep.mubr.f32.mxu0 0.0
        %539 = vmatmul.mubr.f32.gmra.mrb[0].mxu0 %v472
        %v540 = vpop.f32.mrb[0].mxu0
        %v541 = vadd.f32 %v468, %v540
        %v542 = vpop.f32.mrb[0].mxu0
        %v543 = vadd.f32 %v468, %v542
        %544 = vdwg.mxu0
        %v545 = vmax.f32 %v541, 0.0
        %v546 = vmax.f32 %v543, 0.0
        %v547 = vld [vmem:[%s3] sm:$0xff]
        %v548 = vld [vmem:[%s3 + $0x8] sm:$0xff]
        %v549 = vld [vmem:[%s4] sm:$0xff]
        %v550 = vld [vmem:[%s4 + $0x8] sm:$0xff]
        %552 = vset.pattern.permute.xlu0 0
        %553 = vperm.xlu0 %552, %v549
        %v554 = vpop.permute.xlu0 %553
        %557 = vset.pattern.permute.xlu0 0
        %558 = vperm.xlu0 %557, %v550
        %v559 = vpop.permute.xlu0 %558
        %vm561 = vcmask 31744
        %v563 = vsel %vm561, %v547, 0
        %v566 = vsel %vm561, %v548, 0
        %vm568 = vcmask 1043456
        %v570 = vsel %vm568, %v545, 0
        %v573 = vsel %vm568, %v546, 0
        %575 = vmatprep.subr.mxu0 %v573
        %576 = vmatpush1.msra.mxu0 %v570
        %577 = vmatprep.subr.mxu0 0.0
        %578 = vmatpush1.msra.mxu0 0.0
        %579 = vmatprep.subr.mxu0 0.0
        %580 = vmatpush1.msra.mxu0 0.0
        %581 = vmatprep.subr.mxu0 0.0
        %582 = vmatpush1.msra.mxu0 0.0
        %583 = vmatprep.subr.mxu0 0.0
        %584 = vmatpush1.msra.mxu0 0.0
        %585 = vmatprep.subr.mxu0 0.0
        %586 = vmatpush1.msra.mxu0 0.0
        %587 = vmatprep.subr.mxu0 0.0
        %588 = vmatpush1.msra.mxu0 0.0
        %589 = vmatprep.subr.mxu0 0.0
        %590 = vmatpush1.msra.mxu0 0.0
        %591 = vmatprep.subr.mxu0 0.0
        %592 = vmatpush1.msra.mxu0 0.0
        %593 = vmatprep.subr.mxu0 0.0
        %594 = vmatpush1.msra.mxu0 0.0
        %595 = vmatprep.subr.mxu0 0.0
        %596 = vmatpush1.msra.mxu0 0.0
        %597 = vmatprep.subr.mxu0 0.0
        %598 = vmatpush1.msra.mxu0 0.0
        %599 = vmatprep.subr.mxu0 0.0
        %600 = vmatpush1.msra.mxu0 0.0
        %601 = vmatprep.subr.mxu0 0.0
        %602 = vmatpush1.msra.mxu0 0.0
        %603 = vmatprep.subr.mxu0 0.0
        %604 = vmatpush1.msra.mxu0 0.0
        %605 = vmatprep.subr.mxu0 0.0
        %606 = vmatpush1.msra.mxu0 0.0
        %607 = vmatprep.subr.mxu0 0.0
        %608 = vmatpush1.msra.mxu0 0.0
        %609 = vmatprep.subr.mxu0 0.0
        %610 = vmatpush1.msra.mxu0 0.0
        %611 = vmatprep.subr.mxu0 0.0
        %612 = vmatpush1.msra.mxu0 0.0
        %613 = vmatprep.subr.mxu0 0.0
        %614 = vmatpush1.msra.mxu0 0.0
        %615 = vmatprep.subr.mxu0 0.0
        %616 = vmatpush1.msra.mxu0 0.0
        %617 = vmatprep.subr.mxu0 0.0
        %618 = vmatpush1.msra.mxu0 0.0
        %619 = vmatprep.subr.mxu0 0.0
        %620 = vmatpush1.msra.mxu0 0.0
        %621 = vmatprep.subr.mxu0 0.0
        %622 = vmatpush1.msra.mxu0 0.0
        %623 = vmatprep.subr.mxu0 0.0
        %624 = vmatpush1.msra.mxu0 0.0
        %625 = vmatprep.subr.mxu0 0.0
        %626 = vmatpush1.msra.mxu0 0.0
        %627 = vmatprep.subr.mxu0 0.0
        %628 = vmatpush1.msra.mxu0 0.0
        %629 = vmatprep.subr.mxu0 0.0
        %630 = vmatpush1.msra.mxu0 0.0
        %631 = vmatprep.subr.mxu0 0.0
        %632 = vmatpush1.msra.mxu0 0.0
        %633 = vmatprep.subr.mxu0 0.0
        %634 = vmatpush1.msra.mxu0 0.0
        %635 = vmatprep.subr.mxu0 0.0
        %636 = vmatpush1.msra.mxu0 0.0
        %637 = vmatprep.subr.mxu0 0.0
        %638 = vmatpush1.msra.mxu0 0.0
        %639 = vmatprep.mubr.f32.mxu0 0.0
        %640 = vmatmul.mubr.f32.gmra.mrb[0].mxu0 %v563
        %v641 = vpop.f32.mrb[0].mxu0
        %v642 = vadd.f32 %v554, %v641
        %v643 = vpop.f32.mrb[0].mxu0
        %v644 = vadd.f32 %v554, %v643
        %645 = vmatprep.mubr.f32.mxu0 0.0
        %646 = vmatmul.mubr.f32.gmra.mrb[0].mxu0 %v566
        %v647 = vpop.f32.mrb[0].mxu0
        %v648 = vadd.f32 %v559, %v647
        %v649 = vpop.f32.mrb[0].mxu0
        %v650 = vadd.f32 %v559, %v649
        %651 = vdwg.mxu0
        %v652 = vmul.f32 %v459, %v642
        %v653 = vmul.f32 %v460, %v644
        %v654 = vmul.f32 %v461, %v648
        %v655 = vmul.f32 %v462, %v650
        %656 = vrot.lane.b32.xlu0 %v652, 51
        %v657 = vpop.permute.xlu0 %656
        %658 = vrot.lane.b32.xlu0 %v654, 51
        %v659 = vpop.permute.xlu0 %658
        %660 = vrot.lane.b32.xlu0 %v653, 51
        %v661 = vpop.permute.xlu0 %660
        %662 = vrot.lane.b32.xlu0 %v655, 51
        %v663 = vpop.permute.xlu0 %662
        %v664 = vlaneseq
        %v665 = vand.u32 %v664, 127
        %vm666 = vcmp.lt.s32.totalorder %v665, 51
        %v667 = vsel %vm666, %v657, %v661
        %v668 = vsel %vm666, %v659, %v663
        %v669 = vsel %vm666, %v661, %v657
        %v670 = vsel %vm666, %v663, %v659
        %v671 = vld [vmem:[%s11] ss:$8 sm:$0x3]
        %v673 = vlaneseq
        %v674 = vshrl.u32 %v673, 7
        %v675 = vsub.s32 0, %v674
        %v676 = vrot.slane %v671, %v675
        %v677 = vlaneseq
        %v678 = vshrl.u32 %v677, 7
        %v679 = vsub.s32 1, %v678
        %v680 = vrot.slane %v671, %v679
        %v683 = vmul.f32 %v669, %v676
        %v684 = vmul.f32 %v667, %v680
        %v685 = vmul.f32 %v670, %v676
        %v686 = vmul.f32 %v668, %v680
        %687 = vst [vmem:[#allocation2] sm:$0xff] %v683
        %688 = vst [vmem:[#allocation2 + $0x8] sm:$0xff] %v684
        %689 = vst [vmem:[#allocation2 + $0x10] sm:$0xff] %v685
        %690 = vst [vmem:[#allocation2 + $0x18] sm:$0xff] %v686
        %691 = vrot.lane.b32.xlu0 %v652, 50
        %v692 = vpop.permute.xlu0 %691
        %693 = vrot.lane.b32.xlu0 %v654, 50
        %v694 = vpop.permute.xlu0 %693
        %695 = vrot.lane.b32.xlu0 %v653, 50
        %v696 = vpop.permute.xlu0 %695
        %697 = vrot.lane.b32.xlu0 %v655, 50
        %v698 = vpop.permute.xlu0 %697
        %vm699 = vcmp.lt.s32.totalorder %v665, 50
        %v700 = vsel %vm699, %v692, %v696
        %v701 = vsel %vm699, %v694, %v698
        %v702 = vsel %vm699, %v696, %v692
        %v703 = vsel %vm699, %v698, %v694
        %s704 = scalar_lea.vmem %s11, 1
        %v705 = vld [vmem:[%s704] ss:$8 sm:$0x3]
        %v707 = vlaneseq
        %v708 = vshrl.u32 %v707, 7
        %v709 = vsub.s32 0, %v708
        %v710 = vrot.slane %v705, %v709
        %v711 = vlaneseq
        %v712 = vshrl.u32 %v711, 7
        %v713 = vsub.s32 1, %v712
        %v714 = vrot.slane %v705, %v713
        %v717 = vmul.f32 %v702, %v710
        %v718 = vmul.f32 %v700, %v714
        %v719 = vmul.f32 %v703, %v710
        %v720 = vmul.f32 %v701, %v714
        %721 = vst [vmem:[#allocation2 + $0x20] sm:$0xff] %v717
        %722 = vst [vmem:[#allocation2 + $0x28] sm:$0xff] %v718
        %723 = vst [vmem:[#allocation2 + $0x30] sm:$0xff] %v719
        %724 = vst [vmem:[#allocation2 + $0x38] sm:$0xff] %v720
        %725 = vrot.lane.b32.xlu0 %v652, 49
        %v726 = vpop.permute.xlu0 %725
        %727 = vrot.lane.b32.xlu0 %v654, 49
        %v728 = vpop.permute.xlu0 %727
        %729 = vrot.lane.b32.xlu0 %v653, 49
        %v730 = vpop.permute.xlu0 %729
        %731 = vrot.lane.b32.xlu0 %v655, 49
        %v732 = vpop.permute.xlu0 %731
        %vm733 = vcmp.lt.s32.totalorder %v665, 49
        %v734 = vsel %vm733, %v726, %v730
        %v735 = vsel %vm733, %v728, %v732
        %v736 = vsel %vm733, %v730, %v726
        %v737 = vsel %vm733, %v732, %v728
        %s738 = scalar_lea.vmem %s11, 2
        %v739 = vld [vmem:[%s738] ss:$8 sm:$0x3]
        %v741 = vlaneseq
        %v742 = vshrl.u32 %v741, 7
        %v743 = vsub.s32 0, %v742
        %v744 = vrot.slane %v739, %v743
        %v745 = vlaneseq
        %v746 = vshrl.u32 %v745, 7
        %v747 = vsub.s32 1, %v746
        %v748 = vrot.slane %v739, %v747
        %v751 = vmul.f32 %v736, %v744
        %v752 = vmul.f32 %v734, %v748
        %v753 = vmul.f32 %v737, %v744
        %v754 = vmul.f32 %v735, %v748
        %755 = vst [vmem:[#allocation2 + $0x40] sm:$0xff] %v751
        %756 = vst [vmem:[#allocation2 + $0x48] sm:$0xff] %v752
        %757 = vst [vmem:[#allocation2 + $0x50] sm:$0xff] %v753
        %758 = vst [vmem:[#allocation2 + $0x58] sm:$0xff] %v754
        %759 = vrot.lane.b32.xlu0 %v652, 48
        %v760 = vpop.permute.xlu0 %759
        %761 = vrot.lane.b32.xlu0 %v654, 48
        %v762 = vpop.permute.xlu0 %761
        %763 = vrot.lane.b32.xlu0 %v653, 48
        %v764 = vpop.permute.xlu0 %763
        %765 = vrot.lane.b32.xlu0 %v655, 48
        %v766 = vpop.permute.xlu0 %765
        %vm767 = vcmp.lt.s32.totalorder %v665, 48
        %v768 = vsel %vm767, %v760, %v764
        %v769 = vsel %vm767, %v762, %v766
        %v770 = vsel %vm767, %v764, %v760
        %v771 = vsel %vm767, %v766, %v762
        %s772 = scalar_lea.vmem %s11, 3
        %v773 = vld [vmem:[%s772] ss:$8 sm:$0x3]
        %v775 = vlaneseq
        %v776 = vshrl.u32 %v775, 7
        %v777 = vsub.s32 0, %v776
        %v778 = vrot.slane %v773, %v777
        %v779 = vlaneseq
        %v780 = vshrl.u32 %v779, 7
        %v781 = vsub.s32 1, %v780
        %v782 = vrot.slane %v773, %v781
        %v785 = vmul.f32 %v770, %v778
        %v786 = vmul.f32 %v768, %v782
        %v787 = vmul.f32 %v771, %v778
        %v788 = vmul.f32 %v769, %v782
        %789 = vst [vmem:[#allocation2 + $0x60] sm:$0xff] %v785
        %790 = vst [vmem:[#allocation2 + $0x68] sm:$0xff] %v786
        %791 = vst [vmem:[#allocation2 + $0x70] sm:$0xff] %v787
        %792 = vst [vmem:[#allocation2 + $0x78] sm:$0xff] %v788
        %793 = vrot.lane.b32.xlu0 %v652, 47
        %v794 = vpop.permute.xlu0 %793
        %795 = vrot.lane.b32.xlu0 %v654, 47
        %v796 = vpop.permute.xlu0 %795
        %797 = vrot.lane.b32.xlu0 %v653, 47
        %v798 = vpop.permute.xlu0 %797
        %799 = vrot.lane.b32.xlu0 %v655, 47
        %v800 = vpop.permute.xlu0 %799
        %vm801 = vcmp.lt.s32.totalorder %v665, 47
        %v802 = vsel %vm801, %v794, %v798
        %v803 = vsel %vm801, %v796, %v800
        %v804 = vsel %vm801, %v798, %v794
        %v805 = vsel %vm801, %v800, %v796
        %s806 = scalar_lea.vmem %s11, 4
        %v807 = vld [vmem:[%s806] ss:$8 sm:$0x3]
        %v809 = vlaneseq
        %v810 = vshrl.u32 %v809, 7
        %v811 = vsub.s32 0, %v810
        %v812 = vrot.slane %v807, %v811
        %v813 = vlaneseq
        %v814 = vshrl.u32 %v813, 7
        %v815 = vsub.s32 1, %v814
        %v816 = vrot.slane %v807, %v815
        %v819 = vmul.f32 %v804, %v812
        %v820 = vmul.f32 %v802, %v816
        %v821 = vmul.f32 %v805, %v812
        %v822 = vmul.f32 %v803, %v816
        %823 = vst [vmem:[#allocation2 + $0x80] sm:$0xff] %v819
        %824 = vst [vmem:[#allocation2 + $0x88] sm:$0xff] %v820
        %825 = vst [vmem:[#allocation2 + $0x90] sm:$0xff] %v821
        %826 = vst [vmem:[#allocation2 + $0x98] sm:$0xff] %v822
        %827 = vrot.lane.b32.xlu0 %v652, 46
        %v828 = vpop.permute.xlu0 %827
        %829 = vrot.lane.b32.xlu0 %v654, 46
        %v830 = vpop.permute.xlu0 %829
        %831 = vrot.lane.b32.xlu0 %v653, 46
        %v832 = vpop.permute.xlu0 %831
        %833 = vrot.lane.b32.xlu0 %v655, 46
        %v834 = vpop.permute.xlu0 %833
        %vm835 = vcmp.lt.s32.totalorder %v665, 46
        %v836 = vsel %vm835, %v828, %v832
        %v837 = vsel %vm835, %v830, %v834
        %v838 = vsel %vm835, %v832, %v828
        %v839 = vsel %vm835, %v834, %v830
        %s840 = scalar_lea.vmem %s11, 5
        %v841 = vld [vmem:[%s840] ss:$8 sm:$0x3]
        %v843 = vlaneseq
        %v844 = vshrl.u32 %v843, 7
        %v845 = vsub.s32 0, %v844
        %v846 = vrot.slane %v841, %v845
        %v847 = vlaneseq
        %v848 = vshrl.u32 %v847, 7
        %v849 = vsub.s32 1, %v848
        %v850 = vrot.slane %v841, %v849
        %v853 = vmul.f32 %v838, %v846
        %v854 = vmul.f32 %v836, %v850
        %v855 = vmul.f32 %v839, %v846
        %v856 = vmul.f32 %v837, %v850
        %857 = vst [vmem:[#allocation2 + $0xa0] sm:$0xff] %v853
        %858 = vst [vmem:[#allocation2 + $0xa8] sm:$0xff] %v854
        %859 = vst [vmem:[#allocation2 + $0xb0] sm:$0xff] %v855
        %860 = vst [vmem:[#allocation2 + $0xb8] sm:$0xff] %v856
        %861 = vrot.lane.b32.xlu0 %v652, 45
        %v862 = vpop.permute.xlu0 %861
        %863 = vrot.lane.b32.xlu0 %v654, 45
        %v864 = vpop.permute.xlu0 %863
        %865 = vrot.lane.b32.xlu0 %v653, 45
        %v866 = vpop.permute.xlu0 %865
        %867 = vrot.lane.b32.xlu0 %v655, 45
        %v868 = vpop.permute.xlu0 %867
        %vm869 = vcmp.lt.s32.totalorder %v665, 45
        %v870 = vsel %vm869, %v862, %v866
        %v871 = vsel %vm869, %v864, %v868
        %v872 = vsel %vm869, %v866, %v862
        %v873 = vsel %vm869, %v868, %v864
        %s874 = scalar_lea.vmem %s11, 6
        %v875 = vld [vmem:[%s874] ss:$8 sm:$0x3]
        %v877 = vlaneseq
        %v878 = vshrl.u32 %v877, 7
        %v879 = vsub.s32 0, %v878
        %v880 = vrot.slane %v875, %v879
        %v881 = vlaneseq
        %v882 = vshrl.u32 %v881, 7
        %v883 = vsub.s32 1, %v882
        %v884 = vrot.slane %v875, %v883
        %v887 = vmul.f32 %v872, %v880
        %v888 = vmul.f32 %v870, %v884
        %v889 = vmul.f32 %v873, %v880
        %v890 = vmul.f32 %v871, %v884
        %891 = vst [vmem:[#allocation2 + $0xc0] sm:$0xff] %v887
        %892 = vst [vmem:[#allocation2 + $0xc8] sm:$0xff] %v888
        %893 = vst [vmem:[#allocation2 + $0xd0] sm:$0xff] %v889
        %894 = vst [vmem:[#allocation2 + $0xd8] sm:$0xff] %v890
        %895 = vrot.lane.b32.xlu0 %v652, 35
        %v896 = vpop.permute.xlu0 %895
        %897 = vrot.lane.b32.xlu0 %v654, 35
        %v898 = vpop.permute.xlu0 %897
        %899 = vrot.lane.b32.xlu0 %v653, 35
        %v900 = vpop.permute.xlu0 %899
        %901 = vrot.lane.b32.xlu0 %v655, 35
        %v902 = vpop.permute.xlu0 %901
        %vm903 = vcmp.lt.s32.totalorder %v665, 35
        %v904 = vsel %vm903, %v896, %v900
        %v905 = vsel %vm903, %v898, %v902
        %v906 = vsel %vm903, %v900, %v896
        %v907 = vsel %vm903, %v902, %v898
        %s908 = scalar_lea.vmem %s11, 7
        %v909 = vld [vmem:[%s908] ss:$8 sm:$0x3]
        %v911 = vlaneseq
        %v912 = vshrl.u32 %v911, 7
        %v913 = vsub.s32 0, %v912
        %v914 = vrot.slane %v909, %v913
        %v915 = vlaneseq
        %v916 = vshrl.u32 %v915, 7
        %v917 = vsub.s32 1, %v916
        %v918 = vrot.slane %v909, %v917
        %v921 = vmul.f32 %v906, %v914
        %v922 = vmul.f32 %v904, %v918
        %v923 = vmul.f32 %v907, %v914
        %v924 = vmul.f32 %v905, %v918
        %925 = vst [vmem:[#allocation2 + $0xe0] sm:$0xff] %v921
        %926 = vst [vmem:[#allocation2 + $0xe8] sm:$0xff] %v922
        %927 = vst [vmem:[#allocation2 + $0xf0] sm:$0xff] %v923
        %928 = vst [vmem:[#allocation2 + $0xf8] sm:$0xff] %v924
        %929 = vrot.lane.b32.xlu0 %v652, 34
        %v930 = vpop.permute.xlu0 %929
        %931 = vrot.lane.b32.xlu0 %v654, 34
        %v932 = vpop.permute.xlu0 %931
        %933 = vrot.lane.b32.xlu0 %v653, 34
        %v934 = vpop.permute.xlu0 %933
        %935 = vrot.lane.b32.xlu0 %v655, 34
        %v936 = vpop.permute.xlu0 %935
        %vm937 = vcmp.lt.s32.totalorder %v665, 34
        %v938 = vsel %vm937, %v930, %v934
        %v939 = vsel %vm937, %v932, %v936
        %v940 = vsel %vm937, %v934, %v930
        %v941 = vsel %vm937, %v936, %v932
        %s942 = scalar_lea.vmem %s11, 16
        %v943 = vld [vmem:[%s942] ss:$8 sm:$0x3]
        %v945 = vlaneseq
        %v946 = vshrl.u32 %v945, 7
        %v947 = vsub.s32 0, %v946
        %v948 = vrot.slane %v943, %v947
        %v949 = vlaneseq
        %v950 = vshrl.u32 %v949, 7
        %v951 = vsub.s32 1, %v950
        %v952 = vrot.slane %v943, %v951
        %v955 = vmul.f32 %v940, %v948
        %v956 = vmul.f32 %v938, %v952
        %v957 = vmul.f32 %v941, %v948
        %v958 = vmul.f32 %v939, %v952
        %959 = vst [vmem:[#allocation2 + $0x100] sm:$0xff] %v955
        %960 = vst [vmem:[#allocation2 + $0x108] sm:$0xff] %v956
        %961 = vst [vmem:[#allocation2 + $0x110] sm:$0xff] %v957
        %962 = vst [vmem:[#allocation2 + $0x118] sm:$0xff] %v958
        %963 = vrot.lane.b32.xlu0 %v652, 33
        %v964 = vpop.permute.xlu0 %963
        %965 = vrot.lane.b32.xlu0 %v654, 33
        %v966 = vpop.permute.xlu0 %965
        %967 = vrot.lane.b32.xlu0 %v653, 33
        %v968 = vpop.permute.xlu0 %967
        %969 = vrot.lane.b32.xlu0 %v655, 33
        %v970 = vpop.permute.xlu0 %969
        %vm971 = vcmp.lt.s32.totalorder %v665, 33
        %v972 = vsel %vm971, %v964, %v968
        %v973 = vsel %vm971, %v966, %v970
        %v974 = vsel %vm971, %v968, %v964
        %v975 = vsel %vm971, %v970, %v966
        %s976 = scalar_lea.vmem %s11, 17
        %v977 = vld [vmem:[%s976] ss:$8 sm:$0x3]
        %v979 = vlaneseq
        %v980 = vshrl.u32 %v979, 7
        %v981 = vsub.s32 0, %v980
        %v982 = vrot.slane %v977, %v981
        %v983 = vlaneseq
        %v984 = vshrl.u32 %v983, 7
        %v985 = vsub.s32 1, %v984
        %v986 = vrot.slane %v977, %v985
        %v989 = vmul.f32 %v974, %v982
        %v990 = vmul.f32 %v972, %v986
        %v991 = vmul.f32 %v975, %v982
        %v992 = vmul.f32 %v973, %v986
        %993 = vst [vmem:[#allocation2 + $0x120] sm:$0xff] %v989
        %994 = vst [vmem:[#allocation2 + $0x128] sm:$0xff] %v990
        %995 = vst [vmem:[#allocation2 + $0x130] sm:$0xff] %v991
        %996 = vst [vmem:[#allocation2 + $0x138] sm:$0xff] %v992
        %997 = vrot.lane.b32.xlu0 %v652, 32
        %v998 = vpop.permute.xlu0 %997
        %999 = vrot.lane.b32.xlu0 %v654, 32
        %v1000 = vpop.permute.xlu0 %999
        %1001 = vrot.lane.b32.xlu0 %v653, 32
        %v1002 = vpop.permute.xlu0 %1001
        %1003 = vrot.lane.b32.xlu0 %v655, 32
        %v1004 = vpop.permute.xlu0 %1003
        %vm1005 = vcmp.lt.s32.totalorder %v665, 32
        %v1006 = vsel %vm1005, %v998, %v1002
        %v1007 = vsel %vm1005, %v1000, %v1004
        %v1008 = vsel %vm1005, %v1002, %v998
        %v1009 = vsel %vm1005, %v1004, %v1000
        %s1010 = scalar_lea.vmem %s11, 18
        %v1011 = vld [vmem:[%s1010] ss:$8 sm:$0x3]
        %v1013 = vlaneseq
        %v1014 = vshrl.u32 %v1013, 7
        %v1015 = vsub.s32 0, %v1014
        %v1016 = vrot.slane %v1011, %v1015
        %v1017 = vlaneseq
        %v1018 = vshrl.u32 %v1017, 7
        %v1019 = vsub.s32 1, %v1018
        %v1020 = vrot.slane %v1011, %v1019
        %v1023 = vmul.f32 %v1008, %v1016
        %v1024 = vmul.f32 %v1006, %v1020
        %v1025 = vmul.f32 %v1009, %v1016
        %v1026 = vmul.f32 %v1007, %v1020
        %1027 = vst [vmem:[#allocation2 + $0x140] sm:$0xff] %v1023
        %1028 = vst [vmem:[#allocation2 + $0x148] sm:$0xff] %v1024
        %1029 = vst [vmem:[#allocation2 + $0x150] sm:$0xff] %v1025
        %1030 = vst [vmem:[#allocation2 + $0x158] sm:$0xff] %v1026
        %1031 = vrot.lane.b32.xlu0 %v652, 31
        %v1032 = vpop.permute.xlu0 %1031
        %1033 = vrot.lane.b32.xlu0 %v654, 31
        %v1034 = vpop.permute.xlu0 %1033
        %1035 = vrot.lane.b32.xlu0 %v653, 31
        %v1036 = vpop.permute.xlu0 %1035
        %1037 = vrot.lane.b32.xlu0 %v655, 31
        %v1038 = vpop.permute.xlu0 %1037
        %vm1039 = vcmp.lt.s32.totalorder %v665, 31
        %v1040 = vsel %vm1039, %v1032, %v1036
        %v1041 = vsel %vm1039, %v1034, %v1038
        %v1042 = vsel %vm1039, %v1036, %v1032
        %v1043 = vsel %vm1039, %v1038, %v1034
        %s1044 = scalar_lea.vmem %s11, 19
        %v1045 = vld [vmem:[%s1044] ss:$8 sm:$0x3]
        %v1047 = vlaneseq
        %v1048 = vshrl.u32 %v1047, 7
        %v1049 = vsub.s32 0, %v1048
        %v1050 = vrot.slane %v1045, %v1049
        %v1051 = vlaneseq
        %v1052 = vshrl.u32 %v1051, 7
        %v1053 = vsub.s32 1, %v1052
        %v1054 = vrot.slane %v1045, %v1053
        %v1057 = vmul.f32 %v1042, %v1050
        %v1058 = vmul.f32 %v1040, %v1054
        %v1059 = vmul.f32 %v1043, %v1050
        %v1060 = vmul.f32 %v1041, %v1054
        %1061 = vst [vmem:[#allocation2 + $0x160] sm:$0xff] %v1057
        %1062 = vst [vmem:[#allocation2 + $0x168] sm:$0xff] %v1058
        %1063 = vst [vmem:[#allocation2 + $0x170] sm:$0xff] %v1059
        %1064 = vst [vmem:[#allocation2 + $0x178] sm:$0xff] %v1060
        %1065 = vrot.lane.b32.xlu0 %v652, 30
        %v1066 = vpop.permute.xlu0 %1065
        %1067 = vrot.lane.b32.xlu0 %v654, 30
        %v1068 = vpop.permute.xlu0 %1067
        %1069 = vrot.lane.b32.xlu0 %v653, 30
        %v1070 = vpop.permute.xlu0 %1069
        %1071 = vrot.lane.b32.xlu0 %v655, 30
        %v1072 = vpop.permute.xlu0 %1071
        %vm1073 = vcmp.lt.s32.totalorder %v665, 30
        %v1074 = vsel %vm1073, %v1066, %v1070
        %v1075 = vsel %vm1073, %v1068, %v1072
        %v1076 = vsel %vm1073, %v1070, %v1066
        %v1077 = vsel %vm1073, %v1072, %v1068
        %s1078 = scalar_lea.vmem %s11, 20
        %v1079 = vld [vmem:[%s1078] ss:$8 sm:$0x3]
        %v1081 = vlaneseq
        %v1082 = vshrl.u32 %v1081, 7
        %v1083 = vsub.s32 0, %v1082
        %v1084 = vrot.slane %v1079, %v1083
        %v1085 = vlaneseq
        %v1086 = vshrl.u32 %v1085, 7
        %v1087 = vsub.s32 1, %v1086
        %v1088 = vrot.slane %v1079, %v1087
        %v1091 = vmul.f32 %v1076, %v1084
        %v1092 = vmul.f32 %v1074, %v1088
        %v1093 = vmul.f32 %v1077, %v1084
        %v1094 = vmul.f32 %v1075, %v1088
        %1095 = vst [vmem:[#allocation2 + $0x180] sm:$0xff] %v1091
        %1096 = vst [vmem:[#allocation2 + $0x188] sm:$0xff] %v1092
        %1097 = vst [vmem:[#allocation2 + $0x190] sm:$0xff] %v1093
        %1098 = vst [vmem:[#allocation2 + $0x198] sm:$0xff] %v1094
        %1099 = vrot.lane.b32.xlu0 %v652, 29
        %v1100 = vpop.permute.xlu0 %1099
        %1101 = vrot.lane.b32.xlu0 %v654, 29
        %v1102 = vpop.permute.xlu0 %1101
        %1103 = vrot.lane.b32.xlu0 %v653, 29
        %v1104 = vpop.permute.xlu0 %1103
        %1105 = vrot.lane.b32.xlu0 %v655, 29
        %v1106 = vpop.permute.xlu0 %1105
        %vm1107 = vcmp.lt.s32.totalorder %v665, 29
        %v1108 = vsel %vm1107, %v1100, %v1104
        %v1109 = vsel %vm1107, %v1102, %v1106
        %v1110 = vsel %vm1107, %v1104, %v1100
        %v1111 = vsel %vm1107, %v1106, %v1102
        %s1112 = scalar_lea.vmem %s11, 21
        %v1113 = vld [vmem:[%s1112] ss:$8 sm:$0x3]
        %v1115 = vlaneseq
        %v1116 = vshrl.u32 %v1115, 7
        %v1117 = vsub.s32 0, %v1116
        %v1118 = vrot.slane %v1113, %v1117
        %v1119 = vlaneseq
        %v1120 = vshrl.u32 %v1119, 7
        %v1121 = vsub.s32 1, %v1120
        %v1122 = vrot.slane %v1113, %v1121
        %v1125 = vmul.f32 %v1110, %v1118
        %v1126 = vmul.f32 %v1108, %v1122
        %v1127 = vmul.f32 %v1111, %v1118
        %v1128 = vmul.f32 %v1109, %v1122
        %1129 = vst [vmem:[#allocation2 + $0x1a0] sm:$0xff] %v1125
        %1130 = vst [vmem:[#allocation2 + $0x1a8] sm:$0xff] %v1126
        %1131 = vst [vmem:[#allocation2 + $0x1b0] sm:$0xff] %v1127
        %1132 = vst [vmem:[#allocation2 + $0x1b8] sm:$0xff] %v1128
        %1133 = vrot.lane.b32.xlu0 %v652, 19
        %v1134 = vpop.permute.xlu0 %1133
        %1135 = vrot.lane.b32.xlu0 %v654, 19
        %v1136 = vpop.permute.xlu0 %1135
        %1137 = vrot.lane.b32.xlu0 %v653, 19
        %v1138 = vpop.permute.xlu0 %1137
        %1139 = vrot.lane.b32.xlu0 %v655, 19
        %v1140 = vpop.permute.xlu0 %1139
        %vm1141 = vcmp.lt.s32.totalorder %v665, 19
        %v1142 = vsel %vm1141, %v1134, %v1138
        %v1143 = vsel %vm1141, %v1136, %v1140
        %v1144 = vsel %vm1141, %v1138, %v1134
        %v1145 = vsel %vm1141, %v1140, %v1136
        %s1146 = scalar_lea.vmem %s11, 22
        %v1147 = vld [vmem:[%s1146] ss:$8 sm:$0x3]
        %v1149 = vlaneseq
        %v1150 = vshrl.u32 %v1149, 7
        %v1151 = vsub.s32 0, %v1150
        %v1152 = vrot.slane %v1147, %v1151
        %v1153 = vlaneseq
        %v1154 = vshrl.u32 %v1153, 7
        %v1155 = vsub.s32 1, %v1154
        %v1156 = vrot.slane %v1147, %v1155
        %v1159 = vmul.f32 %v1144, %v1152
        %v1160 = vmul.f32 %v1142, %v1156
        %v1161 = vmul.f32 %v1145, %v1152
        %v1162 = vmul.f32 %v1143, %v1156
        %1163 = vst [vmem:[#allocation2 + $0x1c0] sm:$0xff] %v1159
        %1164 = vst [vmem:[#allocation2 + $0x1c8] sm:$0xff] %v1160
        %1165 = vst [vmem:[#allocation2 + $0x1d0] sm:$0xff] %v1161
        %1166 = vst [vmem:[#allocation2 + $0x1d8] sm:$0xff] %v1162
        %1167 = vrot.lane.b32.xlu0 %v652, 18
        %v1168 = vpop.permute.xlu0 %1167
        %1169 = vrot.lane.b32.xlu0 %v654, 18
        %v1170 = vpop.permute.xlu0 %1169
        %1171 = vrot.lane.b32.xlu0 %v653, 18
        %v1172 = vpop.permute.xlu0 %1171
        %1173 = vrot.lane.b32.xlu0 %v655, 18
        %v1174 = vpop.permute.xlu0 %1173
        %vm1175 = vcmp.lt.s32.totalorder %v665, 18
        %v1176 = vsel %vm1175, %v1168, %v1172
        %v1177 = vsel %vm1175, %v1170, %v1174
        %v1178 = vsel %vm1175, %v1172, %v1168
        %v1179 = vsel %vm1175, %v1174, %v1170
        %s1180 = scalar_lea.vmem %s11, 23
        %v1181 = vld [vmem:[%s1180] ss:$8 sm:$0x3]
        %v1183 = vlaneseq
        %v1184 = vshrl.u32 %v1183, 7
        %v1185 = vsub.s32 0, %v1184
        %v1186 = vrot.slane %v1181, %v1185
        %v1187 = vlaneseq
        %v1188 = vshrl.u32 %v1187, 7
        %v1189 = vsub.s32 1, %v1188
        %v1190 = vrot.slane %v1181, %v1189
        %v1193 = vmul.f32 %v1178, %v1186
        %v1194 = vmul.f32 %v1176, %v1190
        %v1195 = vmul.f32 %v1179, %v1186
        %v1196 = vmul.f32 %v1177, %v1190
        %1197 = vst [vmem:[#allocation2 + $0x1e0] sm:$0xff] %v1193
        %1198 = vst [vmem:[#allocation2 + $0x1e8] sm:$0xff] %v1194
        %1199 = vst [vmem:[#allocation2 + $0x1f0] sm:$0xff] %v1195
        %1200 = vst [vmem:[#allocation2 + $0x1f8] sm:$0xff] %v1196
        %1201 = vrot.lane.b32.xlu0 %v652, 17
        %v1202 = vpop.permute.xlu0 %1201
        %1203 = vrot.lane.b32.xlu0 %v654, 17
        %v1204 = vpop.permute.xlu0 %1203
        %1205 = vrot.lane.b32.xlu0 %v653, 17
        %v1206 = vpop.permute.xlu0 %1205
        %1207 = vrot.lane.b32.xlu0 %v655, 17
        %v1208 = vpop.permute.xlu0 %1207
        %vm1209 = vcmp.lt.s32.totalorder %v665, 17
        %v1210 = vsel %vm1209, %v1202, %v1206
        %v1211 = vsel %vm1209, %v1204, %v1208
        %v1212 = vsel %vm1209, %v1206, %v1202
        %v1213 = vsel %vm1209, %v1208, %v1204
        %s1214 = scalar_lea.vmem %s11, 32
        %v1215 = vld [vmem:[%s1214] ss:$8 sm:$0x3]
        %v1217 = vlaneseq
        %v1218 = vshrl.u32 %v1217, 7
        %v1219 = vsub.s32 0, %v1218
        %v1220 = vrot.slane %v1215, %v1219
        %v1221 = vlaneseq
        %v1222 = vshrl.u32 %v1221, 7
        %v1223 = vsub.s32 1, %v1222
        %v1224 = vrot.slane %v1215, %v1223
        %v1227 = vmul.f32 %v1212, %v1220
        %v1228 = vmul.f32 %v1210, %v1224
        %v1229 = vmul.f32 %v1213, %v1220
        %v1230 = vmul.f32 %v1211, %v1224
        %1231 = vst [vmem:[#allocation2 + $0x200] sm:$0xff] %v1227
        %1232 = vst [vmem:[#allocation2 + $0x208] sm:$0xff] %v1228
        %1233 = vst [vmem:[#allocation2 + $0x210] sm:$0xff] %v1229
        %1234 = vst [vmem:[#allocation2 + $0x218] sm:$0xff] %v1230
        %1235 = vrot.lane.b32.xlu0 %v652, 16
        %v1236 = vpop.permute.xlu0 %1235
        %1237 = vrot.lane.b32.xlu0 %v654, 16
        %v1238 = vpop.permute.xlu0 %1237
        %1239 = vrot.lane.b32.xlu0 %v653, 16
        %v1240 = vpop.permute.xlu0 %1239
        %1241 = vrot.lane.b32.xlu0 %v655, 16
        %v1242 = vpop.permute.xlu0 %1241
        %vm1243 = vcmp.lt.s32.totalorder %v665, 16
        %v1244 = vsel %vm1243, %v1236, %v1240
        %v1245 = vsel %vm1243, %v1238, %v1242
        %v1246 = vsel %vm1243, %v1240, %v1236
        %v1247 = vsel %vm1243, %v1242, %v1238
        %s1248 = scalar_lea.vmem %s11, 33
        %v1249 = vld [vmem:[%s1248] ss:$8 sm:$0x3]
        %v1251 = vlaneseq
        %v1252 = vshrl.u32 %v1251, 7
        %v1253 = vsub.s32 0, %v1252
        %v1254 = vrot.slane %v1249, %v1253
        %v1255 = vlaneseq
        %v1256 = vshrl.u32 %v1255, 7
        %v1257 = vsub.s32 1, %v1256
        %v1258 = vrot.slane %v1249, %v1257
        %v1261 = vmul.f32 %v1246, %v1254
        %v1262 = vmul.f32 %v1244, %v1258
        %v1263 = vmul.f32 %v1247, %v1254
        %v1264 = vmul.f32 %v1245, %v1258
        %1265 = vst [vmem:[#allocation2 + $0x220] sm:$0xff] %v1261
        %1266 = vst [vmem:[#allocation2 + $0x228] sm:$0xff] %v1262
        %1267 = vst [vmem:[#allocation2 + $0x230] sm:$0xff] %v1263
        %1268 = vst [vmem:[#allocation2 + $0x238] sm:$0xff] %v1264
        %1269 = vrot.lane.b32.xlu0 %v652, 15
        %v1270 = vpop.permute.xlu0 %1269
        %1271 = vrot.lane.b32.xlu0 %v654, 15
        %v1272 = vpop.permute.xlu0 %1271
        %1273 = vrot.lane.b32.xlu0 %v653, 15
        %v1274 = vpop.permute.xlu0 %1273
        %1275 = vrot.lane.b32.xlu0 %v655, 15
        %v1276 = vpop.permute.xlu0 %1275
        %vm1277 = vcmp.lt.s32.totalorder %v665, 15
        %v1278 = vsel %vm1277, %v1270, %v1274
        %v1279 = vsel %vm1277, %v1272, %v1276
        %v1280 = vsel %vm1277, %v1274, %v1270
        %v1281 = vsel %vm1277, %v1276, %v1272
        %s1282 = scalar_lea.vmem %s11, 34
        %v1283 = vld [vmem:[%s1282] ss:$8 sm:$0x3]
        %v1285 = vlaneseq
        %v1286 = vshrl.u32 %v1285, 7
        %v1287 = vsub.s32 0, %v1286
        %v1288 = vrot.slane %v1283, %v1287
        %v1289 = vlaneseq
        %v1290 = vshrl.u32 %v1289, 7
        %v1291 = vsub.s32 1, %v1290
        %v1292 = vrot.slane %v1283, %v1291
        %v1295 = vmul.f32 %v1280, %v1288
        %v1296 = vmul.f32 %v1278, %v1292
        %v1297 = vmul.f32 %v1281, %v1288
        %v1298 = vmul.f32 %v1279, %v1292
        %1299 = vst [vmem:[#allocation2 + $0x240] sm:$0xff] %v1295
        %1300 = vst [vmem:[#allocation2 + $0x248] sm:$0xff] %v1296
        %1301 = vst [vmem:[#allocation2 + $0x250] sm:$0xff] %v1297
        %1302 = vst [vmem:[#allocation2 + $0x258] sm:$0xff] %v1298
        %1303 = vrot.lane.b32.xlu0 %v652, 14
        %v1304 = vpop.permute.xlu0 %1303
        %1305 = vrot.lane.b32.xlu0 %v654, 14
        %v1306 = vpop.permute.xlu0 %1305
        %1307 = vrot.lane.b32.xlu0 %v653, 14
        %v1308 = vpop.permute.xlu0 %1307
        %1309 = vrot.lane.b32.xlu0 %v655, 14
        %v1310 = vpop.permute.xlu0 %1309
        %vm1311 = vcmp.lt.s32.totalorder %v665, 14
        %v1312 = vsel %vm1311, %v1304, %v1308
        %v1313 = vsel %vm1311, %v1306, %v1310
        %v1314 = vsel %vm1311, %v1308, %v1304
        %v1315 = vsel %vm1311, %v1310, %v1306
        %s1316 = scalar_lea.vmem %s11, 35
        %v1317 = vld [vmem:[%s1316] ss:$8 sm:$0x3]
        %v1319 = vlaneseq
        %v1320 = vshrl.u32 %v1319, 7
        %v1321 = vsub.s32 0, %v1320
        %v1322 = vrot.slane %v1317, %v1321
        %v1323 = vlaneseq
        %v1324 = vshrl.u32 %v1323, 7
        %v1325 = vsub.s32 1, %v1324
        %v1326 = vrot.slane %v1317, %v1325
        %v1329 = vmul.f32 %v1314, %v1322
        %v1330 = vmul.f32 %v1312, %v1326
        %v1331 = vmul.f32 %v1315, %v1322
        %v1332 = vmul.f32 %v1313, %v1326
        %1333 = vst [vmem:[#allocation2 + $0x260] sm:$0xff] %v1329
        %1334 = vst [vmem:[#allocation2 + $0x268] sm:$0xff] %v1330
        %1335 = vst [vmem:[#allocation2 + $0x270] sm:$0xff] %v1331
        %1336 = vst [vmem:[#allocation2 + $0x278] sm:$0xff] %v1332
        %1337 = vrot.lane.b32.xlu0 %v652, 13
        %v1338 = vpop.permute.xlu0 %1337
        %1339 = vrot.lane.b32.xlu0 %v654, 13
        %v1340 = vpop.permute.xlu0 %1339
        %1341 = vrot.lane.b32.xlu0 %v653, 13
        %v1342 = vpop.permute.xlu0 %1341
        %1343 = vrot.lane.b32.xlu0 %v655, 13
        %v1344 = vpop.permute.xlu0 %1343
        %vm1345 = vcmp.lt.s32.totalorder %v665, 13
        %v1346 = vsel %vm1345, %v1338, %v1342
        %v1347 = vsel %vm1345, %v1340, %v1344
        %v1348 = vsel %vm1345, %v1342, %v1338
        %v1349 = vsel %vm1345, %v1344, %v1340
        %s1350 = scalar_lea.vmem %s11, 36
        %v1351 = vld [vmem:[%s1350] ss:$8 sm:$0x3]
        %v1353 = vlaneseq
        %v1354 = vshrl.u32 %v1353, 7
        %v1355 = vsub.s32 0, %v1354
        %v1356 = vrot.slane %v1351, %v1355
        %v1357 = vlaneseq
        %v1358 = vshrl.u32 %v1357, 7
        %v1359 = vsub.s32 1, %v1358
        %v1360 = vrot.slane %v1351, %v1359
        %v1363 = vmul.f32 %v1348, %v1356
        %v1364 = vmul.f32 %v1346, %v1360
        %v1365 = vmul.f32 %v1349, %v1356
        %v1366 = vmul.f32 %v1347, %v1360
        %1367 = vst [vmem:[#allocation2 + $0x280] sm:$0xff] %v1363
        %1368 = vst [vmem:[#allocation2 + $0x288] sm:$0xff] %v1364
        %1369 = vst [vmem:[#allocation2 + $0x290] sm:$0xff] %v1365
        %1370 = vst [vmem:[#allocation2 + $0x298] sm:$0xff] %v1366
        %1371 = vrot.lane.b32.xlu0 %v652, 3
        %v1372 = vpop.permute.xlu0 %1371
        %1373 = vrot.lane.b32.xlu0 %v654, 3
        %v1374 = vpop.permute.xlu0 %1373
        %1375 = vrot.lane.b32.xlu0 %v653, 3
        %v1376 = vpop.permute.xlu0 %1375
        %1377 = vrot.lane.b32.xlu0 %v655, 3
        %v1378 = vpop.permute.xlu0 %1377
        %vm1379 = vcmp.lt.s32.totalorder %v665, 3
        %v1380 = vsel %vm1379, %v1372, %v1376
        %v1381 = vsel %vm1379, %v1374, %v1378
        %v1382 = vsel %vm1379, %v1376, %v1372
        %v1383 = vsel %vm1379, %v1378, %v1374
        %s1384 = scalar_lea.vmem %s11, 37
        %v1385 = vld [vmem:[%s1384] ss:$8 sm:$0x3]
        %v1387 = vlaneseq
        %v1388 = vshrl.u32 %v1387, 7
        %v1389 = vsub.s32 0, %v1388
        %v1390 = vrot.slane %v1385, %v1389
        %v1391 = vlaneseq
        %v1392 = vshrl.u32 %v1391, 7
        %v1393 = vsub.s32 1, %v1392
        %v1394 = vrot.slane %v1385, %v1393
        %v1397 = vmul.f32 %v1382, %v1390
        %v1398 = vmul.f32 %v1380, %v1394
        %v1399 = vmul.f32 %v1383, %v1390
        %v1400 = vmul.f32 %v1381, %v1394
        %1401 = vst [vmem:[#allocation2 + $0x2a0] sm:$0xff] %v1397
        %1402 = vst [vmem:[#allocation2 + $0x2a8] sm:$0xff] %v1398
        %1403 = vst [vmem:[#allocation2 + $0x2b0] sm:$0xff] %v1399
        %1404 = vst [vmem:[#allocation2 + $0x2b8] sm:$0xff] %v1400
        %1405 = vrot.lane.b32.xlu0 %v652, 2
        %v1406 = vpop.permute.xlu0 %1405
        %1407 = vrot.lane.b32.xlu0 %v654, 2
        %v1408 = vpop.permute.xlu0 %1407
        %1409 = vrot.lane.b32.xlu0 %v653, 2
        %v1410 = vpop.permute.xlu0 %1409
        %1411 = vrot.lane.b32.xlu0 %v655, 2
        %v1412 = vpop.permute.xlu0 %1411
        %vm1413 = vcmp.lt.s32.totalorder %v665, 2
        %v1414 = vsel %vm1413, %v1406, %v1410
        %v1415 = vsel %vm1413, %v1408, %v1412
        %v1416 = vsel %vm1413, %v1410, %v1406
        %v1417 = vsel %vm1413, %v1412, %v1408
        %s1418 = scalar_lea.vmem %s11, 38
        %v1419 = vld [vmem:[%s1418] ss:$8 sm:$0x3]
        %v1421 = vlaneseq
        %v1422 = vshrl.u32 %v1421, 7
        %v1423 = vsub.s32 0, %v1422
        %v1424 = vrot.slane %v1419, %v1423
        %v1425 = vlaneseq
        %v1426 = vshrl.u32 %v1425, 7
        %v1427 = vsub.s32 1, %v1426
        %v1428 = vrot.slane %v1419, %v1427
        %v1431 = vmul.f32 %v1416, %v1424
        %v1432 = vmul.f32 %v1414, %v1428
        %v1433 = vmul.f32 %v1417, %v1424
        %v1434 = vmul.f32 %v1415, %v1428
        %1435 = vst [vmem:[#allocation2 + $0x2c0] sm:$0xff] %v1431
        %1436 = vst [vmem:[#allocation2 + $0x2c8] sm:$0xff] %v1432
        %1437 = vst [vmem:[#allocation2 + $0x2d0] sm:$0xff] %v1433
        %1438 = vst [vmem:[#allocation2 + $0x2d8] sm:$0xff] %v1434
        %1439 = vrot.lane.b32.xlu0 %v652, 1
        %v1440 = vpop.permute.xlu0 %1439
        %1441 = vrot.lane.b32.xlu0 %v654, 1
        %v1442 = vpop.permute.xlu0 %1441
        %1443 = vrot.lane.b32.xlu0 %v653, 1
        %v1444 = vpop.permute.xlu0 %1443
        %1445 = vrot.lane.b32.xlu0 %v655, 1
        %v1446 = vpop.permute.xlu0 %1445
        %vm1447 = vcmp.lt.s32.totalorder %v665, 1
        %v1448 = vsel %vm1447, %v1440, %v1444
        %v1449 = vsel %vm1447, %v1442, %v1446
        %v1450 = vsel %vm1447, %v1444, %v1440
        %v1451 = vsel %vm1447, %v1446, %v1442
        %s1452 = scalar_lea.vmem %s11, 39
        %v1453 = vld [vmem:[%s1452] ss:$8 sm:$0x3]
        %v1455 = vlaneseq
        %v1456 = vshrl.u32 %v1455, 7
        %v1457 = vsub.s32 0, %v1456
        %v1458 = vrot.slane %v1453, %v1457
        %v1459 = vlaneseq
        %v1460 = vshrl.u32 %v1459, 7
        %v1461 = vsub.s32 1, %v1460
        %v1462 = vrot.slane %v1453, %v1461
        %v1465 = vmul.f32 %v1450, %v1458
        %v1466 = vmul.f32 %v1448, %v1462
        %v1467 = vmul.f32 %v1451, %v1458
        %v1468 = vmul.f32 %v1449, %v1462
        %1469 = vst [vmem:[#allocation2 + $0x2e0] sm:$0xff] %v1465
        %1470 = vst [vmem:[#allocation2 + $0x2e8] sm:$0xff] %v1466
        %1471 = vst [vmem:[#allocation2 + $0x2f0] sm:$0xff] %v1467
        %1472 = vst [vmem:[#allocation2 + $0x2f8] sm:$0xff] %v1468
        %s1473 = scalar_lea.vmem %s11, 48
        %v1474 = vld [vmem:[%s1473] ss:$8 sm:$0x3]
        %v1476 = vlaneseq
        %v1477 = vshrl.u32 %v1476, 7
        %v1478 = vsub.s32 0, %v1477
        %v1479 = vrot.slane %v1474, %v1478
        %v1480 = vlaneseq
        %v1481 = vshrl.u32 %v1480, 7
        %v1482 = vsub.s32 1, %v1481
        %v1483 = vrot.slane %v1474, %v1482
        %v1486 = vmul.f32 %v652, %v1479
        %v1487 = vmul.f32 %v653, %v1483
        %v1488 = vmul.f32 %v654, %v1479
        %v1489 = vmul.f32 %v655, %v1483
        %1490 = vst [vmem:[#allocation2 + $0x300] sm:$0xff] %v1486
        %1491 = vst [vmem:[#allocation2 + $0x308] sm:$0xff] %v1487
        %1492 = vst [vmem:[#allocation2 + $0x310] sm:$0xff] %v1488
        %1493 = vst [vmem:[#allocation2 + $0x318] sm:$0xff] %v1489
        %1494 = vrot.lane.b32.xlu0 %v652, 127
        %v1495 = vpop.permute.xlu0 %1494
        %1496 = vrot.lane.b32.xlu0 %v654, 127
        %v1497 = vpop.permute.xlu0 %1496
        %1498 = vrot.lane.b32.xlu0 %v653, 127
        %v1499 = vpop.permute.xlu0 %1498
        %1500 = vrot.lane.b32.xlu0 %v655, 127
        %v1501 = vpop.permute.xlu0 %1500
        %vm1502 = vcmp.lt.s32.totalorder %v665, 127
        %v1503 = vsel %vm1502, %v1495, %v1499
        %v1504 = vsel %vm1502, %v1497, %v1501
        %v1505 = vsel %vm1502, %v1499, %v1495
        %v1506 = vsel %vm1502, %v1501, %v1497
        %s1507 = scalar_lea.vmem %s11, 49
        %v1508 = vld [vmem:[%s1507] ss:$8 sm:$0x3]
        %v1510 = vlaneseq
        %v1511 = vshrl.u32 %v1510, 7
        %v1512 = vsub.s32 0, %v1511
        %v1513 = vrot.slane %v1508, %v1512
        %v1514 = vlaneseq
        %v1515 = vshrl.u32 %v1514, 7
        %v1516 = vsub.s32 1, %v1515
        %v1517 = vrot.slane %v1508, %v1516
        %v1520 = vmul.f32 %v1503, %v1513
        %v1521 = vmul.f32 %v1505, %v1517
        %v1522 = vmul.f32 %v1504, %v1513
        %v1523 = vmul.f32 %v1506, %v1517
        %1524 = vst [vmem:[#allocation2 + $0x320] sm:$0xff] %v1520
        %1525 = vst [vmem:[#allocation2 + $0x328] sm:$0xff] %v1521
        %1526 = vst [vmem:[#allocation2 + $0x330] sm:$0xff] %v1522
        %1527 = vst [vmem:[#allocation2 + $0x338] sm:$0xff] %v1523
        %1528 = vrot.lane.b32.xlu0 %v652, 126
        %v1529 = vpop.permute.xlu0 %1528
        %1530 = vrot.lane.b32.xlu0 %v654, 126
        %v1531 = vpop.permute.xlu0 %1530
        %1532 = vrot.lane.b32.xlu0 %v653, 126
        %v1533 = vpop.permute.xlu0 %1532
        %1534 = vrot.lane.b32.xlu0 %v655, 126
        %v1535 = vpop.permute.xlu0 %1534
        %vm1536 = vcmp.lt.s32.totalorder %v665, 126
        %v1537 = vsel %vm1536, %v1529, %v1533
        %v1538 = vsel %vm1536, %v1531, %v1535
        %v1539 = vsel %vm1536, %v1533, %v1529
        %v1540 = vsel %vm1536, %v1535, %v1531
        %s1541 = scalar_lea.vmem %s11, 50
        %v1542 = vld [vmem:[%s1541] ss:$8 sm:$0x3]
        %v1544 = vlaneseq
        %v1545 = vshrl.u32 %v1544, 7
        %v1546 = vsub.s32 0, %v1545
        %v1547 = vrot.slane %v1542, %v1546
        %v1548 = vlaneseq
        %v1549 = vshrl.u32 %v1548, 7
        %v1550 = vsub.s32 1, %v1549
        %v1551 = vrot.slane %v1542, %v1550
        %v1554 = vmul.f32 %v1537, %v1547
        %v1555 = vmul.f32 %v1539, %v1551
        %v1556 = vmul.f32 %v1538, %v1547
        %v1557 = vmul.f32 %v1540, %v1551
        %1558 = vst [vmem:[#allocation2 + $0x340] sm:$0xff] %v1554
        %1559 = vst [vmem:[#allocation2 + $0x348] sm:$0xff] %v1555
        %1560 = vst [vmem:[#allocation2 + $0x350] sm:$0xff] %v1556
        %1561 = vst [vmem:[#allocation2 + $0x358] sm:$0xff] %v1557
        %1562 = vrot.lane.b32.xlu0 %v652, 125
        %v1563 = vpop.permute.xlu0 %1562
        %1564 = vrot.lane.b32.xlu0 %v654, 125
        %v1565 = vpop.permute.xlu0 %1564
        %1566 = vrot.lane.b32.xlu0 %v653, 125
        %v1567 = vpop.permute.xlu0 %1566
        %1568 = vrot.lane.b32.xlu0 %v655, 125
        %v1569 = vpop.permute.xlu0 %1568
        %vm1570 = vcmp.lt.s32.totalorder %v665, 125
        %v1571 = vsel %vm1570, %v1563, %v1567
        %v1572 = vsel %vm1570, %v1565, %v1569
        %v1573 = vsel %vm1570, %v1567, %v1563
        %v1574 = vsel %vm1570, %v1569, %v1565
        %s1575 = scalar_lea.vmem %s11, 51
        %v1576 = vld [vmem:[%s1575] ss:$8 sm:$0x3]
        %v1578 = vlaneseq
        %v1579 = vshrl.u32 %v1578, 7
        %v1580 = vsub.s32 0, %v1579
        %v1581 = vrot.slane %v1576, %v1580
        %v1582 = vlaneseq
        %v1583 = vshrl.u32 %v1582, 7
        %v1584 = vsub.s32 1, %v1583
        %v1585 = vrot.slane %v1576, %v1584
        %v1588 = vmul.f32 %v1571, %v1581
        %v1589 = vmul.f32 %v1573, %v1585
        %v1590 = vmul.f32 %v1572, %v1581
        %v1591 = vmul.f32 %v1574, %v1585
        %1592 = vst [vmem:[#allocation2 + $0x360] sm:$0xff] %v1588
        %1593 = vst [vmem:[#allocation2 + $0x368] sm:$0xff] %v1589
        %1594 = vst [vmem:[#allocation2 + $0x370] sm:$0xff] %v1590
        %1595 = vst [vmem:[#allocation2 + $0x378] sm:$0xff] %v1591
        %1596 = vrot.lane.b32.xlu0 %v652, 115
        %v1597 = vpop.permute.xlu0 %1596
        %1598 = vrot.lane.b32.xlu0 %v654, 115
        %v1599 = vpop.permute.xlu0 %1598
        %1600 = vrot.lane.b32.xlu0 %v653, 115
        %v1601 = vpop.permute.xlu0 %1600
        %1602 = vrot.lane.b32.xlu0 %v655, 115
        %v1603 = vpop.permute.xlu0 %1602
        %vm1604 = vcmp.lt.s32.totalorder %v665, 115
        %v1605 = vsel %vm1604, %v1597, %v1601
        %v1606 = vsel %vm1604, %v1599, %v1603
        %v1607 = vsel %vm1604, %v1601, %v1597
        %v1608 = vsel %vm1604, %v1603, %v1599
        %s1609 = scalar_lea.vmem %s11, 52
        %v1610 = vld [vmem:[%s1609] ss:$8 sm:$0x3]
        %v1612 = vlaneseq
        %v1613 = vshrl.u32 %v1612, 7
        %v1614 = vsub.s32 0, %v1613
        %v1615 = vrot.slane %v1610, %v1614
        %v1616 = vlaneseq
        %v1617 = vshrl.u32 %v1616, 7
        %v1618 = vsub.s32 1, %v1617
        %v1619 = vrot.slane %v1610, %v1618
        %v1622 = vmul.f32 %v1605, %v1615
        %v1623 = vmul.f32 %v1607, %v1619
        %v1624 = vmul.f32 %v1606, %v1615
        %v1625 = vmul.f32 %v1608, %v1619
        %1626 = vst [vmem:[#allocation2 + $0x380] sm:$0xff] %v1622
        %1627 = vst [vmem:[#allocation2 + $0x388] sm:$0xff] %v1623
        %1628 = vst [vmem:[#allocation2 + $0x390] sm:$0xff] %v1624
        %1629 = vst [vmem:[#allocation2 + $0x398] sm:$0xff] %v1625
        %1630 = vrot.lane.b32.xlu0 %v652, 114
        %v1631 = vpop.permute.xlu0 %1630
        %1632 = vrot.lane.b32.xlu0 %v654, 114
        %v1633 = vpop.permute.xlu0 %1632
        %1634 = vrot.lane.b32.xlu0 %v653, 114
        %v1635 = vpop.permute.xlu0 %1634
        %1636 = vrot.lane.b32.xlu0 %v655, 114
        %v1637 = vpop.permute.xlu0 %1636
        %vm1638 = vcmp.lt.s32.totalorder %v665, 114
        %v1639 = vsel %vm1638, %v1631, %v1635
        %v1640 = vsel %vm1638, %v1633, %v1637
        %v1641 = vsel %vm1638, %v1635, %v1631
        %v1642 = vsel %vm1638, %v1637, %v1633
        %s1643 = scalar_lea.vmem %s11, 53
        %v1644 = vld [vmem:[%s1643] ss:$8 sm:$0x3]
        %v1646 = vlaneseq
        %v1647 = vshrl.u32 %v1646, 7
        %v1648 = vsub.s32 0, %v1647
        %v1649 = vrot.slane %v1644, %v1648
        %v1650 = vlaneseq
        %v1651 = vshrl.u32 %v1650, 7
        %v1652 = vsub.s32 1, %v1651
        %v1653 = vrot.slane %v1644, %v1652
        %v1656 = vmul.f32 %v1639, %v1649
        %v1657 = vmul.f32 %v1641, %v1653
        %v1658 = vmul.f32 %v1640, %v1649
        %v1659 = vmul.f32 %v1642, %v1653
        %1660 = vst [vmem:[#allocation2 + $0x3a0] sm:$0xff] %v1656
        %1661 = vst [vmem:[#allocation2 + $0x3a8] sm:$0xff] %v1657
        %1662 = vst [vmem:[#allocation2 + $0x3b0] sm:$0xff] %v1658
        %1663 = vst [vmem:[#allocation2 + $0x3b8] sm:$0xff] %v1659
        %1664 = vrot.lane.b32.xlu0 %v652, 113
        %v1665 = vpop.permute.xlu0 %1664
        %1666 = vrot.lane.b32.xlu0 %v654, 113
        %v1667 = vpop.permute.xlu0 %1666
        %1668 = vrot.lane.b32.xlu0 %v653, 113
        %v1669 = vpop.permute.xlu0 %1668
        %1670 = vrot.lane.b32.xlu0 %v655, 113
        %v1671 = vpop.permute.xlu0 %1670
        %vm1672 = vcmp.lt.s32.totalorder %v665, 113
        %v1673 = vsel %vm1672, %v1665, %v1669
        %v1674 = vsel %vm1672, %v1667, %v1671
        %v1675 = vsel %vm1672, %v1669, %v1665
        %v1676 = vsel %vm1672, %v1671, %v1667
        %s1677 = scalar_lea.vmem %s11, 54
        %v1678 = vld [vmem:[%s1677] ss:$8 sm:$0x3]
        %v1680 = vlaneseq
        %v1681 = vshrl.u32 %v1680, 7
        %v1682 = vsub.s32 0, %v1681
        %v1683 = vrot.slane %v1678, %v1682
        %v1684 = vlaneseq
        %v1685 = vshrl.u32 %v1684, 7
        %v1686 = vsub.s32 1, %v1685
        %v1687 = vrot.slane %v1678, %v1686
        %v1690 = vmul.f32 %v1673, %v1683
        %v1691 = vmul.f32 %v1675, %v1687
        %v1692 = vmul.f32 %v1674, %v1683
        %v1693 = vmul.f32 %v1676, %v1687
        %1694 = vst [vmem:[#allocation2 + $0x3c0] sm:$0xff] %v1690
        %1695 = vst [vmem:[#allocation2 + $0x3c8] sm:$0xff] %v1691
        %1696 = vst [vmem:[#allocation2 + $0x3d0] sm:$0xff] %v1692
        %1697 = vst [vmem:[#allocation2 + $0x3d8] sm:$0xff] %v1693
        %1698 = vrot.lane.b32.xlu0 %v652, 112
        %v1699 = vpop.permute.xlu0 %1698
        %1700 = vrot.lane.b32.xlu0 %v654, 112
        %v1701 = vpop.permute.xlu0 %1700
        %1702 = vrot.lane.b32.xlu0 %v653, 112
        %v1703 = vpop.permute.xlu0 %1702
        %1704 = vrot.lane.b32.xlu0 %v655, 112
        %v1705 = vpop.permute.xlu0 %1704
        %vm1706 = vcmp.lt.s32.totalorder %v665, 112
        %v1707 = vsel %vm1706, %v1699, %v1703
        %v1708 = vsel %vm1706, %v1701, %v1705
        %v1709 = vsel %vm1706, %v1703, %v1699
        %v1710 = vsel %vm1706, %v1705, %v1701
        %s1711 = scalar_lea.vmem %s11, 55
        %v1712 = vld [vmem:[%s1711] ss:$8 sm:$0x3]
        %v1714 = vlaneseq
        %v1715 = vshrl.u32 %v1714, 7
        %v1716 = vsub.s32 0, %v1715
        %v1717 = vrot.slane %v1712, %v1716
        %v1718 = vlaneseq
        %v1719 = vshrl.u32 %v1718, 7
        %v1720 = vsub.s32 1, %v1719
        %v1721 = vrot.slane %v1712, %v1720
        %v1724 = vmul.f32 %v1707, %v1717
        %v1725 = vmul.f32 %v1709, %v1721
        %v1726 = vmul.f32 %v1708, %v1717
        %v1727 = vmul.f32 %v1710, %v1721
        %1728 = vst [vmem:[#allocation2 + $0x3e0] sm:$0xff] %v1724
        %1729 = vst [vmem:[#allocation2 + $0x3e8] sm:$0xff] %v1725
        %1730 = vst [vmem:[#allocation2 + $0x3f0] sm:$0xff] %v1726
        %1731 = vst [vmem:[#allocation2 + $0x3f8] sm:$0xff] %v1727
        %1732 = vrot.lane.b32.xlu0 %v652, 111
        %v1733 = vpop.permute.xlu0 %1732
        %1734 = vrot.lane.b32.xlu0 %v654, 111
        %v1735 = vpop.permute.xlu0 %1734
        %1736 = vrot.lane.b32.xlu0 %v653, 111
        %v1737 = vpop.permute.xlu0 %1736
        %1738 = vrot.lane.b32.xlu0 %v655, 111
        %v1739 = vpop.permute.xlu0 %1738
        %vm1740 = vcmp.lt.s32.totalorder %v665, 111
        %v1741 = vsel %vm1740, %v1733, %v1737
        %v1742 = vsel %vm1740, %v1735, %v1739
        %v1743 = vsel %vm1740, %v1737, %v1733
        %v1744 = vsel %vm1740, %v1739, %v1735
        %s1745 = scalar_lea.vmem %s11, 64
        %v1746 = vld [vmem:[%s1745] ss:$8 sm:$0x3]
        %v1748 = vlaneseq
        %v1749 = vshrl.u32 %v1748, 7
        %v1750 = vsub.s32 0, %v1749
        %v1751 = vrot.slane %v1746, %v1750
        %v1752 = vlaneseq
        %v1753 = vshrl.u32 %v1752, 7
        %v1754 = vsub.s32 1, %v1753
        %v1755 = vrot.slane %v1746, %v1754
        %v1758 = vmul.f32 %v1741, %v1751
        %v1759 = vmul.f32 %v1743, %v1755
        %v1760 = vmul.f32 %v1742, %v1751
        %v1761 = vmul.f32 %v1744, %v1755
        %1762 = vst [vmem:[#allocation2 + $0x400] sm:$0xff] %v1758
        %1763 = vst [vmem:[#allocation2 + $0x408] sm:$0xff] %v1759
        %1764 = vst [vmem:[#allocation2 + $0x410] sm:$0xff] %v1760
        %1765 = vst [vmem:[#allocation2 + $0x418] sm:$0xff] %v1761
        %1766 = vrot.lane.b32.xlu0 %v652, 110
        %v1767 = vpop.permute.xlu0 %1766
        %1768 = vrot.lane.b32.xlu0 %v654, 110
        %v1769 = vpop.permute.xlu0 %1768
        %1770 = vrot.lane.b32.xlu0 %v653, 110
        %v1771 = vpop.permute.xlu0 %1770
        %1772 = vrot.lane.b32.xlu0 %v655, 110
        %v1773 = vpop.permute.xlu0 %1772
        %vm1774 = vcmp.lt.s32.totalorder %v665, 110
        %v1775 = vsel %vm1774, %v1767, %v1771
        %v1776 = vsel %vm1774, %v1769, %v1773
        %v1777 = vsel %vm1774, %v1771, %v1767
        %v1778 = vsel %vm1774, %v1773, %v1769
        %s1779 = scalar_lea.vmem %s11, 65
        %v1780 = vld [vmem:[%s1779] ss:$8 sm:$0x3]
        %v1782 = vlaneseq
        %v1783 = vshrl.u32 %v1782, 7
        %v1784 = vsub.s32 0, %v1783
        %v1785 = vrot.slane %v1780, %v1784
        %v1786 = vlaneseq
        %v1787 = vshrl.u32 %v1786, 7
        %v1788 = vsub.s32 1, %v1787
        %v1789 = vrot.slane %v1780, %v1788
        %v1792 = vmul.f32 %v1775, %v1785
        %v1793 = vmul.f32 %v1777, %v1789
        %v1794 = vmul.f32 %v1776, %v1785
        %v1795 = vmul.f32 %v1778, %v1789
        %1796 = vst [vmem:[#allocation2 + $0x420] sm:$0xff] %v1792
        %1797 = vst [vmem:[#allocation2 + $0x428] sm:$0xff] %v1793
        %1798 = vst [vmem:[#allocation2 + $0x430] sm:$0xff] %v1794
        %1799 = vst [vmem:[#allocation2 + $0x438] sm:$0xff] %v1795
        %1800 = vrot.lane.b32.xlu0 %v652, 109
        %v1801 = vpop.permute.xlu0 %1800
        %1802 = vrot.lane.b32.xlu0 %v654, 109
        %v1803 = vpop.permute.xlu0 %1802
        %1804 = vrot.lane.b32.xlu0 %v653, 109
        %v1805 = vpop.permute.xlu0 %1804
        %1806 = vrot.lane.b32.xlu0 %v655, 109
        %v1807 = vpop.permute.xlu0 %1806
        %vm1808 = vcmp.lt.s32.totalorder %v665, 109
        %v1809 = vsel %vm1808, %v1801, %v1805
        %v1810 = vsel %vm1808, %v1803, %v1807
        %v1811 = vsel %vm1808, %v1805, %v1801
        %v1812 = vsel %vm1808, %v1807, %v1803
        %s1813 = scalar_lea.vmem %s11, 66
        %v1814 = vld [vmem:[%s1813] ss:$8 sm:$0x3]
        %v1816 = vlaneseq
        %v1817 = vshrl.u32 %v1816, 7
        %v1818 = vsub.s32 0, %v1817
        %v1819 = vrot.slane %v1814, %v1818
        %v1820 = vlaneseq
        %v1821 = vshrl.u32 %v1820, 7
        %v1822 = vsub.s32 1, %v1821
        %v1823 = vrot.slane %v1814, %v1822
        %v1826 = vmul.f32 %v1809, %v1819
        %v1827 = vmul.f32 %v1811, %v1823
        %v1828 = vmul.f32 %v1810, %v1819
        %v1829 = vmul.f32 %v1812, %v1823
        %1830 = vst [vmem:[#allocation2 + $0x440] sm:$0xff] %v1826
        %1831 = vst [vmem:[#allocation2 + $0x448] sm:$0xff] %v1827
        %1832 = vst [vmem:[#allocation2 + $0x450] sm:$0xff] %v1828
        %1833 = vst [vmem:[#allocation2 + $0x458] sm:$0xff] %v1829
        %1834 = vrot.lane.b32.xlu0 %v652, 99
        %v1835 = vpop.permute.xlu0 %1834
        %1836 = vrot.lane.b32.xlu0 %v654, 99
        %v1837 = vpop.permute.xlu0 %1836
        %1838 = vrot.lane.b32.xlu0 %v653, 99
        %v1839 = vpop.permute.xlu0 %1838
        %1840 = vrot.lane.b32.xlu0 %v655, 99
        %v1841 = vpop.permute.xlu0 %1840
        %vm1842 = vcmp.lt.s32.totalorder %v665, 99
        %v1843 = vsel %vm1842, %v1835, %v1839
        %v1844 = vsel %vm1842, %v1837, %v1841
        %v1845 = vsel %vm1842, %v1839, %v1835
        %v1846 = vsel %vm1842, %v1841, %v1837
        %s1847 = scalar_lea.vmem %s11, 67
        %v1848 = vld [vmem:[%s1847] ss:$8 sm:$0x3]
        %v1850 = vlaneseq
        %v1851 = vshrl.u32 %v1850, 7
        %v1852 = vsub.s32 0, %v1851
        %v1853 = vrot.slane %v1848, %v1852
        %v1854 = vlaneseq
        %v1855 = vshrl.u32 %v1854, 7
        %v1856 = vsub.s32 1, %v1855
        %v1857 = vrot.slane %v1848, %v1856
        %v1860 = vmul.f32 %v1843, %v1853
        %v1861 = vmul.f32 %v1845, %v1857
        %v1862 = vmul.f32 %v1844, %v1853
        %v1863 = vmul.f32 %v1846, %v1857
        %1864 = vst [vmem:[#allocation2 + $0x460] sm:$0xff] %v1860
        %1865 = vst [vmem:[#allocation2 + $0x468] sm:$0xff] %v1861
        %1866 = vst [vmem:[#allocation2 + $0x470] sm:$0xff] %v1862
        %1867 = vst [vmem:[#allocation2 + $0x478] sm:$0xff] %v1863
        %1868 = vrot.lane.b32.xlu0 %v652, 98
        %v1869 = vpop.permute.xlu0 %1868
        %1870 = vrot.lane.b32.xlu0 %v654, 98
        %v1871 = vpop.permute.xlu0 %1870
        %1872 = vrot.lane.b32.xlu0 %v653, 98
        %v1873 = vpop.permute.xlu0 %1872
        %1874 = vrot.lane.b32.xlu0 %v655, 98
        %v1875 = vpop.permute.xlu0 %1874
        %vm1876 = vcmp.lt.s32.totalorder %v665, 98
        %v1877 = vsel %vm1876, %v1869, %v1873
        %v1878 = vsel %vm1876, %v1871, %v1875
        %v1879 = vsel %vm1876, %v1873, %v1869
        %v1880 = vsel %vm1876, %v1875, %v1871
        %s1881 = scalar_lea.vmem %s11, 68
        %v1882 = vld [vmem:[%s1881] ss:$8 sm:$0x3]
        %v1884 = vlaneseq
        %v1885 = vshrl.u32 %v1884, 7
        %v1886 = vsub.s32 0, %v1885
        %v1887 = vrot.slane %v1882, %v1886
        %v1888 = vlaneseq
        %v1889 = vshrl.u32 %v1888, 7
        %v1890 = vsub.s32 1, %v1889
        %v1891 = vrot.slane %v1882, %v1890
        %v1894 = vmul.f32 %v1877, %v1887
        %v1895 = vmul.f32 %v1879, %v1891
        %v1896 = vmul.f32 %v1878, %v1887
        %v1897 = vmul.f32 %v1880, %v1891
        %1898 = vst [vmem:[#allocation2 + $0x480] sm:$0xff] %v1894
        %1899 = vst [vmem:[#allocation2 + $0x488] sm:$0xff] %v1895
        %1900 = vst [vmem:[#allocation2 + $0x490] sm:$0xff] %v1896
        %1901 = vst [vmem:[#allocation2 + $0x498] sm:$0xff] %v1897
        %1902 = vrot.lane.b32.xlu0 %v652, 97
        %v1903 = vpop.permute.xlu0 %1902
        %1904 = vrot.lane.b32.xlu0 %v654, 97
        %v1905 = vpop.permute.xlu0 %1904
        %1906 = vrot.lane.b32.xlu0 %v653, 97
        %v1907 = vpop.permute.xlu0 %1906
        %1908 = vrot.lane.b32.xlu0 %v655, 97
        %v1909 = vpop.permute.xlu0 %1908
        %vm1910 = vcmp.lt.s32.totalorder %v665, 97
        %v1911 = vsel %vm1910, %v1903, %v1907
        %v1912 = vsel %vm1910, %v1905, %v1909
        %v1913 = vsel %vm1910, %v1907, %v1903
        %v1914 = vsel %vm1910, %v1909, %v1905
        %s1915 = scalar_lea.vmem %s11, 69
        %v1916 = vld [vmem:[%s1915] ss:$8 sm:$0x3]
        %v1918 = vlaneseq
        %v1919 = vshrl.u32 %v1918, 7
        %v1920 = vsub.s32 0, %v1919
        %v1921 = vrot.slane %v1916, %v1920
        %v1922 = vlaneseq
        %v1923 = vshrl.u32 %v1922, 7
        %v1924 = vsub.s32 1, %v1923
        %v1925 = vrot.slane %v1916, %v1924
        %v1928 = vmul.f32 %v1911, %v1921
        %v1929 = vmul.f32 %v1913, %v1925
        %v1930 = vmul.f32 %v1912, %v1921
        %v1931 = vmul.f32 %v1914, %v1925
        %1932 = vst [vmem:[#allocation2 + $0x4a0] sm:$0xff] %v1928
        %1933 = vst [vmem:[#allocation2 + $0x4a8] sm:$0xff] %v1929
        %1934 = vst [vmem:[#allocation2 + $0x4b0] sm:$0xff] %v1930
        %1935 = vst [vmem:[#allocation2 + $0x4b8] sm:$0xff] %v1931
        %1936 = vrot.lane.b32.xlu0 %v652, 96
        %v1937 = vpop.permute.xlu0 %1936
        %1938 = vrot.lane.b32.xlu0 %v654, 96
        %v1939 = vpop.permute.xlu0 %1938
        %1940 = vrot.lane.b32.xlu0 %v653, 96
        %v1941 = vpop.permute.xlu0 %1940
        %1942 = vrot.lane.b32.xlu0 %v655, 96
        %v1943 = vpop.permute.xlu0 %1942
        %vm1944 = vcmp.lt.s32.totalorder %v665, 96
        %v1945 = vsel %vm1944, %v1937, %v1941
        %v1946 = vsel %vm1944, %v1939, %v1943
        %v1947 = vsel %vm1944, %v1941, %v1937
        %v1948 = vsel %vm1944, %v1943, %v1939
        %s1949 = scalar_lea.vmem %s11, 70
        %v1950 = vld [vmem:[%s1949] ss:$8 sm:$0x3]
        %v1952 = vlaneseq
        %v1953 = vshrl.u32 %v1952, 7
        %v1954 = vsub.s32 0, %v1953
        %v1955 = vrot.slane %v1950, %v1954
        %v1956 = vlaneseq
        %v1957 = vshrl.u32 %v1956, 7
        %v1958 = vsub.s32 1, %v1957
        %v1959 = vrot.slane %v1950, %v1958
        %v1962 = vmul.f32 %v1945, %v1955
        %v1963 = vmul.f32 %v1947, %v1959
        %v1964 = vmul.f32 %v1946, %v1955
        %v1965 = vmul.f32 %v1948, %v1959
        %1966 = vst [vmem:[#allocation2 + $0x4c0] sm:$0xff] %v1962
        %1967 = vst [vmem:[#allocation2 + $0x4c8] sm:$0xff] %v1963
        %1968 = vst [vmem:[#allocation2 + $0x4d0] sm:$0xff] %v1964
        %1969 = vst [vmem:[#allocation2 + $0x4d8] sm:$0xff] %v1965
        %1970 = vrot.lane.b32.xlu0 %v652, 95
        %v1971 = vpop.permute.xlu0 %1970
        %1972 = vrot.lane.b32.xlu0 %v654, 95
        %v1973 = vpop.permute.xlu0 %1972
        %1974 = vrot.lane.b32.xlu0 %v653, 95
        %v1975 = vpop.permute.xlu0 %1974
        %1976 = vrot.lane.b32.xlu0 %v655, 95
        %v1977 = vpop.permute.xlu0 %1976
        %vm1978 = vcmp.lt.s32.totalorder %v665, 95
        %v1979 = vsel %vm1978, %v1971, %v1975
        %v1980 = vsel %vm1978, %v1973, %v1977
        %v1981 = vsel %vm1978, %v1975, %v1971
        %v1982 = vsel %vm1978, %v1977, %v1973
        %s1983 = scalar_lea.vmem %s11, 71
        %v1984 = vld [vmem:[%s1983] ss:$8 sm:$0x3]
        %v1986 = vlaneseq
        %v1987 = vshrl.u32 %v1986, 7
        %v1988 = vsub.s32 0, %v1987
        %v1989 = vrot.slane %v1984, %v1988
        %v1990 = vlaneseq
        %v1991 = vshrl.u32 %v1990, 7
        %v1992 = vsub.s32 1, %v1991
        %v1993 = vrot.slane %v1984, %v1992
        %v1996 = vmul.f32 %v1979, %v1989
        %v1997 = vmul.f32 %v1981, %v1993
        %v1998 = vmul.f32 %v1980, %v1989
        %v1999 = vmul.f32 %v1982, %v1993
        %2000 = vst [vmem:[#allocation2 + $0x4e0] sm:$0xff] %v1996
        %2001 = vst [vmem:[#allocation2 + $0x4e8] sm:$0xff] %v1997
        %2002 = vst [vmem:[#allocation2 + $0x4f0] sm:$0xff] %v1998
        %2003 = vst [vmem:[#allocation2 + $0x4f8] sm:$0xff] %v1999
        %2004 = vrot.lane.b32.xlu0 %v652, 94
        %v2005 = vpop.permute.xlu0 %2004
        %2006 = vrot.lane.b32.xlu0 %v654, 94
        %v2007 = vpop.permute.xlu0 %2006
        %2008 = vrot.lane.b32.xlu0 %v653, 94
        %v2009 = vpop.permute.xlu0 %2008
        %2010 = vrot.lane.b32.xlu0 %v655, 94
        %v2011 = vpop.permute.xlu0 %2010
        %vm2012 = vcmp.lt.s32.totalorder %v665, 94
        %v2013 = vsel %vm2012, %v2005, %v2009
        %v2014 = vsel %vm2012, %v2007, %v2011
        %v2015 = vsel %vm2012, %v2009, %v2005
        %v2016 = vsel %vm2012, %v2011, %v2007
        %s2017 = scalar_lea.vmem %s11, 80
        %v2018 = vld [vmem:[%s2017] ss:$8 sm:$0x3]
        %v2020 = vlaneseq
        %v2021 = vshrl.u32 %v2020, 7
        %v2022 = vsub.s32 0, %v2021
        %v2023 = vrot.slane %v2018, %v2022
        %v2024 = vlaneseq
        %v2025 = vshrl.u32 %v2024, 7
        %v2026 = vsub.s32 1, %v2025
        %v2027 = vrot.slane %v2018, %v2026
        %v2030 = vmul.f32 %v2013, %v2023
        %v2031 = vmul.f32 %v2015, %v2027
        %v2032 = vmul.f32 %v2014, %v2023
        %v2033 = vmul.f32 %v2016, %v2027
        %2034 = vst [vmem:[#allocation2 + $0x500] sm:$0xff] %v2030
        %2035 = vst [vmem:[#allocation2 + $0x508] sm:$0xff] %v2031
        %2036 = vst [vmem:[#allocation2 + $0x510] sm:$0xff] %v2032
        %2037 = vst [vmem:[#allocation2 + $0x518] sm:$0xff] %v2033
        %2038 = vrot.lane.b32.xlu0 %v652, 93
        %v2039 = vpop.permute.xlu0 %2038
        %2040 = vrot.lane.b32.xlu0 %v654, 93
        %v2041 = vpop.permute.xlu0 %2040
        %2042 = vrot.lane.b32.xlu0 %v653, 93
        %v2043 = vpop.permute.xlu0 %2042
        %2044 = vrot.lane.b32.xlu0 %v655, 93
        %v2045 = vpop.permute.xlu0 %2044
        %vm2046 = vcmp.lt.s32.totalorder %v665, 93
        %v2047 = vsel %vm2046, %v2039, %v2043
        %v2048 = vsel %vm2046, %v2041, %v2045
        %v2049 = vsel %vm2046, %v2043, %v2039
        %v2050 = vsel %vm2046, %v2045, %v2041
        %s2051 = scalar_lea.vmem %s11, 81
        %v2052 = vld [vmem:[%s2051] ss:$8 sm:$0x3]
        %v2054 = vlaneseq
        %v2055 = vshrl.u32 %v2054, 7
        %v2056 = vsub.s32 0, %v2055
        %v2057 = vrot.slane %v2052, %v2056
        %v2058 = vlaneseq
        %v2059 = vshrl.u32 %v2058, 7
        %v2060 = vsub.s32 1, %v2059
        %v2061 = vrot.slane %v2052, %v2060
        %v2064 = vmul.f32 %v2047, %v2057
        %v2065 = vmul.f32 %v2049, %v2061
        %v2066 = vmul.f32 %v2048, %v2057
        %v2067 = vmul.f32 %v2050, %v2061
        %2068 = vst [vmem:[#allocation2 + $0x520] sm:$0xff] %v2064
        %2069 = vst [vmem:[#allocation2 + $0x528] sm:$0xff] %v2065
        %2070 = vst [vmem:[#allocation2 + $0x530] sm:$0xff] %v2066
        %2071 = vst [vmem:[#allocation2 + $0x538] sm:$0xff] %v2067
        %2072 = vrot.lane.b32.xlu0 %v652, 83
        %v2073 = vpop.permute.xlu0 %2072
        %2074 = vrot.lane.b32.xlu0 %v654, 83
        %v2075 = vpop.permute.xlu0 %2074
        %2076 = vrot.lane.b32.xlu0 %v653, 83
        %v2077 = vpop.permute.xlu0 %2076
        %2078 = vrot.lane.b32.xlu0 %v655, 83
        %v2079 = vpop.permute.xlu0 %2078
        %vm2080 = vcmp.lt.s32.totalorder %v665, 83
        %v2081 = vsel %vm2080, %v2073, %v2077
        %v2082 = vsel %vm2080, %v2075, %v2079
        %v2083 = vsel %vm2080, %v2077, %v2073
        %v2084 = vsel %vm2080, %v2079, %v2075
        %s2085 = scalar_lea.vmem %s11, 82
        %v2086 = vld [vmem:[%s2085] ss:$8 sm:$0x3]
        %v2088 = vlaneseq
        %v2089 = vshrl.u32 %v2088, 7
        %v2090 = vsub.s32 0, %v2089
        %v2091 = vrot.slane %v2086, %v2090
        %v2092 = vlaneseq
        %v2093 = vshrl.u32 %v2092, 7
        %v2094 = vsub.s32 1, %v2093
        %v2095 = vrot.slane %v2086, %v2094
        %v2098 = vmul.f32 %v2081, %v2091
        %v2099 = vmul.f32 %v2083, %v2095
        %v2100 = vmul.f32 %v2082, %v2091
        %v2101 = vmul.f32 %v2084, %v2095
        %2102 = vst [vmem:[#allocation2 + $0x540] sm:$0xff] %v2098
        %2103 = vst [vmem:[#allocation2 + $0x548] sm:$0xff] %v2099
        %2104 = vst [vmem:[#allocation2 + $0x550] sm:$0xff] %v2100
        %2105 = vst [vmem:[#allocation2 + $0x558] sm:$0xff] %v2101
        %2106 = vrot.lane.b32.xlu0 %v652, 82
        %v2107 = vpop.permute.xlu0 %2106
        %2108 = vrot.lane.b32.xlu0 %v654, 82
        %v2109 = vpop.permute.xlu0 %2108
        %2110 = vrot.lane.b32.xlu0 %v653, 82
        %v2111 = vpop.permute.xlu0 %2110
        %2112 = vrot.lane.b32.xlu0 %v655, 82
        %v2113 = vpop.permute.xlu0 %2112
        %vm2114 = vcmp.lt.s32.totalorder %v665, 82
        %v2115 = vsel %vm2114, %v2107, %v2111
        %v2116 = vsel %vm2114, %v2109, %v2113
        %v2117 = vsel %vm2114, %v2111, %v2107
        %v2118 = vsel %vm2114, %v2113, %v2109
        %s2119 = scalar_lea.vmem %s11, 83
        %v2120 = vld [vmem:[%s2119] ss:$8 sm:$0x3]
        %v2122 = vlaneseq
        %v2123 = vshrl.u32 %v2122, 7
        %v2124 = vsub.s32 0, %v2123
        %v2125 = vrot.slane %v2120, %v2124
        %v2126 = vlaneseq
        %v2127 = vshrl.u32 %v2126, 7
        %v2128 = vsub.s32 1, %v2127
        %v2129 = vrot.slane %v2120, %v2128
        %v2132 = vmul.f32 %v2115, %v2125
        %v2133 = vmul.f32 %v2117, %v2129
        %v2134 = vmul.f32 %v2116, %v2125
        %v2135 = vmul.f32 %v2118, %v2129
        %2136 = vst [vmem:[#allocation2 + $0x560] sm:$0xff] %v2132
        %2137 = vst [vmem:[#allocation2 + $0x568] sm:$0xff] %v2133
        %2138 = vst [vmem:[#allocation2 + $0x570] sm:$0xff] %v2134
        %2139 = vst [vmem:[#allocation2 + $0x578] sm:$0xff] %v2135
        %2140 = vrot.lane.b32.xlu0 %v652, 81
        %v2141 = vpop.permute.xlu0 %2140
        %2142 = vrot.lane.b32.xlu0 %v654, 81
        %v2143 = vpop.permute.xlu0 %2142
        %2144 = vrot.lane.b32.xlu0 %v653, 81
        %v2145 = vpop.permute.xlu0 %2144
        %2146 = vrot.lane.b32.xlu0 %v655, 81
        %v2147 = vpop.permute.xlu0 %2146
        %vm2148 = vcmp.lt.s32.totalorder %v665, 81
        %v2149 = vsel %vm2148, %v2141, %v2145
        %v2150 = vsel %vm2148, %v2143, %v2147
        %v2151 = vsel %vm2148, %v2145, %v2141
        %v2152 = vsel %vm2148, %v2147, %v2143
        %s2153 = scalar_lea.vmem %s11, 84
        %v2154 = vld [vmem:[%s2153] ss:$8 sm:$0x3]
        %v2156 = vlaneseq
        %v2157 = vshrl.u32 %v2156, 7
        %v2158 = vsub.s32 0, %v2157
        %v2159 = vrot.slane %v2154, %v2158
        %v2160 = vlaneseq
        %v2161 = vshrl.u32 %v2160, 7
        %v2162 = vsub.s32 1, %v2161
        %v2163 = vrot.slane %v2154, %v2162
        %v2166 = vmul.f32 %v2149, %v2159
        %v2167 = vmul.f32 %v2151, %v2163
        %v2168 = vmul.f32 %v2150, %v2159
        %v2169 = vmul.f32 %v2152, %v2163
        %2170 = vst [vmem:[#allocation2 + $0x580] sm:$0xff] %v2166
        %2171 = vst [vmem:[#allocation2 + $0x588] sm:$0xff] %v2167
        %2172 = vst [vmem:[#allocation2 + $0x590] sm:$0xff] %v2168
        %2173 = vst [vmem:[#allocation2 + $0x598] sm:$0xff] %v2169
        %2174 = vrot.lane.b32.xlu0 %v652, 80
        %v2175 = vpop.permute.xlu0 %2174
        %2176 = vrot.lane.b32.xlu0 %v654, 80
        %v2177 = vpop.permute.xlu0 %2176
        %2178 = vrot.lane.b32.xlu0 %v653, 80
        %v2179 = vpop.permute.xlu0 %2178
        %2180 = vrot.lane.b32.xlu0 %v655, 80
        %v2181 = vpop.permute.xlu0 %2180
        %vm2182 = vcmp.lt.s32.totalorder %v665, 80
        %v2183 = vsel %vm2182, %v2175, %v2179
        %v2184 = vsel %vm2182, %v2177, %v2181
        %v2185 = vsel %vm2182, %v2179, %v2175
        %v2186 = vsel %vm2182, %v2181, %v2177
        %s2187 = scalar_lea.vmem %s11, 85
        %v2188 = vld [vmem:[%s2187] ss:$8 sm:$0x3]
        %v2190 = vlaneseq
        %v2191 = vshrl.u32 %v2190, 7
        %v2192 = vsub.s32 0, %v2191
        %v2193 = vrot.slane %v2188, %v2192
        %v2194 = vlaneseq
        %v2195 = vshrl.u32 %v2194, 7
        %v2196 = vsub.s32 1, %v2195
        %v2197 = vrot.slane %v2188, %v2196
        %v2200 = vmul.f32 %v2183, %v2193
        %v2201 = vmul.f32 %v2185, %v2197
        %v2202 = vmul.f32 %v2184, %v2193
        %v2203 = vmul.f32 %v2186, %v2197
        %2204 = vst [vmem:[#allocation2 + $0x5a0] sm:$0xff] %v2200
        %2205 = vst [vmem:[#allocation2 + $0x5a8] sm:$0xff] %v2201
        %2206 = vst [vmem:[#allocation2 + $0x5b0] sm:$0xff] %v2202
        %2207 = vst [vmem:[#allocation2 + $0x5b8] sm:$0xff] %v2203
        %2208 = vrot.lane.b32.xlu0 %v652, 79
        %v2209 = vpop.permute.xlu0 %2208
        %2210 = vrot.lane.b32.xlu0 %v654, 79
        %v2211 = vpop.permute.xlu0 %2210
        %2212 = vrot.lane.b32.xlu0 %v653, 79
        %v2213 = vpop.permute.xlu0 %2212
        %2214 = vrot.lane.b32.xlu0 %v655, 79
        %v2215 = vpop.permute.xlu0 %2214
        %vm2216 = vcmp.lt.s32.totalorder %v665, 79
        %v2217 = vsel %vm2216, %v2209, %v2213
        %v2218 = vsel %vm2216, %v2211, %v2215
        %v2219 = vsel %vm2216, %v2213, %v2209
        %v2220 = vsel %vm2216, %v2215, %v2211
        %s2221 = scalar_lea.vmem %s11, 86
        %v2222 = vld [vmem:[%s2221] ss:$8 sm:$0x3]
        %v2224 = vlaneseq
        %v2225 = vshrl.u32 %v2224, 7
        %v2226 = vsub.s32 0, %v2225
        %v2227 = vrot.slane %v2222, %v2226
        %v2228 = vlaneseq
        %v2229 = vshrl.u32 %v2228, 7
        %v2230 = vsub.s32 1, %v2229
        %v2231 = vrot.slane %v2222, %v2230
        %v2234 = vmul.f32 %v2217, %v2227
        %v2235 = vmul.f32 %v2219, %v2231
        %v2236 = vmul.f32 %v2218, %v2227
        %v2237 = vmul.f32 %v2220, %v2231
        %2238 = vst [vmem:[#allocation2 + $0x5c0] sm:$0xff] %v2234
        %2239 = vst [vmem:[#allocation2 + $0x5c8] sm:$0xff] %v2235
        %2240 = vst [vmem:[#allocation2 + $0x5d0] sm:$0xff] %v2236
        %2241 = vst [vmem:[#allocation2 + $0x5d8] sm:$0xff] %v2237
        %2242 = vrot.lane.b32.xlu0 %v652, 78
        %v2243 = vpop.permute.xlu0 %2242
        %2244 = vrot.lane.b32.xlu0 %v654, 78
        %v2245 = vpop.permute.xlu0 %2244
        %2246 = vrot.lane.b32.xlu0 %v653, 78
        %v2247 = vpop.permute.xlu0 %2246
        %2248 = vrot.lane.b32.xlu0 %v655, 78
        %v2249 = vpop.permute.xlu0 %2248
        %vm2250 = vcmp.lt.s32.totalorder %v665, 78
        %v2251 = vsel %vm2250, %v2243, %v2247
        %v2252 = vsel %vm2250, %v2245, %v2249
        %v2253 = vsel %vm2250, %v2247, %v2243
        %v2254 = vsel %vm2250, %v2249, %v2245
        %s2255 = scalar_lea.vmem %s11, 87
        %v2256 = vld [vmem:[%s2255] ss:$8 sm:$0x3]
        %v2258 = vlaneseq
        %v2259 = vshrl.u32 %v2258, 7
        %v2260 = vsub.s32 0, %v2259
        %v2261 = vrot.slane %v2256, %v2260
        %v2262 = vlaneseq
        %v2263 = vshrl.u32 %v2262, 7
        %v2264 = vsub.s32 1, %v2263
        %v2265 = vrot.slane %v2256, %v2264
        %v2268 = vmul.f32 %v2251, %v2261
        %v2269 = vmul.f32 %v2253, %v2265
        %v2270 = vmul.f32 %v2252, %v2261
        %v2271 = vmul.f32 %v2254, %v2265
        %2272 = vst [vmem:[#allocation2 + $0x5e0] sm:$0xff] %v2268
        %2273 = vst [vmem:[#allocation2 + $0x5e8] sm:$0xff] %v2269
        %2274 = vst [vmem:[#allocation2 + $0x5f0] sm:$0xff] %v2270
        %2275 = vst [vmem:[#allocation2 + $0x5f8] sm:$0xff] %v2271
        %2276 = vrot.lane.b32.xlu0 %v652, 77
        %v2277 = vpop.permute.xlu0 %2276
        %2278 = vrot.lane.b32.xlu0 %v654, 77
        %v2279 = vpop.permute.xlu0 %2278
        %2280 = vrot.lane.b32.xlu0 %v653, 77
        %v2281 = vpop.permute.xlu0 %2280
        %2282 = vrot.lane.b32.xlu0 %v655, 77
        %v2283 = vpop.permute.xlu0 %2282
        %vm2284 = vcmp.lt.s32.totalorder %v665, 77
        %v2285 = vsel %vm2284, %v2277, %v2281
        %v2286 = vsel %vm2284, %v2279, %v2283
        %v2287 = vsel %vm2284, %v2281, %v2277
        %v2288 = vsel %vm2284, %v2283, %v2279
        %s2289 = scalar_lea.vmem %s11, 96
        %v2290 = vld [vmem:[%s2289] ss:$8 sm:$0x3]
        %v2292 = vlaneseq
        %v2293 = vshrl.u32 %v2292, 7
        %v2294 = vsub.s32 0, %v2293
        %v2295 = vrot.slane %v2290, %v2294
        %v2296 = vlaneseq
        %v2297 = vshrl.u32 %v2296, 7
        %v2298 = vsub.s32 1, %v2297
        %v2299 = vrot.slane %v2290, %v2298
        %v2302 = vmul.f32 %v2285, %v2295
        %v2303 = vmul.f32 %v2287, %v2299
        %v2304 = vmul.f32 %v2286, %v2295
        %v2305 = vmul.f32 %v2288, %v2299
        %2306 = vst [vmem:[#allocation2 + $0x600] sm:$0xff] %v2302
        %2307 = vst [vmem:[#allocation2 + $0x608] sm:$0xff] %v2303
        %2308 = vst [vmem:[#allocation2 + $0x610] sm:$0xff] %v2304
        %2309 = vst [vmem:[#allocation2 + $0x618] sm:$0xff] %v2305
        %v2310 = vld [vmem:[#allocation7] sm:$0xff]
        %v2311 = vld [vmem:[#allocation7 + $0x8] sm:$0xff]
        %v2312 = vld [vmem:[#allocation7 + $0x10] sm:$0xff]
        %v2313 = vld [vmem:[#allocation7 + $0x18] sm:$0xf]
        %v2314 = vld [vmem:[#allocation2] sm:$0xff]
        %v2315 = vld [vmem:[#allocation2 + $0x8] sm:$0xff]
        %v2316 = vld [vmem:[#allocation2 + $0x10] sm:$0xff]
        %v2317 = vld [vmem:[#allocation2 + $0x18] sm:$0xff]
        %v2318 = vld [vmem:[#allocation2 + $0x20] sm:$0xff]
        %v2319 = vld [vmem:[#allocation2 + $0x28] sm:$0xff]
        %v2320 = vld [vmem:[#allocation2 + $0x30] sm:$0xff]
        %v2321 = vld [vmem:[#allocation2 + $0x38] sm:$0xff]
        %v2322 = vld [vmem:[#allocation2 + $0x40] sm:$0xff]
        %v2323 = vld [vmem:[#allocation2 + $0x48] sm:$0xff]
        %v2324 = vld [vmem:[#allocation2 + $0x50] sm:$0xff]
        %v2325 = vld [vmem:[#allocation2 + $0x58] sm:$0xff]
        %v2326 = vld [vmem:[#allocation2 + $0x60] sm:$0xff]
        %v2327 = vld [vmem:[#allocation2 + $0x68] sm:$0xff]
        %v2328 = vld [vmem:[#allocation2 + $0x70] sm:$0xff]
        %v2329 = vld [vmem:[#allocation2 + $0x78] sm:$0xff]
        %v2330 = vld [vmem:[#allocation2 + $0x80] sm:$0xff]
        %v2331 = vld [vmem:[#allocation2 + $0x88] sm:$0xff]
        %v2332 = vld [vmem:[#allocation2 + $0x90] sm:$0xff]
        %v2333 = vld [vmem:[#allocation2 + $0x98] sm:$0xff]
        %v2334 = vld [vmem:[#allocation2 + $0xa0] sm:$0xff]
        %v2335 = vld [vmem:[#allocation2 + $0xa8] sm:$0xff]
        %v2336 = vld [vmem:[#allocation2 + $0xb0] sm:$0xff]
        %v2337 = vld [vmem:[#allocation2 + $0xb8] sm:$0xff]
        %v2338 = vld [vmem:[#allocation2 + $0xc0] sm:$0xff]
        %v2339 = vld [vmem:[#allocation2 + $0xc8] sm:$0xff]
        %v2340 = vld [vmem:[#allocation2 + $0xd0] sm:$0xff]
        %v2341 = vld [vmem:[#allocation2 + $0xd8] sm:$0xff]
        %v2342 = vld [vmem:[#allocation2 + $0xe0] sm:$0xff]
        %v2343 = vld [vmem:[#allocation2 + $0xe8] sm:$0xff]
        %v2344 = vld [vmem:[#allocation2 + $0xf0] sm:$0xff]
        %v2345 = vld [vmem:[#allocation2 + $0xf8] sm:$0xff]
        %v2346 = vld [vmem:[#allocation2 + $0x100] sm:$0xff]
        %v2347 = vld [vmem:[#allocation2 + $0x108] sm:$0xff]
        %v2348 = vld [vmem:[#allocation2 + $0x110] sm:$0xff]
        %v2349 = vld [vmem:[#allocation2 + $0x118] sm:$0xff]
        %v2350 = vld [vmem:[#allocation2 + $0x120] sm:$0xff]
        %v2351 = vld [vmem:[#allocation2 + $0x128] sm:$0xff]
        %v2352 = vld [vmem:[#allocation2 + $0x130] sm:$0xff]
        %v2353 = vld [vmem:[#allocation2 + $0x138] sm:$0xff]
        %v2354 = vld [vmem:[#allocation2 + $0x140] sm:$0xff]
        %v2355 = vld [vmem:[#allocation2 + $0x148] sm:$0xff]
        %v2356 = vld [vmem:[#allocation2 + $0x150] sm:$0xff]
        %v2357 = vld [vmem:[#allocation2 + $0x158] sm:$0xff]
        %v2358 = vld [vmem:[#allocation2 + $0x160] sm:$0xff]
        %v2359 = vld [vmem:[#allocation2 + $0x168] sm:$0xff]
        %v2360 = vld [vmem:[#allocation2 + $0x170] sm:$0xff]
        %v2361 = vld [vmem:[#allocation2 + $0x178] sm:$0xff]
        %v2362 = vld [vmem:[#allocation2 + $0x180] sm:$0xff]
        %v2363 = vld [vmem:[#allocation2 + $0x188] sm:$0xff]
        %v2364 = vld [vmem:[#allocation2 + $0x190] sm:$0xff]
        %v2365 = vld [vmem:[#allocation2 + $0x198] sm:$0xff]
        %v2366 = vld [vmem:[#allocation2 + $0x1a0] sm:$0xff]
        %v2367 = vld [vmem:[#allocation2 + $0x1a8] sm:$0xff]
        %v2368 = vld [vmem:[#allocation2 + $0x1b0] sm:$0xff]
        %v2369 = vld [vmem:[#allocation2 + $0x1b8] sm:$0xff]
        %v2370 = vld [vmem:[#allocation2 + $0x1c0] sm:$0xff]
        %v2371 = vld [vmem:[#allocation2 + $0x1c8] sm:$0xff]
        %v2372 = vld [vmem:[#allocation2 + $0x1d0] sm:$0xff]
        %v2373 = vld [vmem:[#allocation2 + $0x1d8] sm:$0xff]
        %v2374 = vld [vmem:[#allocation2 + $0x1e0] sm:$0xff]
        %v2375 = vld [vmem:[#allocation2 + $0x1e8] sm:$0xff]
        %v2376 = vld [vmem:[#allocation2 + $0x1f0] sm:$0xff]
        %v2377 = vld [vmem:[#allocation2 + $0x1f8] sm:$0xff]
        %v2378 = vld [vmem:[#allocation2 + $0x200] sm:$0xff]
        %v2379 = vld [vmem:[#allocation2 + $0x208] sm:$0xff]
        %v2380 = vld [vmem:[#allocation2 + $0x210] sm:$0xff]
        %v2381 = vld [vmem:[#allocation2 + $0x218] sm:$0xff]
        %v2382 = vld [vmem:[#allocation2 + $0x220] sm:$0xff]
        %v2383 = vld [vmem:[#allocation2 + $0x228] sm:$0xff]
        %v2384 = vld [vmem:[#allocation2 + $0x230] sm:$0xff]
        %v2385 = vld [vmem:[#allocation2 + $0x238] sm:$0xff]
        %v2386 = vld [vmem:[#allocation2 + $0x240] sm:$0xff]
        %v2387 = vld [vmem:[#allocation2 + $0x248] sm:$0xff]
        %v2388 = vld [vmem:[#allocation2 + $0x250] sm:$0xff]
        %v2389 = vld [vmem:[#allocation2 + $0x258] sm:$0xff]
        %v2390 = vld [vmem:[#allocation2 + $0x260] sm:$0xff]
        %v2391 = vld [vmem:[#allocation2 + $0x268] sm:$0xff]
        %v2392 = vld [vmem:[#allocation2 + $0x270] sm:$0xff]
        %v2393 = vld [vmem:[#allocation2 + $0x278] sm:$0xff]
        %v2394 = vld [vmem:[#allocation2 + $0x280] sm:$0xff]
        %v2395 = vld [vmem:[#allocation2 + $0x288] sm:$0xff]
        %v2396 = vld [vmem:[#allocation2 + $0x290] sm:$0xff]
        %v2397 = vld [vmem:[#allocation2 + $0x298] sm:$0xff]
        %v2398 = vld [vmem:[#allocation2 + $0x2a0] sm:$0xff]
        %v2399 = vld [vmem:[#allocation2 + $0x2a8] sm:$0xff]
        %v2400 = vld [vmem:[#allocation2 + $0x2b0] sm:$0xff]
        %v2401 = vld [vmem:[#allocation2 + $0x2b8] sm:$0xff]
        %v2402 = vld [vmem:[#allocation2 + $0x2c0] sm:$0xff]
        %v2403 = vld [vmem:[#allocation2 + $0x2c8] sm:$0xff]
        %v2404 = vld [vmem:[#allocation2 + $0x2d0] sm:$0xff]
        %v2405 = vld [vmem:[#allocation2 + $0x2d8] sm:$0xff]
        %v2406 = vld [vmem:[#allocation2 + $0x2e0] sm:$0xff]
        %v2407 = vld [vmem:[#allocation2 + $0x2e8] sm:$0xff]
        %v2408 = vld [vmem:[#allocation2 + $0x2f0] sm:$0xff]
        %v2409 = vld [vmem:[#allocation2 + $0x2f8] sm:$0xff]
        %v2410 = vld [vmem:[#allocation2 + $0x300] sm:$0xff]
        %v2411 = vld [vmem:[#allocation2 + $0x308] sm:$0xff]
        %v2412 = vld [vmem:[#allocation2 + $0x310] sm:$0xff]
        %v2413 = vld [vmem:[#allocation2 + $0x318] sm:$0xff]
        %v2414 = vld [vmem:[#allocation2 + $0x320] sm:$0xff]
        %v2415 = vld [vmem:[#allocation2 + $0x328] sm:$0xff]
        %v2416 = vld [vmem:[#allocation2 + $0x330] sm:$0xff]
        %v2417 = vld [vmem:[#allocation2 + $0x338] sm:$0xff]
        %v2418 = vld [vmem:[#allocation2 + $0x340] sm:$0xff]
        %v2419 = vld [vmem:[#allocation2 + $0x348] sm:$0xff]
        %v2420 = vld [vmem:[#allocation2 + $0x350] sm:$0xff]
        %v2421 = vld [vmem:[#allocation2 + $0x358] sm:$0xff]
        %v2422 = vld [vmem:[#allocation2 + $0x360] sm:$0xff]
        %v2423 = vld [vmem:[#allocation2 + $0x368] sm:$0xff]
        %v2424 = vld [vmem:[#allocation2 + $0x370] sm:$0xff]
        %v2425 = vld [vmem:[#allocation2 + $0x378] sm:$0xff]
        %v2426 = vld [vmem:[#allocation2 + $0x380] sm:$0xff]
        %v2427 = vld [vmem:[#allocation2 + $0x388] sm:$0xff]
        %v2428 = vld [vmem:[#allocation2 + $0x390] sm:$0xff]
        %v2429 = vld [vmem:[#allocation2 + $0x398] sm:$0xff]
        %v2430 = vld [vmem:[#allocation2 + $0x3a0] sm:$0xff]
        %v2431 = vld [vmem:[#allocation2 + $0x3a8] sm:$0xff]
        %v2432 = vld [vmem:[#allocation2 + $0x3b0] sm:$0xff]
        %v2433 = vld [vmem:[#allocation2 + $0x3b8] sm:$0xff]
        %v2434 = vld [vmem:[#allocation2 + $0x3c0] sm:$0xff]
        %v2435 = vld [vmem:[#allocation2 + $0x3c8] sm:$0xff]
        %v2436 = vld [vmem:[#allocation2 + $0x3d0] sm:$0xff]
        %v2437 = vld [vmem:[#allocation2 + $0x3d8] sm:$0xff]
        %v2438 = vld [vmem:[#allocation2 + $0x3e0] sm:$0xff]
        %v2439 = vld [vmem:[#allocation2 + $0x3e8] sm:$0xff]
        %v2440 = vld [vmem:[#allocation2 + $0x3f0] sm:$0xff]
        %v2441 = vld [vmem:[#allocation2 + $0x3f8] sm:$0xff]
        %v2442 = vld [vmem:[#allocation2 + $0x400] sm:$0xff]
        %v2443 = vld [vmem:[#allocation2 + $0x408] sm:$0xff]
        %v2444 = vld [vmem:[#allocation2 + $0x410] sm:$0xff]
        %v2445 = vld [vmem:[#allocation2 + $0x418] sm:$0xff]
        %v2446 = vld [vmem:[#allocation2 + $0x420] sm:$0xff]
        %v2447 = vld [vmem:[#allocation2 + $0x428] sm:$0xff]
        %v2448 = vld [vmem:[#allocation2 + $0x430] sm:$0xff]
        %v2449 = vld [vmem:[#allocation2 + $0x438] sm:$0xff]
        %v2450 = vld [vmem:[#allocation2 + $0x440] sm:$0xff]
        %v2451 = vld [vmem:[#allocation2 + $0x448] sm:$0xff]
        %v2452 = vld [vmem:[#allocation2 + $0x450] sm:$0xff]
        %v2453 = vld [vmem:[#allocation2 + $0x458] sm:$0xff]
        %v2454 = vld [vmem:[#allocation2 + $0x460] sm:$0xff]
        %v2455 = vld [vmem:[#allocation2 + $0x468] sm:$0xff]
        %v2456 = vld [vmem:[#allocation2 + $0x470] sm:$0xff]
        %v2457 = vld [vmem:[#allocation2 + $0x478] sm:$0xff]
        %v2458 = vld [vmem:[#allocation2 + $0x480] sm:$0xff]
        %v2459 = vld [vmem:[#allocation2 + $0x488] sm:$0xff]
        %v2460 = vld [vmem:[#allocation2 + $0x490] sm:$0xff]
        %v2461 = vld [vmem:[#allocation2 + $0x498] sm:$0xff]
        %v2462 = vld [vmem:[#allocation2 + $0x4a0] sm:$0xff]
        %v2463 = vld [vmem:[#allocation2 + $0x4a8] sm:$0xff]
        %v2464 = vld [vmem:[#allocation2 + $0x4b0] sm:$0xff]
        %v2465 = vld [vmem:[#allocation2 + $0x4b8] sm:$0xff]
        %v2466 = vld [vmem:[#allocation2 + $0x4c0] sm:$0xff]
        %v2467 = vld [vmem:[#allocation2 + $0x4c8] sm:$0xff]
        %v2468 = vld [vmem:[#allocation2 + $0x4d0] sm:$0xff]
        %v2469 = vld [vmem:[#allocation2 + $0x4d8] sm:$0xff]
        %v2470 = vld [vmem:[#allocation2 + $0x4e0] sm:$0xff]
        %v2471 = vld [vmem:[#allocation2 + $0x4e8] sm:$0xff]
        %v2472 = vld [vmem:[#allocation2 + $0x4f0] sm:$0xff]
        %v2473 = vld [vmem:[#allocation2 + $0x4f8] sm:$0xff]
        %v2474 = vld [vmem:[#allocation2 + $0x500] sm:$0xff]
        %v2475 = vld [vmem:[#allocation2 + $0x508] sm:$0xff]
        %v2476 = vld [vmem:[#allocation2 + $0x510] sm:$0xff]
        %v2477 = vld [vmem:[#allocation2 + $0x518] sm:$0xff]
        %v2478 = vld [vmem:[#allocation2 + $0x520] sm:$0xff]
        %v2479 = vld [vmem:[#allocation2 + $0x528] sm:$0xff]
        %v2480 = vld [vmem:[#allocation2 + $0x530] sm:$0xff]
        %v2481 = vld [vmem:[#allocation2 + $0x538] sm:$0xff]
        %v2482 = vld [vmem:[#allocation2 + $0x540] sm:$0xff]
        %v2483 = vld [vmem:[#allocation2 + $0x548] sm:$0xff]
        %v2484 = vld [vmem:[#allocation2 + $0x550] sm:$0xff]
        %v2485 = vld [vmem:[#allocation2 + $0x558] sm:$0xff]
        %v2486 = vld [vmem:[#allocation2 + $0x560] sm:$0xff]
        %v2487 = vld [vmem:[#allocation2 + $0x568] sm:$0xff]
        %v2488 = vld [vmem:[#allocation2 + $0x570] sm:$0xff]
        %v2489 = vld [vmem:[#allocation2 + $0x578] sm:$0xff]
        %v2490 = vld [vmem:[#allocation2 + $0x580] sm:$0xff]
        %v2491 = vld [vmem:[#allocation2 + $0x588] sm:$0xff]
        %v2492 = vld [vmem:[#allocation2 + $0x590] sm:$0xff]
        %v2493 = vld [vmem:[#allocation2 + $0x598] sm:$0xff]
        %v2494 = vld [vmem:[#allocation2 + $0x5a0] sm:$0xff]
        %v2495 = vld [vmem:[#allocation2 + $0x5a8] sm:$0xff]
        %v2496 = vld [vmem:[#allocation2 + $0x5b0] sm:$0xff]
        %v2497 = vld [vmem:[#allocation2 + $0x5b8] sm:$0xff]
        %v2498 = vld [vmem:[#allocation2 + $0x5c0] sm:$0xff]
        %v2499 = vld [vmem:[#allocation2 + $0x5c8] sm:$0xff]
        %v2500 = vld [vmem:[#allocation2 + $0x5d0] sm:$0xff]
        %v2501 = vld [vmem:[#allocation2 + $0x5d8] sm:$0xff]
        %v2502 = vld [vmem:[#allocation2 + $0x5e0] sm:$0xff]
        %v2503 = vld [vmem:[#allocation2 + $0x5e8] sm:$0xff]
        %v2504 = vld [vmem:[#allocation2 + $0x5f0] sm:$0xff]
        %v2505 = vld [vmem:[#allocation2 + $0x5f8] sm:$0xff]
        %v2506 = vld [vmem:[#allocation2 + $0x600] sm:$0xff]
        %v2507 = vld [vmem:[#allocation2 + $0x608] sm:$0xff]
        %v2508 = vld [vmem:[#allocation2 + $0x610] sm:$0xff]
        %v2509 = vld [vmem:[#allocation2 + $0x618] sm:$0xff]
        %v2514 = vcombine.high %v2310, %v2310
        %v2515 = vcombine.high %v2311, %v2311
        %v2516 = vcombine.high %v2312, %v2312
        %v2520 = vsel %vm470, %v2313, 0
        %2522 = vmatprep.subr.mxu0 %v2315
        %2523 = vmatpush1.msra.mxu0 %v2314
        %2524 = vmatprep.subr.mxu0 %v2317
        %2525 = vmatpush1.msra.mxu0 %v2316
        %2526 = vmatprep.subr.mxu0 %v2319
        %2527 = vmatpush1.msra.mxu0 %v2318
        %2528 = vmatprep.subr.mxu0 %v2321
        %2529 = vmatpush1.msra.mxu0 %v2320
        %2530 = vmatprep.subr.mxu0 %v2323
        %2531 = vmatpush1.msra.mxu0 %v2322
        %2532 = vmatprep.subr.mxu0 %v2325
        %2533 = vmatpush1.msra.mxu0 %v2324
        %2534 = vmatprep.subr.mxu0 %v2327
        %2535 = vmatpush1.msra.mxu0 %v2326
        %2536 = vmatprep.subr.mxu0 %v2329
        %2537 = vmatpush1.msra.mxu0 %v2328
        %2538 = vmatprep.subr.mxu0 %v2331
        %2539 = vmatpush1.msra.mxu0 %v2330
        %2540 = vmatprep.subr.mxu0 %v2333
        %2541 = vmatpush1.msra.mxu0 %v2332
        %2542 = vmatprep.subr.mxu0 %v2335
        %2543 = vmatpush1.msra.mxu0 %v2334
        %2544 = vmatprep.subr.mxu0 %v2337
        %2545 = vmatpush1.msra.mxu0 %v2336
        %2546 = vmatprep.subr.mxu0 %v2339
        %2547 = vmatpush1.msra.mxu0 %v2338
        %2548 = vmatprep.subr.mxu0 %v2341
        %2549 = vmatpush1.msra.mxu0 %v2340
        %2550 = vmatprep.subr.mxu0 %v2343
        %2551 = vmatpush1.msra.mxu0 %v2342
        %2552 = vmatprep.subr.mxu0 %v2345
        %2553 = vmatpush1.msra.mxu0 %v2344
        %2554 = vmatprep.subr.mxu0 %v2347
        %2555 = vmatpush1.msra.mxu0 %v2346
        %2556 = vmatprep.subr.mxu0 %v2349
        %2557 = vmatpush1.msra.mxu0 %v2348
        %2558 = vmatprep.subr.mxu0 %v2351
        %2559 = vmatpush1.msra.mxu0 %v2350
        %2560 = vmatprep.subr.mxu0 %v2353
        %2561 = vmatpush1.msra.mxu0 %v2352
        %2562 = vmatprep.subr.mxu0 %v2355
        %2563 = vmatpush1.msra.mxu0 %v2354
        %2564 = vmatprep.subr.mxu0 %v2357
        %2565 = vmatpush1.msra.mxu0 %v2356
        %2566 = vmatprep.subr.mxu0 %v2359
        %2567 = vmatpush1.msra.mxu0 %v2358
        %2568 = vmatprep.subr.mxu0 %v2361
        %2569 = vmatpush1.msra.mxu0 %v2360
        %2570 = vmatprep.subr.mxu0 %v2363
        %2571 = vmatpush1.msra.mxu0 %v2362
        %2572 = vmatprep.subr.mxu0 %v2365
        %2573 = vmatpush1.msra.mxu0 %v2364
        %2574 = vmatprep.subr.mxu0 %v2367
        %2575 = vmatpush1.msra.mxu0 %v2366
        %2576 = vmatprep.subr.mxu0 %v2369
        %2577 = vmatpush1.msra.mxu0 %v2368
        %2578 = vmatprep.subr.mxu0 %v2371
        %2579 = vmatpush1.msra.mxu0 %v2370
        %2580 = vmatprep.subr.mxu0 %v2373
        %2581 = vmatpush1.msra.mxu0 %v2372
        %2582 = vmatprep.subr.mxu0 %v2375
        %2583 = vmatpush1.msra.mxu0 %v2374
        %2584 = vmatprep.subr.mxu0 %v2377
        %2585 = vmatpush1.msra.mxu0 %v2376
        %2586 = vmatprep.mubr.f32.mxu0 %v2514
        %2587 = vmatmul.mubr.f32.gmra.mrb[0].mxu0 %v2310
        %v2588 = vpop.f32.mrb[0].mxu0
        %v2589 = vadd.f32 0.0, %v2588
        %v2590 = vpop.f32.mrb[0].mxu0
        %v2591 = vadd.f32 0.0, %v2590
        %2592 = vdwg.mxu0
        %2593 = vmatprep.subr.mxu0 %v2379
        %2594 = vmatpush1.msra.mxu0 %v2378
        %2595 = vmatprep.subr.mxu0 %v2381
        %2596 = vmatpush1.msra.mxu0 %v2380
        %2597 = vmatprep.subr.mxu0 %v2383
        %2598 = vmatpush1.msra.mxu0 %v2382
        %2599 = vmatprep.subr.mxu0 %v2385
        %2600 = vmatpush1.msra.mxu0 %v2384
        %2601 = vmatprep.subr.mxu0 %v2387
        %2602 = vmatpush1.msra.mxu0 %v2386
        %2603 = vmatprep.subr.mxu0 %v2389
        %2604 = vmatpush1.msra.mxu0 %v2388
        %2605 = vmatprep.subr.mxu0 %v2391
        %2606 = vmatpush1.msra.mxu0 %v2390
        %2607 = vmatprep.subr.mxu0 %v2393
        %2608 = vmatpush1.msra.mxu0 %v2392
        %2609 = vmatprep.subr.mxu0 %v2395
        %2610 = vmatpush1.msra.mxu0 %v2394
        %2611 = vmatprep.subr.mxu0 %v2397
        %2612 = vmatpush1.msra.mxu0 %v2396
        %2613 = vmatprep.subr.mxu0 %v2399
        %2614 = vmatpush1.msra.mxu0 %v2398
        %2615 = vmatprep.subr.mxu0 %v2401
        %2616 = vmatpush1.msra.mxu0 %v2400
        %2617 = vmatprep.subr.mxu0 %v2403
        %2618 = vmatpush1.msra.mxu0 %v2402
        %2619 = vmatprep.subr.mxu0 %v2405
        %2620 = vmatpush1.msra.mxu0 %v2404
        %2621 = vmatprep.subr.mxu0 %v2407
        %2622 = vmatpush1.msra.mxu0 %v2406
        %2623 = vmatprep.subr.mxu0 %v2409
        %2624 = vmatpush1.msra.mxu0 %v2408
        %2625 = vmatprep.subr.mxu0 %v2411
        %2626 = vmatpush1.msra.mxu0 %v2410
        %2627 = vmatprep.subr.mxu0 %v2413
        %2628 = vmatpush1.msra.mxu0 %v2412
        %2629 = vmatprep.subr.mxu0 %v2415
        %2630 = vmatpush1.msra.mxu0 %v2414
        %2631 = vmatprep.subr.mxu0 %v2417
        %2632 = vmatpush1.msra.mxu0 %v2416
        %2633 = vmatprep.subr.mxu0 %v2419
        %2634 = vmatpush1.msra.mxu0 %v2418
        %2635 = vmatprep.subr.mxu0 %v2421
        %2636 = vmatpush1.msra.mxu0 %v2420
        %2637 = vmatprep.subr.mxu0 %v2423
        %2638 = vmatpush1.msra.mxu0 %v2422
        %2639 = vmatprep.subr.mxu0 %v2425
        %2640 = vmatpush1.msra.mxu0 %v2424
        %2641 = vmatprep.subr.mxu0 %v2427
        %2642 = vmatpush1.msra.mxu0 %v2426
        %2643 = vmatprep.subr.mxu0 %v2429
        %2644 = vmatpush1.msra.mxu0 %v2428
        %2645 = vmatprep.subr.mxu0 %v2431
        %2646 = vmatpush1.msra.mxu0 %v2430
        %2647 = vmatprep.subr.mxu0 %v2433
        %2648 = vmatpush1.msra.mxu0 %v2432
        %2649 = vmatprep.subr.mxu0 %v2435
        %2650 = vmatpush1.msra.mxu0 %v2434
        %2651 = vmatprep.subr.mxu0 %v2437
        %2652 = vmatpush1.msra.mxu0 %v2436
        %2653 = vmatprep.subr.mxu0 %v2439
        %2654 = vmatpush1.msra.mxu0 %v2438
        %2655 = vmatprep.subr.mxu0 %v2441
        %2656 = vmatpush1.msra.mxu0 %v2440
        %2657 = vmatprep.mubr.f32.mxu0 %v2515
        %2658 = vmatmul.mubr.f32.gmra.mrb[0].mxu0 %v2311
        %v2659 = vpop.f32.mrb[0].mxu0
        %v2660 = vadd.f32 %v2589, %v2659
        %v2661 = vpop.f32.mrb[0].mxu0
        %v2662 = vadd.f32 %v2591, %v2661
        %2663 = vdwg.mxu0
        %2664 = vmatprep.subr.mxu0 %v2443
        %2665 = vmatpush1.msra.mxu0 %v2442
        %2666 = vmatprep.subr.mxu0 %v2445
        %2667 = vmatpush1.msra.mxu0 %v2444
        %2668 = vmatprep.subr.mxu0 %v2447
        %2669 = vmatpush1.msra.mxu0 %v2446
        %2670 = vmatprep.subr.mxu0 %v2449
        %2671 = vmatpush1.msra.mxu0 %v2448
        %2672 = vmatprep.subr.mxu0 %v2451
        %2673 = vmatpush1.msra.mxu0 %v2450
        %2674 = vmatprep.subr.mxu0 %v2453
        %2675 = vmatpush1.msra.mxu0 %v2452
        %2676 = vmatprep.subr.mxu0 %v2455
        %2677 = vmatpush1.msra.mxu0 %v2454
        %2678 = vmatprep.subr.mxu0 %v2457
        %2679 = vmatpush1.msra.mxu0 %v2456
        %2680 = vmatprep.subr.mxu0 %v2459
        %2681 = vmatpush1.msra.mxu0 %v2458
        %2682 = vmatprep.subr.mxu0 %v2461
        %2683 = vmatpush1.msra.mxu0 %v2460
        %2684 = vmatprep.subr.mxu0 %v2463
        %2685 = vmatpush1.msra.mxu0 %v2462
        %2686 = vmatprep.subr.mxu0 %v2465
        %2687 = vmatpush1.msra.mxu0 %v2464
        %2688 = vmatprep.subr.mxu0 %v2467
        %2689 = vmatpush1.msra.mxu0 %v2466
        %2690 = vmatprep.subr.mxu0 %v2469
        %2691 = vmatpush1.msra.mxu0 %v2468
        %2692 = vmatprep.subr.mxu0 %v2471
        %2693 = vmatpush1.msra.mxu0 %v2470
        %2694 = vmatprep.subr.mxu0 %v2473
        %2695 = vmatpush1.msra.mxu0 %v2472
        %2696 = vmatprep.subr.mxu0 %v2475
        %2697 = vmatpush1.msra.mxu0 %v2474
        %2698 = vmatprep.subr.mxu0 %v2477
        %2699 = vmatpush1.msra.mxu0 %v2476
        %2700 = vmatprep.subr.mxu0 %v2479
        %2701 = vmatpush1.msra.mxu0 %v2478
        %2702 = vmatprep.subr.mxu0 %v2481
        %2703 = vmatpush1.msra.mxu0 %v2480
        %2704 = vmatprep.subr.mxu0 %v2483
        %2705 = vmatpush1.msra.mxu0 %v2482
        %2706 = vmatprep.subr.mxu0 %v2485
        %2707 = vmatpush1.msra.mxu0 %v2484
        %2708 = vmatprep.subr.mxu0 %v2487
        %2709 = vmatpush1.msra.mxu0 %v2486
        %2710 = vmatprep.subr.mxu0 %v2489
        %2711 = vmatpush1.msra.mxu0 %v2488
        %2712 = vmatprep.subr.mxu0 %v2491
        %2713 = vmatpush1.msra.mxu0 %v2490
        %2714 = vmatprep.subr.mxu0 %v2493
        %2715 = vmatpush1.msra.mxu0 %v2492
        %2716 = vmatprep.subr.mxu0 %v2495
        %2717 = vmatpush1.msra.mxu0 %v2494
        %2718 = vmatprep.subr.mxu0 %v2497
        %2719 = vmatpush1.msra.mxu0 %v2496
        %2720 = vmatprep.subr.mxu0 %v2499
        %2721 = vmatpush1.msra.mxu0 %v2498
        %2722 = vmatprep.subr.mxu0 %v2501
        %2723 = vmatpush1.msra.mxu0 %v2500
        %2724 = vmatprep.subr.mxu0 %v2503
        %2725 = vmatpush1.msra.mxu0 %v2502
        %2726 = vmatprep.subr.mxu0 %v2505
        %2727 = vmatpush1.msra.mxu0 %v2504
        %2728 = vmatprep.mubr.f32.mxu0 %v2516
        %2729 = vmatmul.mubr.f32.gmra.mrb[0].mxu0 %v2312
        %v2730 = vpop.f32.mrb[0].mxu0
        %v2731 = vadd.f32 %v2660, %v2730
        %v2732 = vpop.f32.mrb[0].mxu0
        %v2733 = vadd.f32 %v2662, %v2732
        %2734 = vdwg.mxu0
        %2735 = vmatprep.subr.mxu0 %v2507
        %2736 = vmatpush1.msra.mxu0 %v2506
        %2737 = vmatprep.subr.mxu0 %v2509
        %2738 = vmatpush1.msra.mxu0 %v2508
        %2739 = vmatprep.subr.mxu0 0.0
        %2740 = vmatpush1.msra.mxu0 0.0
        %2741 = vmatprep.subr.mxu0 0.0
        %2742 = vmatpush1.msra.mxu0 0.0
        %2743 = vmatprep.subr.mxu0 0.0
        %2744 = vmatpush1.msra.mxu0 0.0
        %2745 = vmatprep.subr.mxu0 0.0
        %2746 = vmatpush1.msra.mxu0 0.0
        %2747 = vmatprep.subr.mxu0 0.0
        %2748 = vmatpush1.msra.mxu0 0.0
        %2749 = vmatprep.subr.mxu0 0.0
        %2750 = vmatpush1.msra.mxu0 0.0
        %2751 = vmatprep.subr.mxu0 0.0
        %2752 = vmatpush1.msra.mxu0 0.0
        %2753 = vmatprep.subr.mxu0 0.0
        %2754 = vmatpush1.msra.mxu0 0.0
        %2755 = vmatprep.subr.mxu0 0.0
        %2756 = vmatpush1.msra.mxu0 0.0
        %2757 = vmatprep.subr.mxu0 0.0
        %2758 = vmatpush1.msra.mxu0 0.0
        %2759 = vmatprep.subr.mxu0 0.0
        %2760 = vmatpush1.msra.mxu0 0.0
        %2761 = vmatprep.subr.mxu0 0.0
        %2762 = vmatpush1.msra.mxu0 0.0
        %2763 = vmatprep.subr.mxu0 0.0
        %2764 = vmatpush1.msra.mxu0 0.0
        %2765 = vmatprep.subr.mxu0 0.0
        %2766 = vmatpush1.msra.mxu0 0.0
        %2767 = vmatprep.subr.mxu0 0.0
        %2768 = vmatpush1.msra.mxu0 0.0
        %2769 = vmatprep.subr.mxu0 0.0
        %2770 = vmatpush1.msra.mxu0 0.0
        %2771 = vmatprep.subr.mxu0 0.0
        %2772 = vmatpush1.msra.mxu0 0.0
        %2773 = vmatprep.subr.mxu0 0.0
        %2774 = vmatpush1.msra.mxu0 0.0
        %2775 = vmatprep.subr.mxu0 0.0
        %2776 = vmatpush1.msra.mxu0 0.0
        %2777 = vmatprep.subr.mxu0 0.0
        %2778 = vmatpush1.msra.mxu0 0.0
        %2779 = vmatprep.subr.mxu0 0.0
        %2780 = vmatpush1.msra.mxu0 0.0
        %2781 = vmatprep.subr.mxu0 0.0
        %2782 = vmatpush1.msra.mxu0 0.0
        %2783 = vmatprep.subr.mxu0 0.0
        %2784 = vmatpush1.msra.mxu0 0.0
        %2785 = vmatprep.subr.mxu0 0.0
        %2786 = vmatpush1.msra.mxu0 0.0
        %2787 = vmatprep.subr.mxu0 0.0
        %2788 = vmatpush1.msra.mxu0 0.0
        %2789 = vmatprep.subr.mxu0 0.0
        %2790 = vmatpush1.msra.mxu0 0.0
        %2791 = vmatprep.subr.mxu0 0.0
        %2792 = vmatpush1.msra.mxu0 0.0
        %2793 = vmatprep.subr.mxu0 0.0
        %2794 = vmatpush1.msra.mxu0 0.0
        %2795 = vmatprep.subr.mxu0 0.0
        %2796 = vmatpush1.msra.mxu0 0.0
        %2797 = vmatprep.subr.mxu0 0.0
        %2798 = vmatpush1.msra.mxu0 0.0
        %2799 = vmatprep.mubr.f32.mxu0 0.0
        %2800 = vmatmul.mubr.f32.gmra.mrb[0].mxu0 %v2520
        %v2801 = vpop.f32.mrb[0].mxu0
        %v2802 = vadd.f32 %v2731, %v2801
        %v2803 = vpop.f32.mrb[0].mxu0
        %v2804 = vadd.f32 %v2733, %v2803
        %2805 = vdwg.mxu0
        %v2806 = vld [vmem:[%s6] sm:$0xf]
        %2808 = vset.pattern.permute.xlu0 0
        %2809 = vperm.xlu0 %2808, %v2806
        %v2810 = vpop.permute.xlu0 %2809
        %v2812 = vmul.f32 %v2802, %v2810
        %v2813 = vmul.f32 %v2804, %v2810
        %v2814 = vld [vmem:[%s7] sm:$0xf]
        %2816 = vset.pattern.permute.xlu0 0
        %2817 = vperm.xlu0 %2816, %v2814
        %v2818 = vpop.permute.xlu0 %2817
        %v2820 = vadd.f32 %v2812, %v2818
        %v2821 = vadd.f32 %v2813, %v2818
        %v2822 = vmax.f32 %v2820, 0.0
        %v2823 = vmax.f32 %v2821, 0.0
        %2824 = vrot.lane.b32.xlu0 %v2822, 51
        %v2825 = vpop.permute.xlu0 %2824
        %2826 = vrot.lane.b32.xlu0 %v2823, 51
        %v2827 = vpop.permute.xlu0 %2826
        %v2828 = vsel %vm666, %v2825, %v2827
        %v2829 = vsel %vm666, %v2827, %v2825
        %v2830 = vld [vmem:[%s11] ss:$8 sm:$0x3]
        %v2832 = vlaneseq
        %v2833 = vshrl.u32 %v2832, 7
        %v2834 = vsub.s32 0, %v2833
        %v2835 = vrot.slane %v2830, %v2834
        %v2836 = vlaneseq
        %v2837 = vshrl.u32 %v2836, 7
        %v2838 = vsub.s32 1, %v2837
        %v2839 = vrot.slane %v2830, %v2838
        %v2842 = vmul.f32 %v2829, %v2835
        %v2843 = vmul.f32 %v2828, %v2839
        %2844 = vst [vmem:[#allocation3] sm:$0xf] %v2842
        %2845 = vst [vmem:[#allocation3 + $0x8] sm:$0xf] %v2843
        %2846 = vrot.lane.b32.xlu0 %v2822, 50
        %v2847 = vpop.permute.xlu0 %2846
        %2848 = vrot.lane.b32.xlu0 %v2823, 50
        %v2849 = vpop.permute.xlu0 %2848
        %v2850 = vsel %vm699, %v2847, %v2849
        %v2851 = vsel %vm699, %v2849, %v2847
        %v2852 = vld [vmem:[%s704] ss:$8 sm:$0x3]
        %v2854 = vlaneseq
        %v2855 = vshrl.u32 %v2854, 7
        %v2856 = vsub.s32 0, %v2855
        %v2857 = vrot.slane %v2852, %v2856
        %v2858 = vlaneseq
        %v2859 = vshrl.u32 %v2858, 7
        %v2860 = vsub.s32 1, %v2859
        %v2861 = vrot.slane %v2852, %v2860
        %v2864 = vmul.f32 %v2851, %v2857
        %v2865 = vmul.f32 %v2850, %v2861
        %v2868 = vrot.slane %v2864, 4
        %v2869 = vrot.slane %v2865, 4
        %2872 = vst [vmem:[#allocation3] sm:$0xf0] %v2868
        %2873 = vst [vmem:[#allocation3 + $0x8] sm:$0xf0] %v2869
        %2874 = vrot.lane.b32.xlu0 %v2822, 49
        %v2875 = vpop.permute.xlu0 %2874
        %2876 = vrot.lane.b32.xlu0 %v2823, 49
        %v2877 = vpop.permute.xlu0 %2876
        %v2878 = vsel %vm733, %v2875, %v2877
        %v2879 = vsel %vm733, %v2877, %v2875
        %v2880 = vld [vmem:[%s738] ss:$8 sm:$0x3]
        %v2882 = vlaneseq
        %v2883 = vshrl.u32 %v2882, 7
        %v2884 = vsub.s32 0, %v2883
        %v2885 = vrot.slane %v2880, %v2884
        %v2886 = vlaneseq
        %v2887 = vshrl.u32 %v2886, 7
        %v2888 = vsub.s32 1, %v2887
        %v2889 = vrot.slane %v2880, %v2888
        %v2892 = vmul.f32 %v2879, %v2885
        %v2893 = vmul.f32 %v2878, %v2889
        %2894 = vst [vmem:[#allocation3 + $0x10] sm:$0xf] %v2892
        %2895 = vst [vmem:[#allocation3 + $0x18] sm:$0xf] %v2893
        %2896 = vrot.lane.b32.xlu0 %v2822, 48
        %v2897 = vpop.permute.xlu0 %2896
        %2898 = vrot.lane.b32.xlu0 %v2823, 48
        %v2899 = vpop.permute.xlu0 %2898
        %v2900 = vsel %vm767, %v2897, %v2899
        %v2901 = vsel %vm767, %v2899, %v2897
        %v2902 = vld [vmem:[%s772] ss:$8 sm:$0x3]
        %v2904 = vlaneseq
        %v2905 = vshrl.u32 %v2904, 7
        %v2906 = vsub.s32 0, %v2905
        %v2907 = vrot.slane %v2902, %v2906
        %v2908 = vlaneseq
        %v2909 = vshrl.u32 %v2908, 7
        %v2910 = vsub.s32 1, %v2909
        %v2911 = vrot.slane %v2902, %v2910
        %v2914 = vmul.f32 %v2901, %v2907
        %v2915 = vmul.f32 %v2900, %v2911
        %v2918 = vrot.slane %v2914, 4
        %v2919 = vrot.slane %v2915, 4
        %2922 = vst [vmem:[#allocation3 + $0x10] sm:$0xf0] %v2918
        %2923 = vst [vmem:[#allocation3 + $0x18] sm:$0xf0] %v2919
        %2924 = vrot.lane.b32.xlu0 %v2822, 47
        %v2925 = vpop.permute.xlu0 %2924
        %2926 = vrot.lane.b32.xlu0 %v2823, 47
        %v2927 = vpop.permute.xlu0 %2926
        %v2928 = vsel %vm801, %v2925, %v2927
        %v2929 = vsel %vm801, %v2927, %v2925
        %v2930 = vld [vmem:[%s806] ss:$8 sm:$0x3]
        %v2932 = vlaneseq
        %v2933 = vshrl.u32 %v2932, 7
        %v2934 = vsub.s32 0, %v2933
        %v2935 = vrot.slane %v2930, %v2934
        %v2936 = vlaneseq
        %v2937 = vshrl.u32 %v2936, 7
        %v2938 = vsub.s32 1, %v2937
        %v2939 = vrot.slane %v2930, %v2938
        %v2942 = vmul.f32 %v2929, %v2935
        %v2943 = vmul.f32 %v2928, %v2939
        %2944 = vst [vmem:[#allocation3 + $0x20] sm:$0xf] %v2942
        %2945 = vst [vmem:[#allocation3 + $0x28] sm:$0xf] %v2943
        %2946 = vrot.lane.b32.xlu0 %v2822, 46
        %v2947 = vpop.permute.xlu0 %2946
        %2948 = vrot.lane.b32.xlu0 %v2823, 46
        %v2949 = vpop.permute.xlu0 %2948
        %v2950 = vsel %vm835, %v2947, %v2949
        %v2951 = vsel %vm835, %v2949, %v2947
        %v2952 = vld [vmem:[%s840] ss:$8 sm:$0x3]
        %v2954 = vlaneseq
        %v2955 = vshrl.u32 %v2954, 7
        %v2956 = vsub.s32 0, %v2955
        %v2957 = vrot.slane %v2952, %v2956
        %v2958 = vlaneseq
        %v2959 = vshrl.u32 %v2958, 7
        %v2960 = vsub.s32 1, %v2959
        %v2961 = vrot.slane %v2952, %v2960
        %v2964 = vmul.f32 %v2951, %v2957
        %v2965 = vmul.f32 %v2950, %v2961
        %v2968 = vrot.slane %v2964, 4
        %v2969 = vrot.slane %v2965, 4
        %2972 = vst [vmem:[#allocation3 + $0x20] sm:$0xf0] %v2968
        %2973 = vst [vmem:[#allocation3 + $0x28] sm:$0xf0] %v2969
        %2974 = vrot.lane.b32.xlu0 %v2822, 45
        %v2975 = vpop.permute.xlu0 %2974
        %2976 = vrot.lane.b32.xlu0 %v2823, 45
        %v2977 = vpop.permute.xlu0 %2976
        %v2978 = vsel %vm869, %v2975, %v2977
        %v2979 = vsel %vm869, %v2977, %v2975
        %v2980 = vld [vmem:[%s874] ss:$8 sm:$0x3]
        %v2982 = vlaneseq
        %v2983 = vshrl.u32 %v2982, 7
        %v2984 = vsub.s32 0, %v2983
        %v2985 = vrot.slane %v2980, %v2984
        %v2986 = vlaneseq
        %v2987 = vshrl.u32 %v2986, 7
        %v2988 = vsub.s32 1, %v2987
        %v2989 = vrot.slane %v2980, %v2988
        %v2992 = vmul.f32 %v2979, %v2985
        %v2993 = vmul.f32 %v2978, %v2989
        %2994 = vst [vmem:[#allocation3 + $0x30] sm:$0xf] %v2992
        %2995 = vst [vmem:[#allocation3 + $0x38] sm:$0xf] %v2993
        %2996 = vrot.lane.b32.xlu0 %v2822, 35
        %v2997 = vpop.permute.xlu0 %2996
        %2998 = vrot.lane.b32.xlu0 %v2823, 35
        %v2999 = vpop.permute.xlu0 %2998
        %v3000 = vsel %vm903, %v2997, %v2999
        %v3001 = vsel %vm903, %v2999, %v2997
        %v3002 = vld [vmem:[%s908] ss:$8 sm:$0x3]
        %v3004 = vlaneseq
        %v3005 = vshrl.u32 %v3004, 7
        %v3006 = vsub.s32 0, %v3005
        %v3007 = vrot.slane %v3002, %v3006
        %v3008 = vlaneseq
        %v3009 = vshrl.u32 %v3008, 7
        %v3010 = vsub.s32 1, %v3009
        %v3011 = vrot.slane %v3002, %v3010
        %v3014 = vmul.f32 %v3001, %v3007
        %v3015 = vmul.f32 %v3000, %v3011
        %v3018 = vrot.slane %v3014, 4
        %v3019 = vrot.slane %v3015, 4
        %3022 = vst [vmem:[#allocation3 + $0x30] sm:$0xf0] %v3018
        %3023 = vst [vmem:[#allocation3 + $0x38] sm:$0xf0] %v3019
        %3024 = vrot.lane.b32.xlu0 %v2822, 34
        %v3025 = vpop.permute.xlu0 %3024
        %3026 = vrot.lane.b32.xlu0 %v2823, 34
        %v3027 = vpop.permute.xlu0 %3026
        %v3028 = vsel %vm937, %v3025, %v3027
        %v3029 = vsel %vm937, %v3027, %v3025
        %v3030 = vld [vmem:[%s942] ss:$8 sm:$0x3]
        %v3032 = vlaneseq
        %v3033 = vshrl.u32 %v3032, 7
        %v3034 = vsub.s32 0, %v3033
        %v3035 = vrot.slane %v3030, %v3034
        %v3036 = vlaneseq
        %v3037 = vshrl.u32 %v3036, 7
        %v3038 = vsub.s32 1, %v3037
        %v3039 = vrot.slane %v3030, %v3038
        %v3042 = vmul.f32 %v3029, %v3035
        %v3043 = vmul.f32 %v3028, %v3039
        %3044 = vst [vmem:[#allocation3 + $0x40] sm:$0xf] %v3042
        %3045 = vst [vmem:[#allocation3 + $0x48] sm:$0xf] %v3043
        %3046 = vrot.lane.b32.xlu0 %v2822, 33
        %v3047 = vpop.permute.xlu0 %3046
        %3048 = vrot.lane.b32.xlu0 %v2823, 33
        %v3049 = vpop.permute.xlu0 %3048
        %v3050 = vsel %vm971, %v3047, %v3049
        %v3051 = vsel %vm971, %v3049, %v3047
        %v3052 = vld [vmem:[%s976] ss:$8 sm:$0x3]
        %v3054 = vlaneseq
        %v3055 = vshrl.u32 %v3054, 7
        %v3056 = vsub.s32 0, %v3055
        %v3057 = vrot.slane %v3052, %v3056
        %v3058 = vlaneseq
        %v3059 = vshrl.u32 %v3058, 7
        %v3060 = vsub.s32 1, %v3059
        %v3061 = vrot.slane %v3052, %v3060
        %v3064 = vmul.f32 %v3051, %v3057
        %v3065 = vmul.f32 %v3050, %v3061
        %v3068 = vrot.slane %v3064, 4
        %v3069 = vrot.slane %v3065, 4
        %3072 = vst [vmem:[#allocation3 + $0x40] sm:$0xf0] %v3068
        %3073 = vst [vmem:[#allocation3 + $0x48] sm:$0xf0] %v3069
        %3074 = vrot.lane.b32.xlu0 %v2822, 32
        %v3075 = vpop.permute.xlu0 %3074
        %3076 = vrot.lane.b32.xlu0 %v2823, 32
        %v3077 = vpop.permute.xlu0 %3076
        %v3078 = vsel %vm1005, %v3075, %v3077
        %v3079 = vsel %vm1005, %v3077, %v3075
        %v3080 = vld [vmem:[%s1010] ss:$8 sm:$0x3]
        %v3082 = vlaneseq
        %v3083 = vshrl.u32 %v3082, 7
        %v3084 = vsub.s32 0, %v3083
        %v3085 = vrot.slane %v3080, %v3084
        %v3086 = vlaneseq
        %v3087 = vshrl.u32 %v3086, 7
        %v3088 = vsub.s32 1, %v3087
        %v3089 = vrot.slane %v3080, %v3088
        %v3092 = vmul.f32 %v3079, %v3085
        %v3093 = vmul.f32 %v3078, %v3089
        %3094 = vst [vmem:[#allocation3 + $0x50] sm:$0xf] %v3092
        %3095 = vst [vmem:[#allocation3 + $0x58] sm:$0xf] %v3093
        %3096 = vrot.lane.b32.xlu0 %v2822, 31
        %v3097 = vpop.permute.xlu0 %3096
        %3098 = vrot.lane.b32.xlu0 %v2823, 31
        %v3099 = vpop.permute.xlu0 %3098
        %v3100 = vsel %vm1039, %v3097, %v3099
        %v3101 = vsel %vm1039, %v3099, %v3097
        %v3102 = vld [vmem:[%s1044] ss:$8 sm:$0x3]
        %v3104 = vlaneseq
        %v3105 = vshrl.u32 %v3104, 7
        %v3106 = vsub.s32 0, %v3105
        %v3107 = vrot.slane %v3102, %v3106
        %v3108 = vlaneseq
        %v3109 = vshrl.u32 %v3108, 7
        %v3110 = vsub.s32 1, %v3109
        %v3111 = vrot.slane %v3102, %v3110
        %v3114 = vmul.f32 %v3101, %v3107
        %v3115 = vmul.f32 %v3100, %v3111
        %v3118 = vrot.slane %v3114, 4
        %v3119 = vrot.slane %v3115, 4
        %3122 = vst [vmem:[#allocation3 + $0x50] sm:$0xf0] %v3118
        %3123 = vst [vmem:[#allocation3 + $0x58] sm:$0xf0] %v3119
        %3124 = vrot.lane.b32.xlu0 %v2822, 30
        %v3125 = vpop.permute.xlu0 %3124
        %3126 = vrot.lane.b32.xlu0 %v2823, 30
        %v3127 = vpop.permute.xlu0 %3126
        %v3128 = vsel %vm1073, %v3125, %v3127
        %v3129 = vsel %vm1073, %v3127, %v3125
        %v3130 = vld [vmem:[%s1078] ss:$8 sm:$0x3]
        %v3132 = vlaneseq
        %v3133 = vshrl.u32 %v3132, 7
        %v3134 = vsub.s32 0, %v3133
        %v3135 = vrot.slane %v3130, %v3134
        %v3136 = vlaneseq
        %v3137 = vshrl.u32 %v3136, 7
        %v3138 = vsub.s32 1, %v3137
        %v3139 = vrot.slane %v3130, %v3138
        %v3142 = vmul.f32 %v3129, %v3135
        %v3143 = vmul.f32 %v3128, %v3139
        %3144 = vst [vmem:[#allocation3 + $0x60] sm:$0xf] %v3142
        %3145 = vst [vmem:[#allocation3 + $0x68] sm:$0xf] %v3143
        %3146 = vrot.lane.b32.xlu0 %v2822, 29
        %v3147 = vpop.permute.xlu0 %3146
        %3148 = vrot.lane.b32.xlu0 %v2823, 29
        %v3149 = vpop.permute.xlu0 %3148
        %v3150 = vsel %vm1107, %v3147, %v3149
        %v3151 = vsel %vm1107, %v3149, %v3147
        %v3152 = vld [vmem:[%s1112] ss:$8 sm:$0x3]
        %v3154 = vlaneseq
        %v3155 = vshrl.u32 %v3154, 7
        %v3156 = vsub.s32 0, %v3155
        %v3157 = vrot.slane %v3152, %v3156
        %v3158 = vlaneseq
        %v3159 = vshrl.u32 %v3158, 7
        %v3160 = vsub.s32 1, %v3159
        %v3161 = vrot.slane %v3152, %v3160
        %v3164 = vmul.f32 %v3151, %v3157
        %v3165 = vmul.f32 %v3150, %v3161
        %v3168 = vrot.slane %v3164, 4
        %v3169 = vrot.slane %v3165, 4
        %3172 = vst [vmem:[#allocation3 + $0x60] sm:$0xf0] %v3168
        %3173 = vst [vmem:[#allocation3 + $0x68] sm:$0xf0] %v3169
        %3174 = vrot.lane.b32.xlu0 %v2822, 19
        %v3175 = vpop.permute.xlu0 %3174
        %3176 = vrot.lane.b32.xlu0 %v2823, 19
        %v3177 = vpop.permute.xlu0 %3176
        %v3178 = vsel %vm1141, %v3175, %v3177
        %v3179 = vsel %vm1141, %v3177, %v3175
        %v3180 = vld [vmem:[%s1146] ss:$8 sm:$0x3]
        %v3182 = vlaneseq
        %v3183 = vshrl.u32 %v3182, 7
        %v3184 = vsub.s32 0, %v3183
        %v3185 = vrot.slane %v3180, %v3184
        %v3186 = vlaneseq
        %v3187 = vshrl.u32 %v3186, 7
        %v3188 = vsub.s32 1, %v3187
        %v3189 = vrot.slane %v3180, %v3188
        %v3192 = vmul.f32 %v3179, %v3185
        %v3193 = vmul.f32 %v3178, %v3189
        %3194 = vst [vmem:[#allocation3 + $0x70] sm:$0xf] %v3192
        %3195 = vst [vmem:[#allocation3 + $0x78] sm:$0xf] %v3193
        %3196 = vrot.lane.b32.xlu0 %v2822, 18
        %v3197 = vpop.permute.xlu0 %3196
        %3198 = vrot.lane.b32.xlu0 %v2823, 18
        %v3199 = vpop.permute.xlu0 %3198
        %v3200 = vsel %vm1175, %v3197, %v3199
        %v3201 = vsel %vm1175, %v3199, %v3197
        %v3202 = vld [vmem:[%s1180] ss:$8 sm:$0x3]
        %v3204 = vlaneseq
        %v3205 = vshrl.u32 %v3204, 7
        %v3206 = vsub.s32 0, %v3205
        %v3207 = vrot.slane %v3202, %v3206
        %v3208 = vlaneseq
        %v3209 = vshrl.u32 %v3208, 7
        %v3210 = vsub.s32 1, %v3209
        %v3211 = vrot.slane %v3202, %v3210
        %v3214 = vmul.f32 %v3201, %v3207
        %v3215 = vmul.f32 %v3200, %v3211
        %v3218 = vrot.slane %v3214, 4
        %v3219 = vrot.slane %v3215, 4
        %3222 = vst [vmem:[#allocation3 + $0x70] sm:$0xf0] %v3218
        %3223 = vst [vmem:[#allocation3 + $0x78] sm:$0xf0] %v3219
        %3224 = vrot.lane.b32.xlu0 %v2822, 17
        %v3225 = vpop.permute.xlu0 %3224
        %3226 = vrot.lane.b32.xlu0 %v2823, 17
        %v3227 = vpop.permute.xlu0 %3226
        %v3228 = vsel %vm1209, %v3225, %v3227
        %v3229 = vsel %vm1209, %v3227, %v3225
        %v3230 = vld [vmem:[%s1214] ss:$8 sm:$0x3]
        %v3232 = vlaneseq
        %v3233 = vshrl.u32 %v3232, 7
        %v3234 = vsub.s32 0, %v3233
        %v3235 = vrot.slane %v3230, %v3234
        %v3236 = vlaneseq
        %v3237 = vshrl.u32 %v3236, 7
        %v3238 = vsub.s32 1, %v3237
        %v3239 = vrot.slane %v3230, %v3238
        %v3242 = vmul.f32 %v3229, %v3235
        %v3243 = vmul.f32 %v3228, %v3239
        %3244 = vst [vmem:[#allocation3 + $0x80] sm:$0xf] %v3242
        %3245 = vst [vmem:[#allocation3 + $0x88] sm:$0xf] %v3243
        %3246 = vrot.lane.b32.xlu0 %v2822, 16
        %v3247 = vpop.permute.xlu0 %3246
        %3248 = vrot.lane.b32.xlu0 %v2823, 16
        %v3249 = vpop.permute.xlu0 %3248
        %v3250 = vsel %vm1243, %v3247, %v3249
        %v3251 = vsel %vm1243, %v3249, %v3247
        %v3252 = vld [vmem:[%s1248] ss:$8 sm:$0x3]
        %v3254 = vlaneseq
        %v3255 = vshrl.u32 %v3254, 7
        %v3256 = vsub.s32 0, %v3255
        %v3257 = vrot.slane %v3252, %v3256
        %v3258 = vlaneseq
        %v3259 = vshrl.u32 %v3258, 7
        %v3260 = vsub.s32 1, %v3259
        %v3261 = vrot.slane %v3252, %v3260
        %v3264 = vmul.f32 %v3251, %v3257
        %v3265 = vmul.f32 %v3250, %v3261
        %v3268 = vrot.slane %v3264, 4
        %v3269 = vrot.slane %v3265, 4
        %3272 = vst [vmem:[#allocation3 + $0x80] sm:$0xf0] %v3268
        %3273 = vst [vmem:[#allocation3 + $0x88] sm:$0xf0] %v3269
        %3274 = vrot.lane.b32.xlu0 %v2822, 15
        %v3275 = vpop.permute.xlu0 %3274
        %3276 = vrot.lane.b32.xlu0 %v2823, 15
        %v3277 = vpop.permute.xlu0 %3276
        %v3278 = vsel %vm1277, %v3275, %v3277
        %v3279 = vsel %vm1277, %v3277, %v3275
        %v3280 = vld [vmem:[%s1282] ss:$8 sm:$0x3]
        %v3282 = vlaneseq
        %v3283 = vshrl.u32 %v3282, 7
        %v3284 = vsub.s32 0, %v3283
        %v3285 = vrot.slane %v3280, %v3284
        %v3286 = vlaneseq
        %v3287 = vshrl.u32 %v3286, 7
        %v3288 = vsub.s32 1, %v3287
        %v3289 = vrot.slane %v3280, %v3288
        %v3292 = vmul.f32 %v3279, %v3285
        %v3293 = vmul.f32 %v3278, %v3289
        %3294 = vst [vmem:[#allocation3 + $0x90] sm:$0xf] %v3292
        %3295 = vst [vmem:[#allocation3 + $0x98] sm:$0xf] %v3293
        %3296 = vrot.lane.b32.xlu0 %v2822, 14
        %v3297 = vpop.permute.xlu0 %3296
        %3298 = vrot.lane.b32.xlu0 %v2823, 14
        %v3299 = vpop.permute.xlu0 %3298
        %v3300 = vsel %vm1311, %v3297, %v3299
        %v3301 = vsel %vm1311, %v3299, %v3297
        %v3302 = vld [vmem:[%s1316] ss:$8 sm:$0x3]
        %v3304 = vlaneseq
        %v3305 = vshrl.u32 %v3304, 7
        %v3306 = vsub.s32 0, %v3305
        %v3307 = vrot.slane %v3302, %v3306
        %v3308 = vlaneseq
        %v3309 = vshrl.u32 %v3308, 7
        %v3310 = vsub.s32 1, %v3309
        %v3311 = vrot.slane %v3302, %v3310
        %v3314 = vmul.f32 %v3301, %v3307
        %v3315 = vmul.f32 %v3300, %v3311
        %v3318 = vrot.slane %v3314, 4
        %v3319 = vrot.slane %v3315, 4
        %3322 = vst [vmem:[#allocation3 + $0x90] sm:$0xf0] %v3318
        %3323 = vst [vmem:[#allocation3 + $0x98] sm:$0xf0] %v3319
        %3324 = vrot.lane.b32.xlu0 %v2822, 13
        %v3325 = vpop.permute.xlu0 %3324
        %3326 = vrot.lane.b32.xlu0 %v2823, 13
        %v3327 = vpop.permute.xlu0 %3326
        %v3328 = vsel %vm1345, %v3325, %v3327
        %v3329 = vsel %vm1345, %v3327, %v3325
        %v3330 = vld [vmem:[%s1350] ss:$8 sm:$0x3]
        %v3332 = vlaneseq
        %v3333 = vshrl.u32 %v3332, 7
        %v3334 = vsub.s32 0, %v3333
        %v3335 = vrot.slane %v3330, %v3334
        %v3336 = vlaneseq
        %v3337 = vshrl.u32 %v3336, 7
        %v3338 = vsub.s32 1, %v3337
        %v3339 = vrot.slane %v3330, %v3338
        %v3342 = vmul.f32 %v3329, %v3335
        %v3343 = vmul.f32 %v3328, %v3339
        %3344 = vst [vmem:[#allocation3 + $0xa0] sm:$0xf] %v3342
        %3345 = vst [vmem:[#allocation3 + $0xa8] sm:$0xf] %v3343
        %3346 = vrot.lane.b32.xlu0 %v2822, 3
        %v3347 = vpop.permute.xlu0 %3346
        %3348 = vrot.lane.b32.xlu0 %v2823, 3
        %v3349 = vpop.permute.xlu0 %3348
        %v3350 = vsel %vm1379, %v3347, %v3349
        %v3351 = vsel %vm1379, %v3349, %v3347
        %v3352 = vld [vmem:[%s1384] ss:$8 sm:$0x3]
        %v3354 = vlaneseq
        %v3355 = vshrl.u32 %v3354, 7
        %v3356 = vsub.s32 0, %v3355
        %v3357 = vrot.slane %v3352, %v3356
        %v3358 = vlaneseq
        %v3359 = vshrl.u32 %v3358, 7
        %v3360 = vsub.s32 1, %v3359
        %v3361 = vrot.slane %v3352, %v3360
        %v3364 = vmul.f32 %v3351, %v3357
        %v3365 = vmul.f32 %v3350, %v3361
        %v3368 = vrot.slane %v3364, 4
        %v3369 = vrot.slane %v3365, 4
        %3372 = vst [vmem:[#allocation3 + $0xa0] sm:$0xf0] %v3368
        %3373 = vst [vmem:[#allocation3 + $0xa8] sm:$0xf0] %v3369
        %3374 = vrot.lane.b32.xlu0 %v2822, 2
        %v3375 = vpop.permute.xlu0 %3374
        %3376 = vrot.lane.b32.xlu0 %v2823, 2
        %v3377 = vpop.permute.xlu0 %3376
        %v3378 = vsel %vm1413, %v3375, %v3377
        %v3379 = vsel %vm1413, %v3377, %v3375
        %v3380 = vld [vmem:[%s1418] ss:$8 sm:$0x3]
        %v3382 = vlaneseq
        %v3383 = vshrl.u32 %v3382, 7
        %v3384 = vsub.s32 0, %v3383
        %v3385 = vrot.slane %v3380, %v3384
        %v3386 = vlaneseq
        %v3387 = vshrl.u32 %v3386, 7
        %v3388 = vsub.s32 1, %v3387
        %v3389 = vrot.slane %v3380, %v3388
        %v3392 = vmul.f32 %v3379, %v3385
        %v3393 = vmul.f32 %v3378, %v3389
        %3394 = vst [vmem:[#allocation3 + $0xb0] sm:$0xf] %v3392
        %3395 = vst [vmem:[#allocation3 + $0xb8] sm:$0xf] %v3393
        %3396 = vrot.lane.b32.xlu0 %v2822, 1
        %v3397 = vpop.permute.xlu0 %3396
        %3398 = vrot.lane.b32.xlu0 %v2823, 1
        %v3399 = vpop.permute.xlu0 %3398
        %v3400 = vsel %vm1447, %v3397, %v3399
        %v3401 = vsel %vm1447, %v3399, %v3397
        %v3402 = vld [vmem:[%s1452] ss:$8 sm:$0x3]
        %v3404 = vlaneseq
        %v3405 = vshrl.u32 %v3404, 7
        %v3406 = vsub.s32 0, %v3405
        %v3407 = vrot.slane %v3402, %v3406
        %v3408 = vlaneseq
        %v3409 = vshrl.u32 %v3408, 7
        %v3410 = vsub.s32 1, %v3409
        %v3411 = vrot.slane %v3402, %v3410
        %v3414 = vmul.f32 %v3401, %v3407
        %v3415 = vmul.f32 %v3400, %v3411
        %v3418 = vrot.slane %v3414, 4
        %v3419 = vrot.slane %v3415, 4
        %3422 = vst [vmem:[#allocation3 + $0xb0] sm:$0xf0] %v3418
        %3423 = vst [vmem:[#allocation3 + $0xb8] sm:$0xf0] %v3419
        %v3424 = vld [vmem:[%s1473] ss:$8 sm:$0x3]
        %v3426 = vlaneseq
        %v3427 = vshrl.u32 %v3426, 7
        %v3428 = vsub.s32 0, %v3427
        %v3429 = vrot.slane %v3424, %v3428
        %v3430 = vlaneseq
        %v3431 = vshrl.u32 %v3430, 7
        %v3432 = vsub.s32 1, %v3431
        %v3433 = vrot.slane %v3424, %v3432
        %v3436 = vmul.f32 %v2822, %v3429
        %v3437 = vmul.f32 %v2823, %v3433
        %3438 = vst [vmem:[#allocation3 + $0xc0] sm:$0xf] %v3436
        %3439 = vst [vmem:[#allocation3 + $0xc8] sm:$0xf] %v3437
        %3440 = vrot.lane.b32.xlu0 %v2822, 127
        %v3441 = vpop.permute.xlu0 %3440
        %3442 = vrot.lane.b32.xlu0 %v2823, 127
        %v3443 = vpop.permute.xlu0 %3442
        %v3444 = vsel %vm1502, %v3441, %v3443
        %v3445 = vsel %vm1502, %v3443, %v3441
        %v3446 = vld [vmem:[%s1507] ss:$8 sm:$0x3]
        %v3448 = vlaneseq
        %v3449 = vshrl.u32 %v3448, 7
        %v3450 = vsub.s32 0, %v3449
        %v3451 = vrot.slane %v3446, %v3450
        %v3452 = vlaneseq
        %v3453 = vshrl.u32 %v3452, 7
        %v3454 = vsub.s32 1, %v3453
        %v3455 = vrot.slane %v3446, %v3454
        %v3458 = vmul.f32 %v3444, %v3451
        %v3459 = vmul.f32 %v3445, %v3455
        %v3462 = vrot.slane %v3458, 4
        %v3463 = vrot.slane %v3459, 4
        %3466 = vst [vmem:[#allocation3 + $0xc0] sm:$0xf0] %v3462
        %3467 = vst [vmem:[#allocation3 + $0xc8] sm:$0xf0] %v3463
        %3468 = vrot.lane.b32.xlu0 %v2822, 126
        %v3469 = vpop.permute.xlu0 %3468
        %3470 = vrot.lane.b32.xlu0 %v2823, 126
        %v3471 = vpop.permute.xlu0 %3470
        %v3472 = vsel %vm1536, %v3469, %v3471
        %v3473 = vsel %vm1536, %v3471, %v3469
        %v3474 = vld [vmem:[%s1541] ss:$8 sm:$0x3]
        %v3476 = vlaneseq
        %v3477 = vshrl.u32 %v3476, 7
        %v3478 = vsub.s32 0, %v3477
        %v3479 = vrot.slane %v3474, %v3478
        %v3480 = vlaneseq
        %v3481 = vshrl.u32 %v3480, 7
        %v3482 = vsub.s32 1, %v3481
        %v3483 = vrot.slane %v3474, %v3482
        %v3486 = vmul.f32 %v3472, %v3479
        %v3487 = vmul.f32 %v3473, %v3483
        %3488 = vst [vmem:[#allocation3 + $0xd0] sm:$0xf] %v3486
        %3489 = vst [vmem:[#allocation3 + $0xd8] sm:$0xf] %v3487
        %3490 = vrot.lane.b32.xlu0 %v2822, 125
        %v3491 = vpop.permute.xlu0 %3490
        %3492 = vrot.lane.b32.xlu0 %v2823, 125
        %v3493 = vpop.permute.xlu0 %3492
        %v3494 = vsel %vm1570, %v3491, %v3493
        %v3495 = vsel %vm1570, %v3493, %v3491
        %v3496 = vld [vmem:[%s1575] ss:$8 sm:$0x3]
        %v3498 = vlaneseq
        %v3499 = vshrl.u32 %v3498, 7
        %v3500 = vsub.s32 0, %v3499
        %v3501 = vrot.slane %v3496, %v3500
        %v3502 = vlaneseq
        %v3503 = vshrl.u32 %v3502, 7
        %v3504 = vsub.s32 1, %v3503
        %v3505 = vrot.slane %v3496, %v3504
        %v3508 = vmul.f32 %v3494, %v3501
        %v3509 = vmul.f32 %v3495, %v3505
        %v3512 = vrot.slane %v3508, 4
        %v3513 = vrot.slane %v3509, 4
        %3516 = vst [vmem:[#allocation3 + $0xd0] sm:$0xf0] %v3512
        %3517 = vst [vmem:[#allocation3 + $0xd8] sm:$0xf0] %v3513
        %3518 = vrot.lane.b32.xlu0 %v2822, 115
        %v3519 = vpop.permute.xlu0 %3518
        %3520 = vrot.lane.b32.xlu0 %v2823, 115
        %v3521 = vpop.permute.xlu0 %3520
        %v3522 = vsel %vm1604, %v3519, %v3521
        %v3523 = vsel %vm1604, %v3521, %v3519
        %v3524 = vld [vmem:[%s1609] ss:$8 sm:$0x3]
        %v3526 = vlaneseq
        %v3527 = vshrl.u32 %v3526, 7
        %v3528 = vsub.s32 0, %v3527
        %v3529 = vrot.slane %v3524, %v3528
        %v3530 = vlaneseq
        %v3531 = vshrl.u32 %v3530, 7
        %v3532 = vsub.s32 1, %v3531
        %v3533 = vrot.slane %v3524, %v3532
        %v3536 = vmul.f32 %v3522, %v3529
        %v3537 = vmul.f32 %v3523, %v3533
        %3538 = vst [vmem:[#allocation3 + $0xe0] sm:$0xf] %v3536
        %3539 = vst [vmem:[#allocation3 + $0xe8] sm:$0xf] %v3537
        %3540 = vrot.lane.b32.xlu0 %v2822, 114
        %v3541 = vpop.permute.xlu0 %3540
        %3542 = vrot.lane.b32.xlu0 %v2823, 114
        %v3543 = vpop.permute.xlu0 %3542
        %v3544 = vsel %vm1638, %v3541, %v3543
        %v3545 = vsel %vm1638, %v3543, %v3541
        %v3546 = vld [vmem:[%s1643] ss:$8 sm:$0x3]
        %v3548 = vlaneseq
        %v3549 = vshrl.u32 %v3548, 7
        %v3550 = vsub.s32 0, %v3549
        %v3551 = vrot.slane %v3546, %v3550
        %v3552 = vlaneseq
        %v3553 = vshrl.u32 %v3552, 7
        %v3554 = vsub.s32 1, %v3553
        %v3555 = vrot.slane %v3546, %v3554
        %v3558 = vmul.f32 %v3544, %v3551
        %v3559 = vmul.f32 %v3545, %v3555
        %v3562 = vrot.slane %v3558, 4
        %v3563 = vrot.slane %v3559, 4
        %3566 = vst [vmem:[#allocation3 + $0xe0] sm:$0xf0] %v3562
        %3567 = vst [vmem:[#allocation3 + $0xe8] sm:$0xf0] %v3563
        %3568 = vrot.lane.b32.xlu0 %v2822, 113
        %v3569 = vpop.permute.xlu0 %3568
        %3570 = vrot.lane.b32.xlu0 %v2823, 113
        %v3571 = vpop.permute.xlu0 %3570
        %v3572 = vsel %vm1672, %v3569, %v3571
        %v3573 = vsel %vm1672, %v3571, %v3569
        %v3574 = vld [vmem:[%s1677] ss:$8 sm:$0x3]
        %v3576 = vlaneseq
        %v3577 = vshrl.u32 %v3576, 7
        %v3578 = vsub.s32 0, %v3577
        %v3579 = vrot.slane %v3574, %v3578
        %v3580 = vlaneseq
        %v3581 = vshrl.u32 %v3580, 7
        %v3582 = vsub.s32 1, %v3581
        %v3583 = vrot.slane %v3574, %v3582
        %v3586 = vmul.f32 %v3572, %v3579
        %v3587 = vmul.f32 %v3573, %v3583
        %3588 = vst [vmem:[#allocation3 + $0xf0] sm:$0xf] %v3586
        %3589 = vst [vmem:[#allocation3 + $0xf8] sm:$0xf] %v3587
        %3590 = vrot.lane.b32.xlu0 %v2822, 112
        %v3591 = vpop.permute.xlu0 %3590
        %3592 = vrot.lane.b32.xlu0 %v2823, 112
        %v3593 = vpop.permute.xlu0 %3592
        %v3594 = vsel %vm1706, %v3591, %v3593
        %v3595 = vsel %vm1706, %v3593, %v3591
        %v3596 = vld [vmem:[%s1711] ss:$8 sm:$0x3]
        %v3598 = vlaneseq
        %v3599 = vshrl.u32 %v3598, 7
        %v3600 = vsub.s32 0, %v3599
        %v3601 = vrot.slane %v3596, %v3600
        %v3602 = vlaneseq
        %v3603 = vshrl.u32 %v3602, 7
        %v3604 = vsub.s32 1, %v3603
        %v3605 = vrot.slane %v3596, %v3604
        %v3608 = vmul.f32 %v3594, %v3601
        %v3609 = vmul.f32 %v3595, %v3605
        %v3612 = vrot.slane %v3608, 4
        %v3613 = vrot.slane %v3609, 4
        %3616 = vst [vmem:[#allocation3 + $0xf0] sm:$0xf0] %v3612
        %3617 = vst [vmem:[#allocation3 + $0xf8] sm:$0xf0] %v3613
        %3618 = vrot.lane.b32.xlu0 %v2822, 111
        %v3619 = vpop.permute.xlu0 %3618
        %3620 = vrot.lane.b32.xlu0 %v2823, 111
        %v3621 = vpop.permute.xlu0 %3620
        %v3622 = vsel %vm1740, %v3619, %v3621
        %v3623 = vsel %vm1740, %v3621, %v3619
        %v3624 = vld [vmem:[%s1745] ss:$8 sm:$0x3]
        %v3626 = vlaneseq
        %v3627 = vshrl.u32 %v3626, 7
        %v3628 = vsub.s32 0, %v3627
        %v3629 = vrot.slane %v3624, %v3628
        %v3630 = vlaneseq
        %v3631 = vshrl.u32 %v3630, 7
        %v3632 = vsub.s32 1, %v3631
        %v3633 = vrot.slane %v3624, %v3632
        %v3636 = vmul.f32 %v3622, %v3629
        %v3637 = vmul.f32 %v3623, %v3633
        %3638 = vst [vmem:[#allocation3 + $0x100] sm:$0xf] %v3636
        %3639 = vst [vmem:[#allocation3 + $0x108] sm:$0xf] %v3637
        %3640 = vrot.lane.b32.xlu0 %v2822, 110
        %v3641 = vpop.permute.xlu0 %3640
        %3642 = vrot.lane.b32.xlu0 %v2823, 110
        %v3643 = vpop.permute.xlu0 %3642
        %v3644 = vsel %vm1774, %v3641, %v3643
        %v3645 = vsel %vm1774, %v3643, %v3641
        %v3646 = vld [vmem:[%s1779] ss:$8 sm:$0x3]
        %v3648 = vlaneseq
        %v3649 = vshrl.u32 %v3648, 7
        %v3650 = vsub.s32 0, %v3649
        %v3651 = vrot.slane %v3646, %v3650
        %v3652 = vlaneseq
        %v3653 = vshrl.u32 %v3652, 7
        %v3654 = vsub.s32 1, %v3653
        %v3655 = vrot.slane %v3646, %v3654
        %v3658 = vmul.f32 %v3644, %v3651
        %v3659 = vmul.f32 %v3645, %v3655
        %v3662 = vrot.slane %v3658, 4
        %v3663 = vrot.slane %v3659, 4
        %3666 = vst [vmem:[#allocation3 + $0x100] sm:$0xf0] %v3662
        %3667 = vst [vmem:[#allocation3 + $0x108] sm:$0xf0] %v3663
        %3668 = vrot.lane.b32.xlu0 %v2822, 109
        %v3669 = vpop.permute.xlu0 %3668
        %3670 = vrot.lane.b32.xlu0 %v2823, 109
        %v3671 = vpop.permute.xlu0 %3670
        %v3672 = vsel %vm1808, %v3669, %v3671
        %v3673 = vsel %vm1808, %v3671, %v3669
        %v3674 = vld [vmem:[%s1813] ss:$8 sm:$0x3]
        %v3676 = vlaneseq
        %v3677 = vshrl.u32 %v3676, 7
        %v3678 = vsub.s32 0, %v3677
        %v3679 = vrot.slane %v3674, %v3678
        %v3680 = vlaneseq
        %v3681 = vshrl.u32 %v3680, 7
        %v3682 = vsub.s32 1, %v3681
        %v3683 = vrot.slane %v3674, %v3682
        %v3686 = vmul.f32 %v3672, %v3679
        %v3687 = vmul.f32 %v3673, %v3683
        %3688 = vst [vmem:[#allocation3 + $0x110] sm:$0xf] %v3686
        %3689 = vst [vmem:[#allocation3 + $0x118] sm:$0xf] %v3687
        %3690 = vrot.lane.b32.xlu0 %v2822, 99
        %v3691 = vpop.permute.xlu0 %3690
        %3692 = vrot.lane.b32.xlu0 %v2823, 99
        %v3693 = vpop.permute.xlu0 %3692
        %v3694 = vsel %vm1842, %v3691, %v3693
        %v3695 = vsel %vm1842, %v3693, %v3691
        %v3696 = vld [vmem:[%s1847] ss:$8 sm:$0x3]
        %v3698 = vlaneseq
        %v3699 = vshrl.u32 %v3698, 7
        %v3700 = vsub.s32 0, %v3699
        %v3701 = vrot.slane %v3696, %v3700
        %v3702 = vlaneseq
        %v3703 = vshrl.u32 %v3702, 7
        %v3704 = vsub.s32 1, %v3703
        %v3705 = vrot.slane %v3696, %v3704
        %v3708 = vmul.f32 %v3694, %v3701
        %v3709 = vmul.f32 %v3695, %v3705
        %v3712 = vrot.slane %v3708, 4
        %v3713 = vrot.slane %v3709, 4
        %3716 = vst [vmem:[#allocation3 + $0x110] sm:$0xf0] %v3712
        %3717 = vst [vmem:[#allocation3 + $0x118] sm:$0xf0] %v3713
        %3718 = vrot.lane.b32.xlu0 %v2822, 98
        %v3719 = vpop.permute.xlu0 %3718
        %3720 = vrot.lane.b32.xlu0 %v2823, 98
        %v3721 = vpop.permute.xlu0 %3720
        %v3722 = vsel %vm1876, %v3719, %v3721
        %v3723 = vsel %vm1876, %v3721, %v3719
        %v3724 = vld [vmem:[%s1881] ss:$8 sm:$0x3]
        %v3726 = vlaneseq
        %v3727 = vshrl.u32 %v3726, 7
        %v3728 = vsub.s32 0, %v3727
        %v3729 = vrot.slane %v3724, %v3728
        %v3730 = vlaneseq
        %v3731 = vshrl.u32 %v3730, 7
        %v3732 = vsub.s32 1, %v3731
        %v3733 = vrot.slane %v3724, %v3732
        %v3736 = vmul.f32 %v3722, %v3729
        %v3737 = vmul.f32 %v3723, %v3733
        %3738 = vst [vmem:[#allocation3 + $0x120] sm:$0xf] %v3736
        %3739 = vst [vmem:[#allocation3 + $0x128] sm:$0xf] %v3737
        %3740 = vrot.lane.b32.xlu0 %v2822, 97
        %v3741 = vpop.permute.xlu0 %3740
        %3742 = vrot.lane.b32.xlu0 %v2823, 97
        %v3743 = vpop.permute.xlu0 %3742
        %v3744 = vsel %vm1910, %v3741, %v3743
        %v3745 = vsel %vm1910, %v3743, %v3741
        %v3746 = vld [vmem:[%s1915] ss:$8 sm:$0x3]
        %v3748 = vlaneseq
        %v3749 = vshrl.u32 %v3748, 7
        %v3750 = vsub.s32 0, %v3749
        %v3751 = vrot.slane %v3746, %v3750
        %v3752 = vlaneseq
        %v3753 = vshrl.u32 %v3752, 7
        %v3754 = vsub.s32 1, %v3753
        %v3755 = vrot.slane %v3746, %v3754
        %v3758 = vmul.f32 %v3744, %v3751
        %v3759 = vmul.f32 %v3745, %v3755
        %v3762 = vrot.slane %v3758, 4
        %v3763 = vrot.slane %v3759, 4
        %3766 = vst [vmem:[#allocation3 + $0x120] sm:$0xf0] %v3762
        %3767 = vst [vmem:[#allocation3 + $0x128] sm:$0xf0] %v3763
        %3768 = vrot.lane.b32.xlu0 %v2822, 96
        %v3769 = vpop.permute.xlu0 %3768
        %3770 = vrot.lane.b32.xlu0 %v2823, 96
        %v3771 = vpop.permute.xlu0 %3770
        %v3772 = vsel %vm1944, %v3769, %v3771
        %v3773 = vsel %vm1944, %v3771, %v3769
        %v3774 = vld [vmem:[%s1949] ss:$8 sm:$0x3]
        %v3776 = vlaneseq
        %v3777 = vshrl.u32 %v3776, 7
        %v3778 = vsub.s32 0, %v3777
        %v3779 = vrot.slane %v3774, %v3778
        %v3780 = vlaneseq
        %v3781 = vshrl.u32 %v3780, 7
        %v3782 = vsub.s32 1, %v3781
        %v3783 = vrot.slane %v3774, %v3782
        %v3786 = vmul.f32 %v3772, %v3779
        %v3787 = vmul.f32 %v3773, %v3783
        %3788 = vst [vmem:[#allocation3 + $0x130] sm:$0xf] %v3786
        %3789 = vst [vmem:[#allocation3 + $0x138] sm:$0xf] %v3787
        %3790 = vrot.lane.b32.xlu0 %v2822, 95
        %v3791 = vpop.permute.xlu0 %3790
        %3792 = vrot.lane.b32.xlu0 %v2823, 95
        %v3793 = vpop.permute.xlu0 %3792
        %v3794 = vsel %vm1978, %v3791, %v3793
        %v3795 = vsel %vm1978, %v3793, %v3791
        %v3796 = vld [vmem:[%s1983] ss:$8 sm:$0x3]
        %v3798 = vlaneseq
        %v3799 = vshrl.u32 %v3798, 7
        %v3800 = vsub.s32 0, %v3799
        %v3801 = vrot.slane %v3796, %v3800
        %v3802 = vlaneseq
        %v3803 = vshrl.u32 %v3802, 7
        %v3804 = vsub.s32 1, %v3803
        %v3805 = vrot.slane %v3796, %v3804
        %v3808 = vmul.f32 %v3794, %v3801
        %v3809 = vmul.f32 %v3795, %v3805
        %v3812 = vrot.slane %v3808, 4
        %v3813 = vrot.slane %v3809, 4
        %3816 = vst [vmem:[#allocation3 + $0x130] sm:$0xf0] %v3812
        %3817 = vst [vmem:[#allocation3 + $0x138] sm:$0xf0] %v3813
        %3818 = vrot.lane.b32.xlu0 %v2822, 94
        %v3819 = vpop.permute.xlu0 %3818
        %3820 = vrot.lane.b32.xlu0 %v2823, 94
        %v3821 = vpop.permute.xlu0 %3820
        %v3822 = vsel %vm2012, %v3819, %v3821
        %v3823 = vsel %vm2012, %v3821, %v3819
        %v3824 = vld [vmem:[%s2017] ss:$8 sm:$0x3]
        %v3826 = vlaneseq
        %v3827 = vshrl.u32 %v3826, 7
        %v3828 = vsub.s32 0, %v3827
        %v3829 = vrot.slane %v3824, %v3828
        %v3830 = vlaneseq
        %v3831 = vshrl.u32 %v3830, 7
        %v3832 = vsub.s32 1, %v3831
        %v3833 = vrot.slane %v3824, %v3832
        %v3836 = vmul.f32 %v3822, %v3829
        %v3837 = vmul.f32 %v3823, %v3833
        %3838 = vst [vmem:[#allocation3 + $0x140] sm:$0xf] %v3836
        %3839 = vst [vmem:[#allocation3 + $0x148] sm:$0xf] %v3837
        %3840 = vrot.lane.b32.xlu0 %v2822, 93
        %v3841 = vpop.permute.xlu0 %3840
        %3842 = vrot.lane.b32.xlu0 %v2823, 93
        %v3843 = vpop.permute.xlu0 %3842
        %v3844 = vsel %vm2046, %v3841, %v3843
        %v3845 = vsel %vm2046, %v3843, %v3841
        %v3846 = vld [vmem:[%s2051] ss:$8 sm:$0x3]
        %v3848 = vlaneseq
        %v3849 = vshrl.u32 %v3848, 7
        %v3850 = vsub.s32 0, %v3849
        %v3851 = vrot.slane %v3846, %v3850
        %v3852 = vlaneseq
        %v3853 = vshrl.u32 %v3852, 7
        %v3854 = vsub.s32 1, %v3853
        %v3855 = vrot.slane %v3846, %v3854
        %v3858 = vmul.f32 %v3844, %v3851
        %v3859 = vmul.f32 %v3845, %v3855
        %v3862 = vrot.slane %v3858, 4
        %v3863 = vrot.slane %v3859, 4
        %3866 = vst [vmem:[#allocation3 + $0x140] sm:$0xf0] %v3862
        %3867 = vst [vmem:[#allocation3 + $0x148] sm:$0xf0] %v3863
        %3868 = vrot.lane.b32.xlu0 %v2822, 83
        %v3869 = vpop.permute.xlu0 %3868
        %3870 = vrot.lane.b32.xlu0 %v2823, 83
        %v3871 = vpop.permute.xlu0 %3870
        %v3872 = vsel %vm2080, %v3869, %v3871
        %v3873 = vsel %vm2080, %v3871, %v3869
        %v3874 = vld [vmem:[%s2085] ss:$8 sm:$0x3]
        %v3876 = vlaneseq
        %v3877 = vshrl.u32 %v3876, 7
        %v3878 = vsub.s32 0, %v3877
        %v3879 = vrot.slane %v3874, %v3878
        %v3880 = vlaneseq
        %v3881 = vshrl.u32 %v3880, 7
        %v3882 = vsub.s32 1, %v3881
        %v3883 = vrot.slane %v3874, %v3882
        %v3886 = vmul.f32 %v3872, %v3879
        %v3887 = vmul.f32 %v3873, %v3883
        %3888 = vst [vmem:[#allocation3 + $0x150] sm:$0xf] %v3886
        %3889 = vst [vmem:[#allocation3 + $0x158] sm:$0xf] %v3887
        %3890 = vrot.lane.b32.xlu0 %v2822, 82
        %v3891 = vpop.permute.xlu0 %3890
        %3892 = vrot.lane.b32.xlu0 %v2823, 82
        %v3893 = vpop.permute.xlu0 %3892
        %v3894 = vsel %vm2114, %v3891, %v3893
        %v3895 = vsel %vm2114, %v3893, %v3891
        %v3896 = vld [vmem:[%s2119] ss:$8 sm:$0x3]
        %v3898 = vlaneseq
        %v3899 = vshrl.u32 %v3898, 7
        %v3900 = vsub.s32 0, %v3899
        %v3901 = vrot.slane %v3896, %v3900
        %v3902 = vlaneseq
        %v3903 = vshrl.u32 %v3902, 7
        %v3904 = vsub.s32 1, %v3903
        %v3905 = vrot.slane %v3896, %v3904
        %v3908 = vmul.f32 %v3894, %v3901
        %v3909 = vmul.f32 %v3895, %v3905
        %v3912 = vrot.slane %v3908, 4
        %v3913 = vrot.slane %v3909, 4
        %3916 = vst [vmem:[#allocation3 + $0x150] sm:$0xf0] %v3912
        %3917 = vst [vmem:[#allocation3 + $0x158] sm:$0xf0] %v3913
        %3918 = vrot.lane.b32.xlu0 %v2822, 81
        %v3919 = vpop.permute.xlu0 %3918
        %3920 = vrot.lane.b32.xlu0 %v2823, 81
        %v3921 = vpop.permute.xlu0 %3920
        %v3922 = vsel %vm2148, %v3919, %v3921
        %v3923 = vsel %vm2148, %v3921, %v3919
        %v3924 = vld [vmem:[%s2153] ss:$8 sm:$0x3]
        %v3926 = vlaneseq
        %v3927 = vshrl.u32 %v3926, 7
        %v3928 = vsub.s32 0, %v3927
        %v3929 = vrot.slane %v3924, %v3928
        %v3930 = vlaneseq
        %v3931 = vshrl.u32 %v3930, 7
        %v3932 = vsub.s32 1, %v3931
        %v3933 = vrot.slane %v3924, %v3932
        %v3936 = vmul.f32 %v3922, %v3929
        %v3937 = vmul.f32 %v3923, %v3933
        %3938 = vst [vmem:[#allocation3 + $0x160] sm:$0xf] %v3936
        %3939 = vst [vmem:[#allocation3 + $0x168] sm:$0xf] %v3937
        %3940 = vrot.lane.b32.xlu0 %v2822, 80
        %v3941 = vpop.permute.xlu0 %3940
        %3942 = vrot.lane.b32.xlu0 %v2823, 80
        %v3943 = vpop.permute.xlu0 %3942
        %v3944 = vsel %vm2182, %v3941, %v3943
        %v3945 = vsel %vm2182, %v3943, %v3941
        %v3946 = vld [vmem:[%s2187] ss:$8 sm:$0x3]
        %v3948 = vlaneseq
        %v3949 = vshrl.u32 %v3948, 7
        %v3950 = vsub.s32 0, %v3949
        %v3951 = vrot.slane %v3946, %v3950
        %v3952 = vlaneseq
        %v3953 = vshrl.u32 %v3952, 7
        %v3954 = vsub.s32 1, %v3953
        %v3955 = vrot.slane %v3946, %v3954
        %v3958 = vmul.f32 %v3944, %v3951
        %v3959 = vmul.f32 %v3945, %v3955
        %v3962 = vrot.slane %v3958, 4
        %v3963 = vrot.slane %v3959, 4
        %3966 = vst [vmem:[#allocation3 + $0x160] sm:$0xf0] %v3962
        %3967 = vst [vmem:[#allocation3 + $0x168] sm:$0xf0] %v3963
        %3968 = vrot.lane.b32.xlu0 %v2822, 79
        %v3969 = vpop.permute.xlu0 %3968
        %3970 = vrot.lane.b32.xlu0 %v2823, 79
        %v3971 = vpop.permute.xlu0 %3970
        %v3972 = vsel %vm2216, %v3969, %v3971
        %v3973 = vsel %vm2216, %v3971, %v3969
        %v3974 = vld [vmem:[%s2221] ss:$8 sm:$0x3]
        %v3976 = vlaneseq
        %v3977 = vshrl.u32 %v3976, 7
        %v3978 = vsub.s32 0, %v3977
        %v3979 = vrot.slane %v3974, %v3978
        %v3980 = vlaneseq
        %v3981 = vshrl.u32 %v3980, 7
        %v3982 = vsub.s32 1, %v3981
        %v3983 = vrot.slane %v3974, %v3982
        %v3986 = vmul.f32 %v3972, %v3979
        %v3987 = vmul.f32 %v3973, %v3983
        %3988 = vst [vmem:[#allocation3 + $0x170] sm:$0xf] %v3986
        %3989 = vst [vmem:[#allocation3 + $0x178] sm:$0xf] %v3987
        %3990 = vrot.lane.b32.xlu0 %v2822, 78
        %v3991 = vpop.permute.xlu0 %3990
        %3992 = vrot.lane.b32.xlu0 %v2823, 78
        %v3993 = vpop.permute.xlu0 %3992
        %v3994 = vsel %vm2250, %v3991, %v3993
        %v3995 = vsel %vm2250, %v3993, %v3991
        %v3996 = vld [vmem:[%s2255] ss:$8 sm:$0x3]
        %v3998 = vlaneseq
        %v3999 = vshrl.u32 %v3998, 7
        %v4000 = vsub.s32 0, %v3999
        %v4001 = vrot.slane %v3996, %v4000
        %v4002 = vlaneseq
        %v4003 = vshrl.u32 %v4002, 7
        %v4004 = vsub.s32 1, %v4003
        %v4005 = vrot.slane %v3996, %v4004
        %v4008 = vmul.f32 %v3994, %v4001
        %v4009 = vmul.f32 %v3995, %v4005
        %v4012 = vrot.slane %v4008, 4
        %v4013 = vrot.slane %v4009, 4
        %4016 = vst [vmem:[#allocation3 + $0x170] sm:$0xf0] %v4012
        %4017 = vst [vmem:[#allocation3 + $0x178] sm:$0xf0] %v4013
        %4018 = vrot.lane.b32.xlu0 %v2822, 77
        %v4019 = vpop.permute.xlu0 %4018
        %4020 = vrot.lane.b32.xlu0 %v2823, 77
        %v4021 = vpop.permute.xlu0 %4020
        %v4022 = vsel %vm2284, %v4019, %v4021
        %v4023 = vsel %vm2284, %v4021, %v4019
        %v4024 = vld [vmem:[%s2289] ss:$8 sm:$0x3]
        %v4026 = vlaneseq
        %v4027 = vshrl.u32 %v4026, 7
        %v4028 = vsub.s32 0, %v4027
        %v4029 = vrot.slane %v4024, %v4028
        %v4030 = vlaneseq
        %v4031 = vshrl.u32 %v4030, 7
        %v4032 = vsub.s32 1, %v4031
        %v4033 = vrot.slane %v4024, %v4032
        %v4036 = vmul.f32 %v4022, %v4029
        %v4037 = vmul.f32 %v4023, %v4033
        %4038 = vst [vmem:[#allocation3 + $0x180] sm:$0xf] %v4036
        %4039 = vst [vmem:[#allocation3 + $0x188] sm:$0xf] %v4037
        %v4040 = vld [vmem:[#allocation9] sm:$0xff]
        %v4041 = vld [vmem:[#allocation9 + $0x8] sm:$0xff]
        %v4042 = vld [vmem:[#allocation9 + $0x10] sm:$0xff]
        %v4043 = vld [vmem:[#allocation9 + $0x18] sm:$0xff]
        %v4044 = vld [vmem:[#allocation3] sm:$0xff]
        %v4045 = vld [vmem:[#allocation3 + $0x8] sm:$0xff]
        %v4046 = vld [vmem:[#allocation3 + $0x10] sm:$0xff]
        %v4047 = vld [vmem:[#allocation3 + $0x18] sm:$0xff]
        %v4048 = vld [vmem:[#allocation3 + $0x20] sm:$0xff]
        %v4049 = vld [vmem:[#allocation3 + $0x28] sm:$0xff]
        %v4050 = vld [vmem:[#allocation3 + $0x30] sm:$0xff]
        %v4051 = vld [vmem:[#allocation3 + $0x38] sm:$0xff]
        %v4052 = vld [vmem:[#allocation3 + $0x40] sm:$0xff]
        %v4053 = vld [vmem:[#allocation3 + $0x48] sm:$0xff]
        %v4054 = vld [vmem:[#allocation3 + $0x50] sm:$0xff]
        %v4055 = vld [vmem:[#allocation3 + $0x58] sm:$0xff]
        %v4056 = vld [vmem:[#allocation3 + $0x60] sm:$0xff]
        %v4057 = vld [vmem:[#allocation3 + $0x68] sm:$0xff]
        %v4058 = vld [vmem:[#allocation3 + $0x70] sm:$0xff]
        %v4059 = vld [vmem:[#allocation3 + $0x78] sm:$0xff]
        %v4060 = vld [vmem:[#allocation3 + $0x80] sm:$0xff]
        %v4061 = vld [vmem:[#allocation3 + $0x88] sm:$0xff]
        %v4062 = vld [vmem:[#allocation3 + $0x90] sm:$0xff]
        %v4063 = vld [vmem:[#allocation3 + $0x98] sm:$0xff]
        %v4064 = vld [vmem:[#allocation3 + $0xa0] sm:$0xff]
        %v4065 = vld [vmem:[#allocation3 + $0xa8] sm:$0xff]
        %v4066 = vld [vmem:[#allocation3 + $0xb0] sm:$0xff]
        %v4067 = vld [vmem:[#allocation3 + $0xb8] sm:$0xff]
        %v4068 = vld [vmem:[#allocation3 + $0xc0] sm:$0xff]
        %v4069 = vld [vmem:[#allocation3 + $0xc8] sm:$0xff]
        %v4070 = vld [vmem:[#allocation3 + $0xd0] sm:$0xff]
        %v4071 = vld [vmem:[#allocation3 + $0xd8] sm:$0xff]
        %v4072 = vld [vmem:[#allocation3 + $0xe0] sm:$0xff]
        %v4073 = vld [vmem:[#allocation3 + $0xe8] sm:$0xff]
        %v4074 = vld [vmem:[#allocation3 + $0xf0] sm:$0xff]
        %v4075 = vld [vmem:[#allocation3 + $0xf8] sm:$0xff]
        %v4076 = vld [vmem:[#allocation3 + $0x100] sm:$0xff]
        %v4077 = vld [vmem:[#allocation3 + $0x108] sm:$0xff]
        %v4078 = vld [vmem:[#allocation3 + $0x110] sm:$0xff]
        %v4079 = vld [vmem:[#allocation3 + $0x118] sm:$0xff]
        %v4080 = vld [vmem:[#allocation3 + $0x120] sm:$0xff]
        %v4081 = vld [vmem:[#allocation3 + $0x128] sm:$0xff]
        %v4082 = vld [vmem:[#allocation3 + $0x130] sm:$0xff]
        %v4083 = vld [vmem:[#allocation3 + $0x138] sm:$0xff]
        %v4084 = vld [vmem:[#allocation3 + $0x140] sm:$0xff]
        %v4085 = vld [vmem:[#allocation3 + $0x148] sm:$0xff]
        %v4086 = vld [vmem:[#allocation3 + $0x150] sm:$0xff]
        %v4087 = vld [vmem:[#allocation3 + $0x158] sm:$0xff]
        %v4088 = vld [vmem:[#allocation3 + $0x160] sm:$0xff]
        %v4089 = vld [vmem:[#allocation3 + $0x168] sm:$0xff]
        %v4090 = vld [vmem:[#allocation3 + $0x170] sm:$0xff]
        %v4091 = vld [vmem:[#allocation3 + $0x178] sm:$0xff]
        %v4092 = vld [vmem:[#allocation3 + $0x180] sm:$0xf]
        %v4093 = vld [vmem:[#allocation3 + $0x188] sm:$0xf]
        %vm4094 = vcmask 556032
        %v4096 = vsel %vm4094, %v4041, 0
        %v4099 = vsel %vm4094, %v4043, 0
        %v4102 = vsel %vm568, %v4092, 0
        %v4105 = vsel %vm568, %v4093, 0
        %4107 = vmatprep.subr.mxu0 %v4045
        %4108 = vmatpush1.msra.mxu0 %v4044
        %4109 = vmatprep.subr.mxu0 %v4047
        %4110 = vmatpush1.msra.mxu0 %v4046
        %4111 = vmatprep.subr.mxu0 %v4049
        %4112 = vmatpush1.msra.mxu0 %v4048
        %4113 = vmatprep.subr.mxu0 %v4051
        %4114 = vmatpush1.msra.mxu0 %v4050
        %4115 = vmatprep.subr.mxu0 %v4053
        %4116 = vmatpush1.msra.mxu0 %v4052
        %4117 = vmatprep.subr.mxu0 %v4055
        %4118 = vmatpush1.msra.mxu0 %v4054
        %4119 = vmatprep.subr.mxu0 %v4057
        %4120 = vmatpush1.msra.mxu0 %v4056
        %4121 = vmatprep.subr.mxu0 %v4059
        %4122 = vmatpush1.msra.mxu0 %v4058
        %4123 = vmatprep.subr.mxu0 %v4061
        %4124 = vmatpush1.msra.mxu0 %v4060
        %4125 = vmatprep.subr.mxu0 %v4063
        %4126 = vmatpush1.msra.mxu0 %v4062
        %4127 = vmatprep.subr.mxu0 %v4065
        %4128 = vmatpush1.msra.mxu0 %v4064
        %4129 = vmatprep.subr.mxu0 %v4067
        %4130 = vmatpush1.msra.mxu0 %v4066
        %4131 = vmatprep.subr.mxu0 %v4069
        %4132 = vmatpush1.msra.mxu0 %v4068
        %4133 = vmatprep.subr.mxu0 %v4071
        %4134 = vmatpush1.msra.mxu0 %v4070
        %4135 = vmatprep.subr.mxu0 %v4073
        %4136 = vmatpush1.msra.mxu0 %v4072
        %4137 = vmatprep.subr.mxu0 %v4075
        %4138 = vmatpush1.msra.mxu0 %v4074
        %4139 = vmatprep.subr.mxu0 %v4077
        %4140 = vmatpush1.msra.mxu0 %v4076
        %4141 = vmatprep.subr.mxu0 %v4079
        %4142 = vmatpush1.msra.mxu0 %v4078
        %4143 = vmatprep.subr.mxu0 %v4081
        %4144 = vmatpush1.msra.mxu0 %v4080
        %4145 = vmatprep.subr.mxu0 %v4083
        %4146 = vmatpush1.msra.mxu0 %v4082
        %4147 = vmatprep.subr.mxu0 %v4085
        %4148 = vmatpush1.msra.mxu0 %v4084
        %4149 = vmatprep.subr.mxu0 %v4087
        %4150 = vmatpush1.msra.mxu0 %v4086
        %4151 = vmatprep.subr.mxu0 %v4089
        %4152 = vmatpush1.msra.mxu0 %v4088
        %4153 = vmatprep.subr.mxu0 %v4091
        %4154 = vmatpush1.msra.mxu0 %v4090
        %4155 = vmatprep.subr.mxu0 %v4105
        %4156 = vmatpush1.msra.mxu0 %v4102
        %4157 = vmatprep.subr.mxu0 0.0
        %4158 = vmatpush1.msra.mxu0 0.0
        %4159 = vmatprep.subr.mxu0 0.0
        %4160 = vmatpush1.msra.mxu0 0.0
        %4161 = vmatprep.subr.mxu0 0.0
        %4162 = vmatpush1.msra.mxu0 0.0
        %4163 = vmatprep.subr.mxu0 0.0
        %4164 = vmatpush1.msra.mxu0 0.0
        %4165 = vmatprep.subr.mxu0 0.0
        %4166 = vmatpush1.msra.mxu0 0.0
        %4167 = vmatprep.subr.mxu0 0.0
        %4168 = vmatpush1.msra.mxu0 0.0
        %4169 = vmatprep.subr.mxu0 0.0
        %4170 = vmatpush1.msra.mxu0 0.0
        %4171 = vmatprep.mubr.f32.mxu0 %v4096
        %4172 = vmatmul.mubr.f32.gmra.mrb[0].mxu0 %v4040
        %v4173 = vpop.f32.mrb[0].mxu0
        %v4174 = vadd.f32 0.0, %v4173
        %v4175 = vpop.f32.mrb[0].mxu0
        %v4176 = vadd.f32 0.0, %v4175
        %4177 = vmatprep.mubr.f32.mxu0 %v4099
        %4178 = vmatmul.mubr.f32.gmra.mrb[0].mxu0 %v4042
        %v4179 = vpop.f32.mrb[0].mxu0
        %v4180 = vadd.f32 0.0, %v4179
        %v4181 = vpop.f32.mrb[0].mxu0
        %v4182 = vadd.f32 0.0, %v4181
        %4183 = vdwg.mxu0
        %v4184 = vld [vmem:[%s9] sm:$0xff]
        %v4185 = vld [vmem:[%s9 + $0x8] sm:$0xff]
        %4187 = vset.pattern.permute.xlu0 0
        %4188 = vperm.xlu0 %4187, %v4184
        %v4189 = vpop.permute.xlu0 %4188
        %4192 = vset.pattern.permute.xlu0 0
        %4193 = vperm.xlu0 %4192, %v4185
        %v4194 = vpop.permute.xlu0 %4193
        %v4196 = vmul.f32 %v4174, %v4189
        %v4197 = vmul.f32 %v4176, %v4189
        %v4198 = vmul.f32 %v4180, %v4194
        %v4199 = vmul.f32 %v4182, %v4194
        %v4200 = vld [vmem:[%s10] sm:$0xff]
        %v4201 = vld [vmem:[%s10 + $0x8] sm:$0xff]
        %4203 = vset.pattern.permute.xlu0 0
        %4204 = vperm.xlu0 %4203, %v4200
        %v4205 = vpop.permute.xlu0 %4204
        %4208 = vset.pattern.permute.xlu0 0
        %4209 = vperm.xlu0 %4208, %v4201
        %v4210 = vpop.permute.xlu0 %4209
        %v4212 = vadd.f32 %v4196, %v4205
        %v4213 = vadd.f32 %v4197, %v4205
        %v4214 = vadd.f32 %v4198, %v4210
        %v4215 = vadd.f32 %v4199, %v4210
        %v4216 = vxor.u32 %v4212, 2147483648
        %v4217 = vxor.u32 %v4213, 2147483648
        %v4218 = vxor.u32 %v4214, 2147483648
        %v4219 = vxor.u32 %v4215, 2147483648
        %v4220 = vmul.f32 %v4216, 1.442695
        %v4221 = vpow.pop %v4220
        %v4222 = vmul.f32 %v4217, 1.442695
        %v4223 = vpow.pop %v4222
        %v4224 = vmul.f32 %v4218, 1.442695
        %v4225 = vpow.pop %v4224
        %v4226 = vmul.f32 %v4219, 1.442695
        %v4227 = vpow.pop %v4226
        %v4228 = vadd.f32 %v4221, 1.0
        %v4229 = vadd.f32 %v4223, 1.0
        %v4230 = vadd.f32 %v4225, 1.0
        %v4231 = vadd.f32 %v4227, 1.0
        %v4232 = vrcp.pop %v4228
        %v4233 = vmul.f32 1.0, %v4232
        %v4234 = vrcp.pop %v4229
        %v4235 = vmul.f32 1.0, %v4234
        %v4236 = vrcp.pop %v4230
        %v4237 = vmul.f32 1.0, %v4236
        %v4238 = vrcp.pop %v4231
        %v4239 = vmul.f32 1.0, %v4238
        %v4240 = vmul.f32 %v652, %v4233
        %v4241 = vmul.f32 %v653, %v4235
        %v4242 = vmul.f32 %v654, %v4237
        %v4243 = vmul.f32 %v655, %v4239
        %4244 = vst [vmem:[%s458] sm:$0xff] %v4240
        %4245 = vst [vmem:[%s458 + $0x8] sm:$0xff] %v4241
        %4246 = vst [vmem:[%s458 + $0x10] sm:$0xff] %v4242
        %4247 = vst [vmem:[%s458 + $0x18] sm:$0xff] %v4243
        %s4248 = sand.u32 %s295, 1
        %s4249 = scalar_lea.sflag [#allocation6], %s4248
        %s4250 = sand.u32 %s295, 1
        %s4251 = smul.addr %s4250, 32
        %s4252 = scalar_lea.vmem [#allocation10], %s4251
        // Predicated region
        $region81: #{tpu_custom_call.1} parent=67 // pred_check
          %p4253 = pneg %p305
        $region82: #{tpu_custom_call.1} parent=67 // pred_check_branch
          %4255 = sbr.rel (%p4253) target = $region84
        $region83: #{tpu_custom_call.1} parent=67 // pred_region
          %s4257 = ssub.s32 512, 512
          %4258 = vsyncadd %s4249, %s4257
          %s4259 = smul.addr %s30, 4
          %s4260 = smul.addr %s4259, 128
          %s4261 = scalar_lea.hbm %s12, %s4260
          %s4262 = sshll.u32 %s4252, 4
          %s4263 = int_to_ptr.vmem [resolvable:$true] %s4262
          %4268 = dma.vmem_to_hbm [thread:$0]  %s4263, 512, %s4261, %s4249, 256, 256, 16
        $region84: #{tpu_custom_call.1} parent=67 // pred_fallthru
          _
      $region68: #{tpu_custom_call.1} parent=5 // pred_fallthru
        _
      %p4269 = scmp.le.s32.totalorder 2, %s25
      // Predicated region
      $region85: #{tpu_custom_call.1} parent=5 // pred_check
        %p4270 = pneg %p4269
      $region86: #{tpu_custom_call.1} parent=5 // pred_check_branch
        %4272 = sbr.rel (%p4270) target = $region88
      $region87: #{tpu_custom_call.1} parent=5 // pred_region
        %s4273 = ssub.s32 %s25, 2
        // Predicated region
        $region89: #{tpu_custom_call.1} parent=87 // pred_check
          %p4274 = pneg %p311
        $region90: #{tpu_custom_call.1} parent=87 // pred_check_branch
          %4276 = sbr.rel (%p4274) target = $region92
        $region91: #{tpu_custom_call.1} parent=87 // pred_region
          %s4277 = sand.u32 %s296, 1
          %s4278 = scalar_lea.sflag [#allocation6], %s4277
          %s4279 = sand.u32 %s296, 1
          %s4280 = smul.addr %s4279, 32
          %s4281 = scalar_lea.vmem [#allocation10], %s4280
          %4282 = dma.done %s4278, 512
        $region92: #{tpu_custom_call.1} parent=87 // pred_fallthru
          _
      $region88: #{tpu_custom_call.1} parent=5 // pred_fallthru
        _
    $region6: #{tpu_custom_call.1} parent=1 // loop_footer
      %s29 = sadd.s32 1, %s25
    $region7: #{tpu_custom_call.1} parent=1 // loop_footer_branch
      %24 = sbr.rel target = $region3
    $region8: #{tpu_custom_call.1} parent=1 // loop_exit
      _
    %4283 = vsyncpa [#allocation5], 1
    %s4284 = scalar_lea.sflag [#allocation5], 1
    %4285 = vsyncpa %s4284, 1
    %4286 = vsyncpa [#allocation8], 1
    %4287 = vsyncpa [#allocation6], 1
    %s4288 = scalar_lea.sflag [#allocation6], 1
    %4289 = vsyncpa %s4288, 1

</llo_original>
